<compile_context>
chip_gen: v5e
topology: v5e:2x2
jax: 0.10.0
libtpu: 0.0.40
codegen_flags: <defaults>
</compile_context>

<pallas_src>
import functools

import jax
import jax.numpy as jnp
from jax.experimental import pallas as pl
from jax.experimental.pallas import tpu as pltpu

EPS = 1e-5

# Actual per-call VMEM usage is <= ~14 MiB with the default tiles; 48 MiB gives
# headroom while staying below every generation's physical VMEM (v7x: 64 MiB).
_VMEM_LIMIT_BYTES = 48 * 1024 * 1024
_ROW_TILE_TARGET = 8192   # rows per grid step (bf16 stream -> <= ~12 MiB buffers)


def _pick_tile(n, target=_ROW_TILE_TARGET):
    """Rows per grid step: full extent if it fits, else a 16-aligned sub-tile.
    Non-divisible sizes use a cdiv grid + masked last block, so the tile never
    degrades to tiny tiles nor blows VMEM for awkward shapes."""
    if n <= target:
        return n
    return max(16, (target // 16) * 16)


def _cparams(*semantics):
    return pltpu.CompilerParams(dimension_semantics=tuple(semantics),
                                vmem_limit_bytes=_VMEM_LIMIT_BYTES)


def _bn_affine(col_sum, col_sq, gamma, beta, count):
    """Fold training-mode BatchNorm (biased batch stats) into scale/shift.
    NOTE: E[x^2]-E[x]^2 in f32 (clamped); fine for PointNet-sized B*N."""
    mean = col_sum / count
    var = jnp.maximum(col_sq / count - mean * mean, 0.0)
    scale = gamma * jax.lax.rsqrt(var + EPS)
    shift = beta - mean * scale
    return scale, shift


def _row_mask(z, start, total_rows):
    return (jax.lax.broadcasted_iota(jnp.int32, z.shape, 0) + start) < total_rows


def _tiny_conv(x, w_ref, b_ref):
    """conv1: Cin is tiny (3) -> VPU broadcast-FMAs; MXU fallback if wide."""
    cin = x.shape[1]
    if cin <= 8:
        z = x[:, 0:1] * w_ref[0:1, :]
        for c in range(1, cin):
            z = z + x[:, c:c + 1] * w_ref[c:c + 1, :]
    else:
        z = jnp.dot(x, w_ref[...], preferred_element_type=jnp.float32)
    return z + b_ref[...]


# ---------------------------------------------------------------------------
# Kernel 1: conv1 statistics only (the activation is recomputed by kernel 2).
# ---------------------------------------------------------------------------
def _conv1_stats_kernel(x_ref, w_ref, b_ref, sum_ref, sq_ref,
                        *, total_rows, needs_mask):
    i = pl.program_id(0)
    x = x_ref[...]                                   # (rt, cin) f32
    z = _tiny_conv(x, w_ref, b_ref)                  # (rt, cmid) f32
    if needs_mask:
        z = jnp.where(_row_mask(z, i * x.shape[0], total_rows), z, 0.0)
    sum_ref[...] = jnp.sum(z, axis=0, keepdims=True)[None]
    sq_ref[...] = jnp.sum(z * z, axis=0, keepdims=True)[None]


def _conv1_stats(x2, w, b, rt):
    rows, cin = x2.shape
    cmid = w.shape[1]
    g = pl.cdiv(rows, rt)
    kernel = functools.partial(_conv1_stats_kernel, total_rows=rows,
                               needs_mask=(rows % rt != 0))
    s, q = pl.pallas_call(
        kernel,
        grid=(g,),
        in_specs=[
            pl.BlockSpec((rt, cin), lambda i: (i, 0)),
            pl.BlockSpec((cin, cmid), lambda i: (0, 0)),
            pl.BlockSpec((1, cmid), lambda i: (0, 0)),
        ],
        out_specs=(
            pl.BlockSpec((1, 1, cmid), lambda i: (i, 0, 0)),
            pl.BlockSpec((1, 1, cmid), lambda i: (i, 0, 0)),
        ),
        out_shape=(
            jax.ShapeDtypeStruct((g, 1, cmid), jnp.float32),
            jax.ShapeDtypeStruct((g, 1, cmid), jnp.float32),
        ),
        compiler_params=_cparams("parallel"),
        cost_estimate=pl.CostEstimate(
            flops=2 * rows * cin * cmid, transcendentals=0,
            bytes_accessed=4 * rows * cin + 4 * cin * cmid),
    )(x2, w, b)
    return s.sum(axis=0), q.sum(axis=0)          # (1, cmid) each


# ---------------------------------------------------------------------------
# Kernel 2: recompute conv1 -> bn1 -> ReLU -> conv2 (bf16 MXU) -> bf16 stream.
# ---------------------------------------------------------------------------
def _conv1_bn_conv2_kernel(x_ref, w1_ref, b1_ref, s_ref, t_ref,
                           w2_ref, b2_ref, h_ref, sum_ref, sq_ref,
                           *, total_rows, needs_mask):
    i = pl.program_id(0)
    x = x_ref[...]                                   # (rt, cin) f32
    z1 = _tiny_conv(x, w1_ref, b1_ref)               # (rt, cmid) f32
    h1 = jnp.maximum(z1 * s_ref[...] + t_ref[...], 0.0)
    z2 = jnp.dot(h1.astype(w2_ref.dtype), w2_ref[...],
                 preferred_element_type=jnp.float32) + b2_ref[...]
    h_ref[...] = z2.astype(h_ref.dtype)              # bf16 activation stream
    if needs_mask:
        z2 = jnp.where(_row_mask(z2, i * x.shape[0], total_rows), z2, 0.0)
    sum_ref[...] = jnp.sum(z2, axis=0, keepdims=True)[None]
    sq_ref[...] = jnp.sum(z2 * z2, axis=0, keepdims=True)[None]


def _conv1_bn_conv2(x2, w1, b1, scale1, shift1, w2_bf16, b2, rt):
    rows, cin = x2.shape
    cmid = w1.shape[1]
    cout = w2_bf16.shape[1]
    g = pl.cdiv(rows, rt)
    kernel = functools.partial(_conv1_bn_conv2_kernel, total_rows=rows,
                               needs_mask=(rows % rt != 0))
    h, s, q = pl.pallas_call(
        kernel,
        grid=(g,),
        in_specs=[
            pl.BlockSpec((rt, cin), lambda i: (i, 0)),
            pl.BlockSpec((cin, cmid), lambda i: (0, 0)),
            pl.BlockSpec((1, cmid), lambda i: (0, 0)),
            pl.BlockSpec((1, cmid), lambda i: (0, 0)),
            pl.BlockSpec((1, cmid), lambda i: (0, 0)),
            pl.BlockSpec((cmid, cout), lambda i: (0, 0)),
            pl.BlockSpec((1, cout), lambda i: (0, 0)),
        ],
        out_specs=(
            pl.BlockSpec((rt, cout), lambda i: (i, 0)),
            pl.BlockSpec((1, 1, cout), lambda i: (i, 0, 0)),
            pl.BlockSpec((1, 1, cout), lambda i: (i, 0, 0)),
        ),
        out_shape=(
            jax.ShapeDtypeStruct((rows, cout), jnp.bfloat16),
            jax.ShapeDtypeStruct((g, 1, cout), jnp.float32),
            jax.ShapeDtypeStruct((g, 1, cout), jnp.float32),
        ),
        compiler_params=_cparams("parallel"),
        cost_estimate=pl.CostEstimate(
            flops=2 * rows * cmid * (cin + cout), transcendentals=0,
            bytes_accessed=4 * rows * cin + 2 * rows * cout + 2 * cmid * cout),
    )(x2, w1, b1, scale1, shift1, w2_bf16, b2)
    return h, s.sum(axis=0), q.sum(axis=0)


# ---------------------------------------------------------------------------
# Kernel 3: BN(prev, folded affine) -> ReLU -> bf16 matmul -> bf16 stream.
# ---------------------------------------------------------------------------
def _bn_relu_conv_kernel(h_ref, s_ref, t_ref, w_ref, b_ref,
                         out_ref, sum_ref, sq_ref, *, total_rows, needs_mask):
    i = pl.program_id(0)
    h = h_ref[...].astype(jnp.float32)               # bf16 -> f32
    a = jnp.maximum(h * s_ref[...] + t_ref[...], 0.0)
    z = jnp.dot(a.astype(w_ref.dtype), w_ref[...],
                preferred_element_type=jnp.float32) + b_ref[...]
    out_ref[...] = z.astype(out_ref.dtype)
    if needs_mask:
        z = jnp.where(_row_mask(z, i * h.shape[0], total_rows), z, 0.0)
    sum_ref[...] = jnp.sum(z, axis=0, keepdims=True)[None]
    sq_ref[...] = jnp.sum(z * z, axis=0, keepdims=True)[None]


def _bn_relu_conv(h_in, scale, shift, w_bf16, b, rt):
    rows, cin = h_in.shape
    cout = w_bf16.shape[1]
    g = pl.cdiv(rows, rt)
    kernel = functools.partial(_bn_relu_conv_kernel, total_rows=rows,
                               needs_mask=(rows % rt != 0))
    h, s, q = pl.pallas_call(
        kernel,
        grid=(g,),
        in_specs=[
            pl.BlockSpec((rt, cin), lambda i: (i, 0)),
            pl.BlockSpec((1, cin), lambda i: (0, 0)),
            pl.BlockSpec((1, cin), lambda i: (0, 0)),
            pl.BlockSpec((cin, cout), lambda i: (0, 0)),
            pl.BlockSpec((1, cout), lambda i: (0, 0)),
        ],
        out_specs=(
            pl.BlockSpec((rt, cout), lambda i: (i, 0)),
            pl.BlockSpec((1, 1, cout), lambda i: (i, 0, 0)),
            pl.BlockSpec((1, 1, cout), lambda i: (i, 0, 0)),
        ),
        out_shape=(
            jax.ShapeDtypeStruct((rows, cout), jnp.bfloat16),
            jax.ShapeDtypeStruct((g, 1, cout), jnp.float32),
            jax.ShapeDtypeStruct((g, 1, cout), jnp.float32),
        ),
        compiler_params=_cparams("parallel"),
        cost_estimate=pl.CostEstimate(
            flops=2 * rows * cin * cout, transcendentals=0,
            bytes_accessed=2 * rows * (cin + cout) + 2 * cin * cout),
    )(h_in, scale, shift, w_bf16, b)
    return h, s.sum(axis=0), q.sum(axis=0)


# ---------------------------------------------------------------------------
# Kernel 4: bn3 -> ReLU -> conv4 fused with the per-cloud max/min pool + stats.
# The conv4 activation (B*N, 512) never touches HBM.
# ---------------------------------------------------------------------------
def _bn_relu_conv_pool_kernel(h_ref, s_ref, t_ref, w_ref, b_ref,
                              max_ref, min_ref, sum_ref, sq_ref,
                              *, n_points, needs_mask):
    j = pl.program_id(1)

    @pl.when(j == 0)
    def _():
        max_ref[...] = jnp.full(max_ref.shape, -jnp.inf, max_ref.dtype)
        min_ref[...] = jnp.full(min_ref.shape, jnp.inf, min_ref.dtype)
        sum_ref[...] = jnp.zeros_like(sum_ref)
        sq_ref[...] = jnp.zeros_like(sq_ref)

    h = h_ref[0].astype(jnp.float32)                  # (nt, 256)
    a = jnp.maximum(h * s_ref[...] + t_ref[...], 0.0)
    z = jnp.dot(a.astype(w_ref.dtype), w_ref[...],
                preferred_element_type=jnp.float32) + b_ref[...]   # (nt, 512)

    if needs_mask:
        valid = _row_mask(z, j * h.shape[0], n_points)
        z_stat = jnp.where(valid, z, 0.0)
        z_max = jnp.where(valid, z, -jnp.inf)
        z_min = jnp.where(valid, z, jnp.inf)
    else:
        z_stat, z_max, z_min = z, z, z

    sum_ref[...] += jnp.sum(z_stat, axis=0, keepdims=True)[None]
    sq_ref[...] += jnp.sum(z_stat * z_stat, axis=0, keepdims=True)[None]
    max_ref[...] = jnp.maximum(max_ref[...],
                               jnp.max(z_max, axis=0, keepdims=True)[None])
    min_ref[...] = jnp.minimum(min_ref[...],
                               jnp.min(z_min, axis=0, keepdims=True)[None])


def _bn_relu_conv_pool(h_bnc, scale, shift, w_bf16, b, nt):
    B, N, cin = h_bnc.shape
    cout = w_bf16.shape[1]
    jt = pl.cdiv(N, nt)
    kernel = functools.partial(_bn_relu_conv_pool_kernel, n_points=N,
                               needs_mask=(N % nt != 0))
    mx, mn, s, q = pl.pallas_call(
        kernel,
        grid=(B, jt),
        in_specs=[
            pl.BlockSpec((1, nt, cin), lambda bb, jj: (bb, jj, 0)),
            pl.BlockSpec((1, cin), lambda bb, jj: (0, 0)),
            pl.BlockSpec((1, cin), lambda bb, jj: (0, 0)),
            pl.BlockSpec((cin, cout), lambda bb, jj: (0, 0)),
            pl.BlockSpec((1, cout), lambda bb, jj: (0, 0)),
        ],
        out_specs=(
            pl.BlockSpec((1, 1, cout), lambda bb, jj: (bb, 0, 0)),
            pl.BlockSpec((1, 1, cout), lambda bb, jj: (bb, 0, 0)),
            pl.BlockSpec((1, 1, cout), lambda bb, jj: (bb, 0, 0)),
            pl.BlockSpec((1, 1, cout), lambda bb, jj: (bb, 0, 0)),
        ),
        out_shape=(
            jax.ShapeDtypeStruct((B, 1, cout), jnp.float32),
            jax.ShapeDtypeStruct((B, 1, cout), jnp.float32),
            jax.ShapeDtypeStruct((B, 1, cout), jnp.float32),
            jax.ShapeDtypeStruct((B, 1, cout), jnp.float32),
        ),
        compiler_params=_cparams("parallel", "arbitrary"),
        cost_estimate=pl.CostEstimate(
            flops=2 * B * N * cin * cout, transcendentals=0,
            bytes_accessed=2 * B * N * cin + 2 * cin * cout + 16 * B * cout),
    )(h_bnc, scale, shift, w_bf16, b)
    return mx, mn, s.sum(axis=0), q.sum(axis=0)


# ---------------------------------------------------------------------------
# Kernel 5: bn4-affine on the pooled max/min + fused mean/logvar MLP heads.
# ---------------------------------------------------------------------------
def _heads_kernel(mx_ref, mn_ref, s4_ref, t4_ref,
                  w1_ref, b1_ref, g1_ref, be1_ref,
                  w2_ref, b2_ref, g2_ref, be2_ref,
                  w3_ref, b3_ref, out_ref):
    mx = mx_ref[...][:, 0, :]                         # (B, 512)
    mn = mn_ref[...][:, 0, :]
    s4 = s4_ref[...]
    # max over points of (s*z + t) == max(s*max_z, s*min_z) + t for any sign s.
    feat = jnp.maximum(s4 * mx, s4 * mn) + t4_ref[...]

    def bn_rows(z, g, beta):
        mean = jnp.mean(z, axis=0, keepdims=True)
        var = jnp.mean((z - mean) ** 2, axis=0, keepdims=True)
        return (z - mean) * jax.lax.rsqrt(var + EPS) * g + beta

    z = jnp.dot(feat.astype(w1_ref.dtype), w1_ref[...],
                preferred_element_type=jnp.float32) + b1_ref[...]
    z = jnp.maximum(bn_rows(z, g1_ref[...], be1_ref[...]), 0.0)
    z = jnp.dot(z.astype(w2_ref.dtype), w2_ref[...],
                preferred_element_type=jnp.float32) + b2_ref[...]
    z = jnp.maximum(bn_rows(z, g2_ref[...], be2_ref[...]), 0.0)
    out_ref[...] = jnp.dot(z.astype(w3_ref.dtype), w3_ref[...],
                           preferred_element_type=jnp.float32) + b3_ref[...]


def _heads(mx, mn, sc4, sh4, w1h, b1h, g1h, be1h, w2h, b2h, g2h, be2h, w3h, b3h):
    B, _, C = mx.shape
    d1 = w1h.shape[1]
    d2 = w2h.shape[1]
    out_pad = w3h.shape[1]

    def full(shape):
        zeros = (0,) * len(shape)
        return pl.BlockSpec(shape, lambda i, _z=zeros: _z)

    return pl.pallas_call(
        _heads_kernel,
        grid=(1,),
        in_specs=[
            full((B, 1, C)), full((B, 1, C)), full((1, C)), full((1, C)),
            full((C, d1)), full((1, d1)), full((1, d1)), full((1, d1)),
            full((d1, d2)), full((1, d2)), full((1, d2)), full((1, d2)),
            full((d2, out_pad)), full((1, out_pad)),
        ],
        out_specs=full((B, out_pad)),
        out_shape=jax.ShapeDtypeStruct((B, out_pad), jnp.float32),
        compiler_params=_cparams("arbitrary"),
    )(mx, mn, sc4, sh4, w1h, b1h, g1h, be1h, w2h, b2h, g2h, be2h, w3h, b3h)


# ---------------------------------------------------------------------------
# One-time parameter preparation (outside jit): bf16 casts + head fusion.
# ---------------------------------------------------------------------------
def prepare_params(params):
    (w1, b1, g1, be1, w2, b2, g2, be2,
     w3, b3, g3, be3, w4, b4, g4, be4) = params[:16]
    (w1m, b1m, g1m, be1m, w2m, b2m, g2m, be2m, w3m, b3m) = params[16:26]
    (w1v, b1v, g1v, be1v, w2v, b2v, g2v, be2v, w3v, b3v) = params[26:36]

    zdim = w3m.shape[1]
    out_pad = max(128, ((2 * zdim + 127) // 128) * 128)   # lane-dense output

    w1h = jnp.concatenate([w1m, w1v], axis=1).astype(jnp.bfloat16)      # (512,512)
    b1h = jnp.concatenate([b1m, b1v], axis=1)
    g1h = jnp.concatenate([g1m, g1v], axis=1)
    be1h = jnp.concatenate([be1m, be1v], axis=1)

    w2h = jnp.block([[w2m, jnp.zeros_like(w2v)],
                     [jnp.zeros_like(w2m), w2v]]).astype(jnp.bfloat16)  # (512,256)
    b2h = jnp.concatenate([b2m, b2v], axis=1)
    g2h = jnp.concatenate([g2m, g2v], axis=1)
    be2h = jnp.concatenate([be2m, be2v], axis=1)

    w3blk = jnp.block([[w3m, jnp.zeros_like(w3v)],
                       [jnp.zeros_like(w3m), w3v]])                     # (256,2z)
    w3h = jnp.zeros((w3blk.shape[0], out_pad), jnp.float32)
    w3h = w3h.at[:, :2 * zdim].set(w3blk).astype(jnp.bfloat16)
    b3h = jnp.zeros((1, out_pad), jnp.float32)
    b3h = b3h.at[:, :zdim].set(b3m).at[:, zdim:2 * zdim].set(b3v)

    return dict(
        w1=w1, b1=b1, g1=g1, be1=be1,
        w2=w2.astype(jnp.bfloat16), b2=b2, g2=g2, be2=be2,
        w3=w3.astype(jnp.bfloat16), b3=b3, g3=g3, be3=be3,
        w4=w4.astype(jnp.bfloat16), b4=b4, g4=g4, be4=be4,
        w1h=w1h, b1h=b1h, g1h=g1h, be1h=be1h,
        w2h=w2h, b2h=b2h, g2h=g2h, be2h=be2h,
        w3h=w3h, b3h=b3h)


# ---------------------------------------------------------------------------
# Wrapper: full forward pass.
# ---------------------------------------------------------------------------
def pointnet_encoder(x, prep, zdim, row_tile=None, n_tile=None):
    B, N, cin = x.shape
    rows = B * N
    rt = row_tile if row_tile is not None else _pick_tile(rows)
    nt = n_tile if n_tile is not None else _pick_tile(N)
    assert rt == rows or rt % 8 == 0
    assert nt == N or nt % 8 == 0

    p = prep
    x2 = x.reshape(rows, cin)

    # ---- point-feature stage (streamed row tiles, two-pass BatchNorm) ----
    s1, q1 = _conv1_stats(x2, p["w1"], p["b1"], rt)
    sc1, sh1 = _bn_affine(s1, q1, p["g1"], p["be1"], rows)

    h2, s2, q2 = _conv1_bn_conv2(x2, p["w1"], p["b1"], sc1, sh1,
                                 p["w2"], p["b2"], rt)
    sc2, sh2 = _bn_affine(s2, q2, p["g2"], p["be2"], rows)

    h3, s3, q3 = _bn_relu_conv(h2, sc2, sh2, p["w3"], p["b3"], rt)
    sc3, sh3 = _bn_affine(s3, q3, p["g3"], p["be3"], rows)

    mx, mn, s4, q4 = _bn_relu_conv_pool(h3.reshape(B, N, -1), sc3, sh3,
                                        p["w4"], p["b4"], nt)
    sc4, sh4 = _bn_affine(s4, q4, p["g4"], p["be4"], rows)

    # ---- fused mean/logvar heads on the pooled (B, 512) features ----
    out = _heads(mx, mn, sc4, sh4,
                 p["w1h"], p["b1h"], p["g1h"], p["be1h"],
                 p["w2h"], p["b2h"], p["g2h"], p["be2h"],
                 p["w3h"], p["b3h"])
    return out[:, :zdim], out[:, zdim:2 * zdim]


# ------------------------- deterministic parameter init -------------------------
def _linear_init(key, fan_in, fan_out):
    # PyTorch default Conv1d/Linear init: U(-1/sqrt(fan_in), 1/sqrt(fan_in)).
    k1, k2 = jax.random.split(key)
    bound = 1.0 / float(fan_in) ** 0.5
    w = jax.random.uniform(k1, (fan_in, fan_out), jnp.float32, -bound, bound)
    b = jax.random.uniform(k2, (1, fan_out), jnp.float32, -bound, bound)
    return w, b


def _bn_init(c):
    return jnp.ones((1, c), jnp.float32), jnp.zeros((1, c), jnp.float32)


def init_params(key, zdim, input_dim):
    params = []
    keys = iter(jax.random.split(key, 16))
    for cin, cout in [(input_dim, 128), (128, 128), (128, 256), (256, 512)]:
        w, b = _linear_init(next(keys), cin, cout)
        g, beta = _bn_init(cout)
        params += [w, b, g, beta]
    for _ in range(2):  # mean head then logvar head
        for cin, cout, has_bn in [(512, 256, True), (256, 128, True),
                                  (128, zdim, False)]:
            w, b = _linear_init(next(keys), cin, cout)
            params += [w, b]
            if has_bn:
                g, beta = _bn_init(cout)
                params += [g, beta]
    return params


# ------------------------------ pure-JAX reference ------------------------------
def reference(x, params, zdim, matmul_dtype=jnp.float32, act_dtype=None):
    """Module semantics.  matmul_dtype=bf16 mimics the MXU casts; act_dtype=bf16
    additionally mimics the kernel's bf16 activation stream (layers 2 and 3)."""
    B, N, cin = x.shape
    it = iter(params)

    def mm(a, w, dt):
        return jnp.dot(a.astype(dt), w.astype(dt),
                       preferred_element_type=jnp.float32)

    h = x.reshape(B * N, cin)
    for li in range(4):
        w, b, g, beta = next(it), next(it), next(it), next(it)
        dt = jnp.float32 if li == 0 else matmul_dtype  # conv1 stays f32 (VPU path)
        z = mm(h, w, dt) + b
        mean = z.mean(0, keepdims=True)
        var = ((z - mean) ** 2).mean(0, keepdims=True)
        if act_dtype is not None and li in (1, 2):     # streamed layers only
            z = z.astype(act_dtype).astype(jnp.float32)
        h = (z - mean) / jnp.sqrt(var + EPS) * g + beta
        if li < 3:
            h = jnp.maximum(h, 0.0)
    feat = h.reshape(B, N, -1).max(axis=1)

    def head(f):
        for _ in range(2):
            w, b, g, beta = next(it), next(it), next(it), next(it)
            f = mm(f, w, matmul_dtype) + b
            mean = f.mean(0, keepdims=True)
            var = ((f - mean) ** 2).mean(0, keepdims=True)
            f = jnp.maximum((f - mean) / jnp.sqrt(var + EPS) * g + beta, 0.0)
        w, b = next(it), next(it)
        return mm(f, w, matmul_dtype) + b

    return head(feat), head(feat)


if __name__ == "__main__":
    # Small but non-degenerate shapes: 4 clouds of 40 points; the explicit
    # row_tile / n_tile force multi-tile grids AND masked (cdiv) last tiles so
    # the cross-tile BN statistics and fused max/min-pool paths are exercised.
    B, N, INPUT_DIM, ZDIM = 4, 40, 3, 32

    key = jax.random.PRNGKey(0)
    kx, kp = jax.random.split(key)
    x = jax.random.normal(kx, (B, N, INPUT_DIM), dtype=jnp.float32)
    params = init_params(kp, ZDIM, INPUT_DIM)
    prep = prepare_params(params)     # one-time fusion / bf16 casts, outside jit

    fwd_tiled = jax.jit(functools.partial(pointnet_encoder, zdim=ZDIM,
                                          row_tile=48, n_tile=16))
    m, v = fwd_tiled(x, prep)
    jax.block_until_ready((m, v))
    assert m.shape == (B, ZDIM) and v.shape == (B, ZDIM)

    # Default (full-extent, unmasked) tiles must agree with the sub-tiled run.
    fwd = jax.jit(functools.partial(pointnet_encoder, zdim=ZDIM))
    m2, v2 = fwd(x, prep)
    jax.block_until_ready((m2, v2))
    assert jnp.allclose(m, m2, atol=1e-2, rtol=1e-2)
    assert jnp.allclose(v, v2, atol=1e-2, rtol=1e-2)

    # Tight check against a precision-matched reference (bf16 MXU operands plus
    # the bf16 inter-layer activation stream).
    m_bf, v_bf = reference(x, params, ZDIM, matmul_dtype=jnp.bfloat16,
                           act_dtype=jnp.bfloat16)
    assert jnp.allclose(m, m_bf, atol=2e-2, rtol=2e-2)
    assert jnp.allclose(v, v_bf, atol=2e-2, rtol=2e-2)

    # Looser check against exact f32 module semantics.
    m32, v32 = reference(x, params, ZDIM)
    assert jnp.allclose(m, m32, atol=1e-1, rtol=1e-1)
    assert jnp.allclose(v, v32, atol=1e-1, rtol=1e-1)

    print("KERNEL_OK")
</pallas_src>

<mosaic_0001>
module attributes {stable_mosaic.version = 11 : i64} {
  func.func @_conv1_stats_kernel(%arg0: i32, %arg1: memref<48x3xf32, #tpu.memory_space<vmem>>, %arg2: memref<3x128xf32, #tpu.memory_space<vmem>>, %arg3: memref<1x128xf32, #tpu.memory_space<vmem>>, %arg4: memref<1x1x128xf32, #tpu.memory_space<vmem>>, %arg5: memref<1x1x128xf32, #tpu.memory_space<vmem>>) attributes {dimension_semantics = [#tpu.dimension_semantics<parallel>], iteration_bounds = array<i64: 4>, scalar_prefetch = 0 : i64, scratch_operands = 0 : i64, tpu.core_type = #tpu.core_type<tc>, window_params = [{transform_indices = @transform_0, window_bounds = array<i64: 48, 3>}, {pipeline_mode = #tpu.pipeline_mode<synchronous>, transform_indices = @transform_1, window_bounds = array<i64: 3, 128>}, {pipeline_mode = #tpu.pipeline_mode<synchronous>, transform_indices = @transform_2, window_bounds = array<i64: 1, 128>}, {transform_indices = @transform_3, window_bounds = array<i64: 1, 1, 128>}, {transform_indices = @transform_4, window_bounds = array<i64: 1, 1, 128>}]} {
    %c0 = arith.constant 0 : index
    %c0_0 = arith.constant 0 : index
    %0 = vector.load %arg1[%c0, %c0_0] : memref<48x3xf32, #tpu.memory_space<vmem>>, vector<48x3xf32>
    %1 = vector.extract_strided_slice %0 {offsets = [0, 0], sizes = [48, 1], strides = [1, 1]} : vector<48x3xf32> to vector<48x1xf32>
    %c0_1 = arith.constant 0 : index
    %c0_2 = arith.constant 0 : index
    %2 = vector.load %arg2[%c0_1, %c0_2] : memref<3x128xf32, #tpu.memory_space<vmem>>, vector<1x128xf32>
    %3 = vector.broadcast %1 : vector<48x1xf32> to vector<48x128xf32>
    %4 = vector.broadcast %2 : vector<1x128xf32> to vector<48x128xf32>
    %5 = arith.mulf %3, %4 : vector<48x128xf32>
    %6 = vector.extract_strided_slice %0 {offsets = [0, 1], sizes = [48, 1], strides = [1, 1]} : vector<48x3xf32> to vector<48x1xf32>
    %c1 = arith.constant 1 : index
    %c0_3 = arith.constant 0 : index
    %7 = vector.load %arg2[%c1, %c0_3] : memref<3x128xf32, #tpu.memory_space<vmem>>, vector<1x128xf32>
    %8 = vector.broadcast %6 : vector<48x1xf32> to vector<48x128xf32>
    %9 = vector.broadcast %7 : vector<1x128xf32> to vector<48x128xf32>
    %10 = arith.mulf %8, %9 : vector<48x128xf32>
    %11 = arith.addf %5, %10 : vector<48x128xf32>
    %12 = vector.extract_strided_slice %0 {offsets = [0, 2], sizes = [48, 1], strides = [1, 1]} : vector<48x3xf32> to vector<48x1xf32>
    %c2 = arith.constant 2 : index
    %c0_4 = arith.constant 0 : index
    %13 = vector.load %arg2[%c2, %c0_4] : memref<3x128xf32, #tpu.memory_space<vmem>>, vector<1x128xf32>
    %14 = vector.broadcast %12 : vector<48x1xf32> to vector<48x128xf32>
    %15 = vector.broadcast %13 : vector<1x128xf32> to vector<48x128xf32>
    %16 = arith.mulf %14, %15 : vector<48x128xf32>
    %17 = arith.addf %11, %16 : vector<48x128xf32>
    %c0_5 = arith.constant 0 : index
    %c0_6 = arith.constant 0 : index
    %18 = vector.load %arg3[%c0_5, %c0_6] : memref<1x128xf32, #tpu.memory_space<vmem>>, vector<1x128xf32>
    %19 = vector.broadcast %18 : vector<1x128xf32> to vector<48x128xf32>
    %20 = arith.addf %17, %19 : vector<48x128xf32>
    %c48_i32 = arith.constant 48 : i32
    %21 = arith.muli %arg0, %c48_i32 : i32
    %22 = tpu.iota {dimensions = array<i32: 0>} : vector<48x128xi32>
    %23 = vector.broadcast %21 : i32 to vector<48x128xi32>
    %24 = arith.addi %22, %23 : vector<48x128xi32>
    %c160_i32 = arith.constant 160 : i32
    %25 = vector.broadcast %c160_i32 : i32 to vector<48x128xi32>
    %26 = arith.cmpi slt, %24, %25 : vector<48x128xi32>
    %cst = arith.constant 0.000000e+00 : f32
    %27 = vector.broadcast %cst : f32 to vector<48x128xf32>
    %28 = arith.select %26, %20, %27 : vector<48x128xi1>, vector<48x128xf32>
    %cst_7 = arith.constant dense<0.000000e+00> : vector<128xf32>
    %29 = vector.multi_reduction <add>, %28, %cst_7 [0] : vector<48x128xf32> to vector<128xf32>
    %30 = vector.shape_cast %29 : vector<128xf32> to vector<1x128xf32>
    %31 = vector.shape_cast %30 : vector<1x128xf32> to vector<1x1x128xf32>
    %c0_8 = arith.constant 0 : index
    %c0_9 = arith.constant 0 : index
    %c0_10 = arith.constant 0 : index
    %32 = vector.load %arg4[%c0_8, %c0_9, %c0_10] : memref<1x1x128xf32, #tpu.memory_space<vmem>>, vector<1x1x128xf32>
    tpu.vector_store %arg4[%c0_8, %c0_9, %c0_10], %31 {strides = array<i32>} : memref<1x1x128xf32, #tpu.memory_space<vmem>>, vector<1x1x128xf32>,
    %33 = arith.mulf %28, %28 : vector<48x128xf32>
    %cst_11 = arith.constant dense<0.000000e+00> : vector<128xf32>
    %34 = vector.multi_reduction <add>, %33, %cst_11 [0] : vector<48x128xf32> to vector<128xf32>
    %35 = vector.shape_cast %34 : vector<128xf32> to vector<1x128xf32>
    %36 = vector.shape_cast %35 : vector<1x128xf32> to vector<1x1x128xf32>
    %c0_12 = arith.constant 0 : index
    %c0_13 = arith.constant 0 : index
    %c0_14 = arith.constant 0 : index
    %37 = vector.load %arg5[%c0_12, %c0_13, %c0_14] : memref<1x1x128xf32, #tpu.memory_space<vmem>>, vector<1x1x128xf32>
    tpu.vector_store %arg5[%c0_12, %c0_13, %c0_14], %36 {strides = array<i32>} : memref<1x1x128xf32, #tpu.memory_space<vmem>>, vector<1x1x128xf32>,
    return
  }
  func.func @transform_0(%arg0: i32) -> (i32, i32) {
    %c0_i32 = arith.constant 0 : i32
    %c0_i32_0 = arith.constant 0 : i32
    return %arg0, %c0_i32 : i32, i32
  }
  func.func @transform_1(%arg0: i32) -> (i32, i32) {
    %c0_i32 = arith.constant 0 : i32
    %c0_i32_0 = arith.constant 0 : i32
    %c0_i32_1 = arith.constant 0 : i32
    return %c0_i32, %c0_i32_0 : i32, i32
  }
  func.func @transform_2(%arg0: i32) -> (i32, i32) {
    %c0_i32 = arith.constant 0 : i32
    %c0_i32_0 = arith.constant 0 : i32
    %c0_i32_1 = arith.constant 0 : i32
    return %c0_i32, %c0_i32_0 : i32, i32
  }
  func.func @transform_3(%arg0: i32) -> (i32, i32, i32) {
    %c0_i32 = arith.constant 0 : i32
    %c0_i32_0 = arith.constant 0 : i32
    %c0_i32_1 = arith.constant 0 : i32
    return %arg0, %c0_i32, %c0_i32_0 : i32, i32, i32
  }
  func.func @transform_4(%arg0: i32) -> (i32, i32, i32) {
    %c0_i32 = arith.constant 0 : i32
    %c0_i32_0 = arith.constant 0 : i32
    %c0_i32_1 = arith.constant 0 : i32
    return %arg0, %c0_i32, %c0_i32_0 : i32, i32, i32
  }
}

module attributes {stable_mosaic.version = 11 : i64} {
  func.func @_conv1_bn_conv2_kernel(%arg0: i32, %arg1: memref<48x3xf32, #tpu.memory_space<vmem>>, %arg2: memref<3x128xf32, #tpu.memory_space<vmem>>, %arg3: memref<1x128xf32, #tpu.memory_space<vmem>>, %arg4: memref<1x128xf32, #tpu.memory_space<vmem>>, %arg5: memref<1x128xf32, #tpu.memory_space<vmem>>, %arg6: memref<128x128xbf16, #tpu.memory_space<vmem>>, %arg7: memref<1x128xf32, #tpu.memory_space<vmem>>, %arg8: memref<48x128xbf16, #tpu.memory_space<vmem>>, %arg9: memref<1x1x128xf32, #tpu.memory_space<vmem>>, %arg10: memref<1x1x128xf32, #tpu.memory_space<vmem>>) attributes {dimension_semantics = [#tpu.dimension_semantics<parallel>], iteration_bounds = array<i64: 4>, scalar_prefetch = 0 : i64, scratch_operands = 0 : i64, tpu.core_type = #tpu.core_type<tc>, window_params = [{transform_indices = @transform_0, window_bounds = array<i64: 48, 3>}, {pipeline_mode = #tpu.pipeline_mode<synchronous>, transform_indices = @transform_1, window_bounds = array<i64: 3, 128>}, {pipeline_mode = #tpu.pipeline_mode<synchronous>, transform_indices = @transform_2, window_bounds = array<i64: 1, 128>}, {pipeline_mode = #tpu.pipeline_mode<synchronous>, transform_indices = @transform_3, window_bounds = array<i64: 1, 128>}, {pipeline_mode = #tpu.pipeline_mode<synchronous>, transform_indices = @transform_4, window_bounds = array<i64: 1, 128>}, {pipeline_mode = #tpu.pipeline_mode<synchronous>, transform_indices = @transform_5, window_bounds = array<i64: 128, 128>}, {pipeline_mode = #tpu.pipeline_mode<synchronous>, transform_indices = @transform_6, window_bounds = array<i64: 1, 128>}, {transform_indices = @transform_7, window_bounds = array<i64: 48, 128>}, {transform_indices = @transform_8, window_bounds = array<i64: 1, 1, 128>}, {transform_indices = @transform_9, window_bounds = array<i64: 1, 1, 128>}]} {
    %c0 = arith.constant 0 : index
    %c0_0 = arith.constant 0 : index
    %0 = vector.load %arg1[%c0, %c0_0] : memref<48x3xf32, #tpu.memory_space<vmem>>, vector<48x3xf32>
    %1 = vector.extract_strided_slice %0 {offsets = [0, 0], sizes = [48, 1], strides = [1, 1]} : vector<48x3xf32> to vector<48x1xf32>
    %c0_1 = arith.constant 0 : index
    %c0_2 = arith.constant 0 : index
    %2 = vector.load %arg2[%c0_1, %c0_2] : memref<3x128xf32, #tpu.memory_space<vmem>>, vector<1x128xf32>
    %3 = vector.broadcast %1 : vector<48x1xf32> to vector<48x128xf32>
    %4 = vector.broadcast %2 : vector<1x128xf32> to vector<48x128xf32>
    %5 = arith.mulf %3, %4 : vector<48x128xf32>
    %6 = vector.extract_strided_slice %0 {offsets = [0, 1], sizes = [48, 1], strides = [1, 1]} : vector<48x3xf32> to vector<48x1xf32>
    %c1 = arith.constant 1 : index
    %c0_3 = arith.constant 0 : index
    %7 = vector.load %arg2[%c1, %c0_3] : memref<3x128xf32, #tpu.memory_space<vmem>>, vector<1x128xf32>
    %8 = vector.broadcast %6 : vector<48x1xf32> to vector<48x128xf32>
    %9 = vector.broadcast %7 : vector<1x128xf32> to vector<48x128xf32>
    %10 = arith.mulf %8, %9 : vector<48x128xf32>
    %11 = arith.addf %5, %10 : vector<48x128xf32>
    %12 = vector.extract_strided_slice %0 {offsets = [0, 2], sizes = [48, 1], strides = [1, 1]} : vector<48x3xf32> to vector<48x1xf32>
    %c2 = arith.constant 2 : index
    %c0_4 = arith.constant 0 : index
    %13 = vector.load %arg2[%c2, %c0_4] : memref<3x128xf32, #tpu.memory_space<vmem>>, vector<1x128xf32>
    %14 = vector.broadcast %12 : vector<48x1xf32> to vector<48x128xf32>
    %15 = vector.broadcast %13 : vector<1x128xf32> to vector<48x128xf32>
    %16 = arith.mulf %14, %15 : vector<48x128xf32>
    %17 = arith.addf %11, %16 : vector<48x128xf32>
    %c0_5 = arith.constant 0 : index
    %c0_6 = arith.constant 0 : index
    %18 = vector.load %arg3[%c0_5, %c0_6] : memref<1x128xf32, #tpu.memory_space<vmem>>, vector<1x128xf32>
    %19 = vector.broadcast %18 : vector<1x128xf32> to vector<48x128xf32>
    %20 = arith.addf %17, %19 : vector<48x128xf32>
    %c0_7 = arith.constant 0 : index
    %c0_8 = arith.constant 0 : index
    %21 = vector.load %arg4[%c0_7, %c0_8] : memref<1x128xf32, #tpu.memory_space<vmem>>, vector<1x128xf32>
    %22 = vector.broadcast %21 : vector<1x128xf32> to vector<48x128xf32>
    %23 = arith.mulf %20, %22 : vector<48x128xf32>
    %c0_9 = arith.constant 0 : index
    %c0_10 = arith.constant 0 : index
    %24 = vector.load %arg5[%c0_9, %c0_10] : memref<1x128xf32, #tpu.memory_space<vmem>>, vector<1x128xf32>
    %25 = vector.broadcast %24 : vector<1x128xf32> to vector<48x128xf32>
    %26 = arith.addf %23, %25 : vector<48x128xf32>
    %cst = arith.constant 0.000000e+00 : f32
    %27 = vector.broadcast %cst : f32 to vector<48x128xf32>
    %28 = arith.maximumf %26, %27 : vector<48x128xf32>
    %29 = arith.truncf %28 : vector<48x128xf32> to vector<48x128xbf16>
    %c0_11 = arith.constant 0 : index
    %c0_12 = arith.constant 0 : index
    %30 = vector.load %arg6[%c0_11, %c0_12] : memref<128x128xbf16, #tpu.memory_space<vmem>>, vector<128x128xbf16>
    %cst_13 = arith.constant dense<0.000000e+00> : vector<48x128xf32>
    %31 = tpu.matmul %29, %30, %cst_13 {dimension_numbers = #tpu.dot_dimension_numbers<[1], [0], [0], [1], [0, 0, 1, 1], [], []>} : vector<48x128xbf16>, vector<128x128xbf16>, vector<48x128xf32> -> vector<48x128xf32>
    %c0_14 = arith.constant 0 : index
    %c0_15 = arith.constant 0 : index
    %32 = vector.load %arg7[%c0_14, %c0_15] : memref<1x128xf32, #tpu.memory_space<vmem>>, vector<1x128xf32>
    %33 = vector.broadcast %32 : vector<1x128xf32> to vector<48x128xf32>
    %34 = arith.addf %31, %33 : vector<48x128xf32>
    %35 = arith.truncf %34 : vector<48x128xf32> to vector<48x128xbf16>
    %c0_16 = arith.constant 0 : index
    %c0_17 = arith.constant 0 : index
    %36 = vector.load %arg8[%c0_16, %c0_17] : memref<48x128xbf16, #tpu.memory_space<vmem>>, vector<48x128xbf16>
    tpu.vector_store %arg8[%c0_16, %c0_17], %35 {strides = array<i32>} : memref<48x128xbf16, #tpu.memory_space<vmem>>, vector<48x128xbf16>,
    %c48_i32 = arith.constant 48 : i32
    %37 = arith.muli %arg0, %c48_i32 : i32
    %38 = tpu.iota {dimensions = array<i32: 0>} : vector<48x128xi32>
    %39 = vector.broadcast %37 : i32 to vector<48x128xi32>
    %40 = arith.addi %38, %39 : vector<48x128xi32>
    %c160_i32 = arith.constant 160 : i32
    %41 = vector.broadcast %c160_i32 : i32 to vector<48x128xi32>
    %42 = arith.cmpi slt, %40, %41 : vector<48x128xi32>
    %cst_18 = arith.constant 0.000000e+00 : f32
    %43 = vector.broadcast %cst_18 : f32 to vector<48x128xf32>
    %44 = arith.select %42, %34, %43 : vector<48x128xi1>, vector<48x128xf32>
    %cst_19 = arith.constant dense<0.000000e+00> : vector<128xf32>
    %45 = vector.multi_reduction <add>, %44, %cst_19 [0] : vector<48x128xf32> to vector<128xf32>
    %46 = vector.shape_cast %45 : vector<128xf32> to vector<1x128xf32>
    %47 = vector.shape_cast %46 : vector<1x128xf32> to vector<1x1x128xf32>
    %c0_20 = arith.constant 0 : index
    %c0_21 = arith.constant 0 : index
    %c0_22 = arith.constant 0 : index
    %48 = vector.load %arg9[%c0_20, %c0_21, %c0_22] : memref<1x1x128xf32, #tpu.memory_space<vmem>>, vector<1x1x128xf32>
    tpu.vector_store %arg9[%c0_20, %c0_21, %c0_22], %47 {strides = array<i32>} : memref<1x1x128xf32, #tpu.memory_space<vmem>>, vector<1x1x128xf32>,
    %49 = arith.mulf %44, %44 : vector<48x128xf32>
    %cst_23 = arith.constant dense<0.000000e+00> : vector<128xf32>
    %50 = vector.multi_reduction <add>, %49, %cst_23 [0] : vector<48x128xf32> to vector<128xf32>
    %51 = vector.shape_cast %50 : vector<128xf32> to vector<1x128xf32>
    %52 = vector.shape_cast %51 : vector<1x128xf32> to vector<1x1x128xf32>
    %c0_24 = arith.constant 0 : index
    %c0_25 = arith.constant 0 : index
    %c0_26 = arith.constant 0 : index
    %53 = vector.load %arg10[%c0_24, %c0_25, %c0_26] : memref<1x1x128xf32, #tpu.memory_space<vmem>>, vector<1x1x128xf32>
    tpu.vector_store %arg10[%c0_24, %c0_25, %c0_26], %52 {strides = array<i32>} : memref<1x1x128xf32, #tpu.memory_space<vmem>>, vector<1x1x128xf32>,
    return
  }
  func.func @transform_0(%arg0: i32) -> (i32, i32) {
    %c0_i32 = arith.constant 0 : i32
    %c0_i32_0 = arith.constant 0 : i32
    return %arg0, %c0_i32 : i32, i32
  }
  func.func @transform_1(%arg0: i32) -> (i32, i32) {
    %c0_i32 = arith.constant 0 : i32
    %c0_i32_0 = arith.constant 0 : i32
    %c0_i32_1 = arith.constant 0 : i32
    return %c0_i32, %c0_i32_0 : i32, i32
  }
  func.func @transform_2(%arg0: i32) -> (i32, i32) {
    %c0_i32 = arith.constant 0 : i32
    %c0_i32_0 = arith.constant 0 : i32
    %c0_i32_1 = arith.constant 0 : i32
    return %c0_i32, %c0_i32_0 : i32, i32
  }
  func.func @transform_3(%arg0: i32) -> (i32, i32) {
    %c0_i32 = arith.constant 0 : i32
    %c0_i32_0 = arith.constant 0 : i32
    %c0_i32_1 = arith.constant 0 : i32
    return %c0_i32, %c0_i32_0 : i32, i32
  }
  func.func @transform_4(%arg0: i32) -> (i32, i32) {
    %c0_i32 = arith.constant 0 : i32
    %c0_i32_0 = arith.constant 0 : i32
    %c0_i32_1 = arith.constant 0 : i32
    return %c0_i32, %c0_i32_0 : i32, i32
  }
  func.func @transform_5(%arg0: i32) -> (i32, i32) {
    %c0_i32 = arith.constant 0 : i32
    %c0_i32_0 = arith.constant 0 : i32
    %c0_i32_1 = arith.constant 0 : i32
    return %c0_i32, %c0_i32_0 : i32, i32
  }
  func.func @transform_6(%arg0: i32) -> (i32, i32) {
    %c0_i32 = arith.constant 0 : i32
    %c0_i32_0 = arith.constant 0 : i32
    %c0_i32_1 = arith.constant 0 : i32
    return %c0_i32, %c0_i32_0 : i32, i32
  }
  func.func @transform_7(%arg0: i32) -> (i32, i32) {
    %c0_i32 = arith.constant 0 : i32
    %c0_i32_0 = arith.constant 0 : i32
    return %arg0, %c0_i32 : i32, i32
  }
  func.func @transform_8(%arg0: i32) -> (i32, i32, i32) {
    %c0_i32 = arith.constant 0 : i32
    %c0_i32_0 = arith.constant 0 : i32
    %c0_i32_1 = arith.constant 0 : i32
    return %arg0, %c0_i32, %c0_i32_0 : i32, i32, i32
  }
  func.func @transform_9(%arg0: i32) -> (i32, i32, i32) {
    %c0_i32 = arith.constant 0 : i32
    %c0_i32_0 = arith.constant 0 : i32
    %c0_i32_1 = arith.constant 0 : i32
    return %arg0, %c0_i32, %c0_i32_0 : i32, i32, i32
  }
}

module attributes {stable_mosaic.version = 11 : i64} {
  func.func @_bn_relu_conv_kernel(%arg0: i32, %arg1: memref<48x128xbf16, #tpu.memory_space<vmem>>, %arg2: memref<1x128xf32, #tpu.memory_space<vmem>>, %arg3: memref<1x128xf32, #tpu.memory_space<vmem>>, %arg4: memref<128x256xbf16, #tpu.memory_space<vmem>>, %arg5: memref<1x256xf32, #tpu.memory_space<vmem>>, %arg6: memref<48x256xbf16, #tpu.memory_space<vmem>>, %arg7: memref<1x1x256xf32, #tpu.memory_space<vmem>>, %arg8: memref<1x1x256xf32, #tpu.memory_space<vmem>>) attributes {dimension_semantics = [#tpu.dimension_semantics<parallel>], iteration_bounds = array<i64: 4>, scalar_prefetch = 0 : i64, scratch_operands = 0 : i64, tpu.core_type = #tpu.core_type<tc>, window_params = [{transform_indices = @transform_0, window_bounds = array<i64: 48, 128>}, {pipeline_mode = #tpu.pipeline_mode<synchronous>, transform_indices = @transform_1, window_bounds = array<i64: 1, 128>}, {pipeline_mode = #tpu.pipeline_mode<synchronous>, transform_indices = @transform_2, window_bounds = array<i64: 1, 128>}, {pipeline_mode = #tpu.pipeline_mode<synchronous>, transform_indices = @transform_3, window_bounds = array<i64: 128, 256>}, {pipeline_mode = #tpu.pipeline_mode<synchronous>, transform_indices = @transform_4, window_bounds = array<i64: 1, 256>}, {transform_indices = @transform_5, window_bounds = array<i64: 48, 256>}, {transform_indices = @transform_6, window_bounds = array<i64: 1, 1, 256>}, {transform_indices = @transform_7, window_bounds = array<i64: 1, 1, 256>}]} {
    %c0 = arith.constant 0 : index
    %c0_0 = arith.constant 0 : index
    %0 = vector.load %arg1[%c0, %c0_0] : memref<48x128xbf16, #tpu.memory_space<vmem>>, vector<48x128xbf16>
    %1 = arith.extf %0 : vector<48x128xbf16> to vector<48x128xf32>
    %c0_1 = arith.constant 0 : index
    %c0_2 = arith.constant 0 : index
    %2 = vector.load %arg2[%c0_1, %c0_2] : memref<1x128xf32, #tpu.memory_space<vmem>>, vector<1x128xf32>
    %3 = vector.broadcast %2 : vector<1x128xf32> to vector<48x128xf32>
    %4 = arith.mulf %1, %3 : vector<48x128xf32>
    %c0_3 = arith.constant 0 : index
    %c0_4 = arith.constant 0 : index
    %5 = vector.load %arg3[%c0_3, %c0_4] : memref<1x128xf32, #tpu.memory_space<vmem>>, vector<1x128xf32>
    %6 = vector.broadcast %5 : vector<1x128xf32> to vector<48x128xf32>
    %7 = arith.addf %4, %6 : vector<48x128xf32>
    %cst = arith.constant 0.000000e+00 : f32
    %8 = vector.broadcast %cst : f32 to vector<48x128xf32>
    %9 = arith.maximumf %7, %8 : vector<48x128xf32>
    %10 = arith.truncf %9 : vector<48x128xf32> to vector<48x128xbf16>
    %c0_5 = arith.constant 0 : index
    %c0_6 = arith.constant 0 : index
    %11 = vector.load %arg4[%c0_5, %c0_6] : memref<128x256xbf16, #tpu.memory_space<vmem>>, vector<128x256xbf16>
    %cst_7 = arith.constant dense<0.000000e+00> : vector<48x256xf32>
    %12 = tpu.matmul %10, %11, %cst_7 {dimension_numbers = #tpu.dot_dimension_numbers<[1], [0], [0], [1], [0, 0, 1, 1], [], []>} : vector<48x128xbf16>, vector<128x256xbf16>, vector<48x256xf32> -> vector<48x256xf32>
    %c0_8 = arith.constant 0 : index
    %c0_9 = arith.constant 0 : index
    %13 = vector.load %arg5[%c0_8, %c0_9] : memref<1x256xf32, #tpu.memory_space<vmem>>, vector<1x256xf32>
    %14 = vector.broadcast %13 : vector<1x256xf32> to vector<48x256xf32>
    %15 = arith.addf %12, %14 : vector<48x256xf32>
    %16 = arith.truncf %15 : vector<48x256xf32> to vector<48x256xbf16>
    %c0_10 = arith.constant 0 : index
    %c0_11 = arith.constant 0 : index
    %17 = vector.load %arg6[%c0_10, %c0_11] : memref<48x256xbf16, #tpu.memory_space<vmem>>, vector<48x256xbf16>
    tpu.vector_store %arg6[%c0_10, %c0_11], %16 {strides = array<i32>} : memref<48x256xbf16, #tpu.memory_space<vmem>>, vector<48x256xbf16>,
    %c48_i32 = arith.constant 48 : i32
    %18 = arith.muli %arg0, %c48_i32 : i32
    %19 = tpu.iota {dimensions = array<i32: 0>} : vector<48x256xi32>
    %20 = vector.broadcast %18 : i32 to vector<48x256xi32>
    %21 = arith.addi %19, %20 : vector<48x256xi32>
    %c160_i32 = arith.constant 160 : i32
    %22 = vector.broadcast %c160_i32 : i32 to vector<48x256xi32>
    %23 = arith.cmpi slt, %21, %22 : vector<48x256xi32>
    %cst_12 = arith.constant 0.000000e+00 : f32
    %24 = vector.broadcast %cst_12 : f32 to vector<48x256xf32>
    %25 = arith.select %23, %15, %24 : vector<48x256xi1>, vector<48x256xf32>
    %cst_13 = arith.constant dense<0.000000e+00> : vector<256xf32>
    %26 = vector.multi_reduction <add>, %25, %cst_13 [0] : vector<48x256xf32> to vector<256xf32>
    %27 = vector.shape_cast %26 : vector<256xf32> to vector<1x256xf32>
    %28 = vector.shape_cast %27 : vector<1x256xf32> to vector<1x1x256xf32>
    %c0_14 = arith.constant 0 : index
    %c0_15 = arith.constant 0 : index
    %c0_16 = arith.constant 0 : index
    %29 = vector.load %arg7[%c0_14, %c0_15, %c0_16] : memref<1x1x256xf32, #tpu.memory_space<vmem>>, vector<1x1x256xf32>
    tpu.vector_store %arg7[%c0_14, %c0_15, %c0_16], %28 {strides = array<i32>} : memref<1x1x256xf32, #tpu.memory_space<vmem>>, vector<1x1x256xf32>,
    %30 = arith.mulf %25, %25 : vector<48x256xf32>
    %cst_17 = arith.constant dense<0.000000e+00> : vector<256xf32>
    %31 = vector.multi_reduction <add>, %30, %cst_17 [0] : vector<48x256xf32> to vector<256xf32>
    %32 = vector.shape_cast %31 : vector<256xf32> to vector<1x256xf32>
    %33 = vector.shape_cast %32 : vector<1x256xf32> to vector<1x1x256xf32>
    %c0_18 = arith.constant 0 : index
    %c0_19 = arith.constant 0 : index
    %c0_20 = arith.constant 0 : index
    %34 = vector.load %arg8[%c0_18, %c0_19, %c0_20] : memref<1x1x256xf32, #tpu.memory_space<vmem>>, vector<1x1x256xf32>
    tpu.vector_store %arg8[%c0_18, %c0_19, %c0_20], %33 {strides = array<i32>} : memref<1x1x256xf32, #tpu.memory_space<vmem>>, vector<1x1x256xf32>,
    return
  }
  func.func @transform_0(%arg0: i32) -> (i32, i32) {
    %c0_i32 = arith.constant 0 : i32
    %c0_i32_0 = arith.constant 0 : i32
    return %arg0, %c0_i32 : i32, i32
  }
  func.func @transform_1(%arg0: i32) -> (i32, i32) {
    %c0_i32 = arith.constant 0 : i32
    %c0_i32_0 = arith.constant 0 : i32
    %c0_i32_1 = arith.constant 0 : i32
    return %c0_i32, %c0_i32_0 : i32, i32
  }
  func.func @transform_2(%arg0: i32) -> (i32, i32) {
    %c0_i32 = arith.constant 0 : i32
    %c0_i32_0 = arith.constant 0 : i32
    %c0_i32_1 = arith.constant 0 : i32
    return %c0_i32, %c0_i32_0 : i32, i32
  }
  func.func @transform_3(%arg0: i32) -> (i32, i32) {
    %c0_i32 = arith.constant 0 : i32
    %c0_i32_0 = arith.constant 0 : i32
    %c0_i32_1 = arith.constant 0 : i32
    return %c0_i32, %c0_i32_0 : i32, i32
  }
  func.func @transform_4(%arg0: i32) -> (i32, i32) {
    %c0_i32 = arith.constant 0 : i32
    %c0_i32_0 = arith.constant 0 : i32
    %c0_i32_1 = arith.constant 0 : i32
    return %c0_i32, %c0_i32_0 : i32, i32
  }
  func.func @transform_5(%arg0: i32) -> (i32, i32) {
    %c0_i32 = arith.constant 0 : i32
    %c0_i32_0 = arith.constant 0 : i32
    return %arg0, %c0_i32 : i32, i32
  }
  func.func @transform_6(%arg0: i32) -> (i32, i32, i32) {
    %c0_i32 = arith.constant 0 : i32
    %c0_i32_0 = arith.constant 0 : i32
    %c0_i32_1 = arith.constant 0 : i32
    return %arg0, %c0_i32, %c0_i32_0 : i32, i32, i32
  }
  func.func @transform_7(%arg0: i32) -> (i32, i32, i32) {
    %c0_i32 = arith.constant 0 : i32
    %c0_i32_0 = arith.constant 0 : i32
    %c0_i32_1 = arith.constant 0 : i32
    return %arg0, %c0_i32, %c0_i32_0 : i32, i32, i32
  }
}

module attributes {stable_mosaic.version = 11 : i64} {
  func.func @_bn_relu_conv_pool_kernel(%arg0: i32, %arg1: i32, %arg2: memref<1x16x256xbf16, #tpu.memory_space<vmem>>, %arg3: memref<1x256xf32, #tpu.memory_space<vmem>>, %arg4: memref<1x256xf32, #tpu.memory_space<vmem>>, %arg5: memref<256x512xbf16, #tpu.memory_space<vmem>>, %arg6: memref<1x512xf32, #tpu.memory_space<vmem>>, %arg7: memref<1x1x512xf32, #tpu.memory_space<vmem>>, %arg8: memref<1x1x512xf32, #tpu.memory_space<vmem>>, %arg9: memref<1x1x512xf32, #tpu.memory_space<vmem>>, %arg10: memref<1x1x512xf32, #tpu.memory_space<vmem>>) attributes {dimension_semantics = [#tpu.dimension_semantics<parallel>, #tpu.dimension_semantics<arbitrary>], iteration_bounds = array<i64: 4, 3>, scalar_prefetch = 0 : i64, scratch_operands = 0 : i64, tpu.core_type = #tpu.core_type<tc>, window_params = [{transform_indices = @transform_0, window_bounds = array<i64: 1, 16, 256>}, {pipeline_mode = #tpu.pipeline_mode<synchronous>, transform_indices = @transform_1, window_bounds = array<i64: 1, 256>}, {pipeline_mode = #tpu.pipeline_mode<synchronous>, transform_indices = @transform_2, window_bounds = array<i64: 1, 256>}, {pipeline_mode = #tpu.pipeline_mode<synchronous>, transform_indices = @transform_3, window_bounds = array<i64: 256, 512>}, {pipeline_mode = #tpu.pipeline_mode<synchronous>, transform_indices = @transform_4, window_bounds = array<i64: 1, 512>}, {transform_indices = @transform_5, window_bounds = array<i64: 1, 1, 512>}, {transform_indices = @transform_6, window_bounds = array<i64: 1, 1, 512>}, {transform_indices = @transform_7, window_bounds = array<i64: 1, 1, 512>}, {transform_indices = @transform_8, window_bounds = array<i64: 1, 1, 512>}]} {
    %c0_i32 = arith.constant 0 : i32
    %0 = arith.cmpi eq, %arg1, %c0_i32 : i32
    %1 = arith.extui %0 : i1 to i32
    %c0_i32_0 = arith.constant 0 : i32
    %2 = arith.cmpi ne, %1, %c0_i32_0 : i32
    scf.if %2 {
      %cst_43 = arith.constant 0xFF800000 : f32
      %57 = vector.broadcast %cst_43 : f32 to vector<1x1x512xf32>
      %c0_44 = arith.constant 0 : index
      %c0_45 = arith.constant 0 : index
      %c0_46 = arith.constant 0 : index
      %58 = vector.load %arg7[%c0_44, %c0_45, %c0_46] : memref<1x1x512xf32, #tpu.memory_space<vmem>>, vector<1x1x512xf32>
      tpu.vector_store %arg7[%c0_44, %c0_45, %c0_46], %57 {strides = array<i32>} : memref<1x1x512xf32, #tpu.memory_space<vmem>>, vector<1x1x512xf32>,
      %cst_47 = arith.constant 0x7F800000 : f32
      %59 = vector.broadcast %cst_47 : f32 to vector<1x1x512xf32>
      %c0_48 = arith.constant 0 : index
      %c0_49 = arith.constant 0 : index
      %c0_50 = arith.constant 0 : index
      %60 = vector.load %arg8[%c0_48, %c0_49, %c0_50] : memref<1x1x512xf32, #tpu.memory_space<vmem>>, vector<1x1x512xf32>
      tpu.vector_store %arg8[%c0_48, %c0_49, %c0_50], %59 {strides = array<i32>} : memref<1x1x512xf32, #tpu.memory_space<vmem>>, vector<1x1x512xf32>,
      %cst_51 = arith.constant 0.000000e+00 : f32
      %61 = vector.broadcast %cst_51 : f32 to vector<1x1x512xf32>
      %c0_52 = arith.constant 0 : index
      %c0_53 = arith.constant 0 : index
      %c0_54 = arith.constant 0 : index
      %62 = vector.load %arg9[%c0_52, %c0_53, %c0_54] : memref<1x1x512xf32, #tpu.memory_space<vmem>>, vector<1x1x512xf32>
      tpu.vector_store %arg9[%c0_52, %c0_53, %c0_54], %61 {strides = array<i32>} : memref<1x1x512xf32, #tpu.memory_space<vmem>>, vector<1x1x512xf32>,
      %cst_55 = arith.constant 0.000000e+00 : f32
      %63 = vector.broadcast %cst_55 : f32 to vector<1x1x512xf32>
      %c0_56 = arith.constant 0 : index
      %c0_57 = arith.constant 0 : index
      %c0_58 = arith.constant 0 : index
      %64 = vector.load %arg10[%c0_56, %c0_57, %c0_58] : memref<1x1x512xf32, #tpu.memory_space<vmem>>, vector<1x1x512xf32>
      tpu.vector_store %arg10[%c0_56, %c0_57, %c0_58], %63 {strides = array<i32>} : memref<1x1x512xf32, #tpu.memory_space<vmem>>, vector<1x1x512xf32>,
    } else {
    }
    %c0 = arith.constant 0 : index
    %c0_1 = arith.constant 0 : index
    %c0_2 = arith.constant 0 : index
    %3 = vector.load %arg2[%c0, %c0_1, %c0_2] : memref<1x16x256xbf16, #tpu.memory_space<vmem>>, vector<1x16x256xbf16>
    %4 = vector.shape_cast %3 : vector<1x16x256xbf16> to vector<16x256xbf16>
    %5 = arith.extf %4 : vector<16x256xbf16> to vector<16x256xf32>
    %c0_3 = arith.constant 0 : index
    %c0_4 = arith.constant 0 : index
    %6 = vector.load %arg3[%c0_3, %c0_4] : memref<1x256xf32, #tpu.memory_space<vmem>>, vector<1x256xf32>
    %7 = vector.broadcast %6 : vector<1x256xf32> to vector<16x256xf32>
    %8 = arith.mulf %5, %7 : vector<16x256xf32>
    %c0_5 = arith.constant 0 : index
    %c0_6 = arith.constant 0 : index
    %9 = vector.load %arg4[%c0_5, %c0_6] : memref<1x256xf32, #tpu.memory_space<vmem>>, vector<1x256xf32>
    %10 = vector.broadcast %9 : vector<1x256xf32> to vector<16x256xf32>
    %11 = arith.addf %8, %10 : vector<16x256xf32>
    %cst = arith.constant 0.000000e+00 : f32
    %12 = vector.broadcast %cst : f32 to vector<16x256xf32>
    %13 = arith.maximumf %11, %12 : vector<16x256xf32>
    %14 = arith.truncf %13 : vector<16x256xf32> to vector<16x256xbf16>
    %c0_7 = arith.constant 0 : index
    %c0_8 = arith.constant 0 : index
    %15 = vector.load %arg5[%c0_7, %c0_8] : memref<256x512xbf16, #tpu.memory_space<vmem>>, vector<256x512xbf16>
    %cst_9 = arith.constant dense<0.000000e+00> : vector<16x512xf32>
    %16 = tpu.matmul %14, %15, %cst_9 {dimension_numbers = #tpu.dot_dimension_numbers<[1], [0], [0], [1], [0, 0, 1, 1], [], []>} : vector<16x256xbf16>, vector<256x512xbf16>, vector<16x512xf32> -> vector<16x512xf32>
    %c0_10 = arith.constant 0 : index
    %c0_11 = arith.constant 0 : index
    %17 = vector.load %arg6[%c0_10, %c0_11] : memref<1x512xf32, #tpu.memory_space<vmem>>, vector<1x512xf32>
    %18 = vector.broadcast %17 : vector<1x512xf32> to vector<16x512xf32>
    %19 = arith.addf %16, %18 : vector<16x512xf32>
    %c16_i32 = arith.constant 16 : i32
    %20 = arith.muli %arg1, %c16_i32 : i32
    %21 = tpu.iota {dimensions = array<i32: 0>} : vector<16x512xi32>
    %22 = vector.broadcast %20 : i32 to vector<16x512xi32>
    %23 = arith.addi %21, %22 : vector<16x512xi32>
    %c40_i32 = arith.constant 40 : i32
    %24 = vector.broadcast %c40_i32 : i32 to vector<16x512xi32>
    %25 = arith.cmpi slt, %23, %24 : vector<16x512xi32>
    %cst_12 = arith.constant 0.000000e+00 : f32
    %26 = vector.broadcast %cst_12 : f32 to vector<16x512xf32>
    %27 = arith.select %25, %19, %26 : vector<16x512xi1>, vector<16x512xf32>
    %cst_13 = arith.constant 0xFF800000 : f32
    %28 = vector.broadcast %cst_13 : f32 to vector<16x512xf32>
    %29 = arith.select %25, %19, %28 : vector<16x512xi1>, vector<16x512xf32>
    %cst_14 = arith.constant 0x7F800000 : f32
    %30 = vector.broadcast %cst_14 : f32 to vector<16x512xf32>
    %31 = arith.select %25, %19, %30 : vector<16x512xi1>, vector<16x512xf32>
    %c0_15 = arith.constant 0 : index
    %c0_16 = arith.constant 0 : index
    %c0_17 = arith.constant 0 : index
    %32 = vector.load %arg9[%c0_15, %c0_16, %c0_17] : memref<1x1x512xf32, #tpu.memory_space<vmem>>, vector<1x1x512xf32>
    %cst_18 = arith.constant dense<0.000000e+00> : vector<512xf32>
    %33 = vector.multi_reduction <add>, %27, %cst_18 [0] : vector<16x512xf32> to vector<512xf32>
    %34 = vector.shape_cast %33 : vector<512xf32> to vector<1x512xf32>
    %35 = vector.shape_cast %34 : vector<1x512xf32> to vector<1x1x512xf32>
    %36 = arith.addf %32, %35 : vector<1x1x512xf32>
    %c0_19 = arith.constant 0 : index
    %c0_20 = arith.constant 0 : index
    %c0_21 = arith.constant 0 : index
    %37 = vector.load %arg9[%c0_19, %c0_20, %c0_21] : memref<1x1x512xf32, #tpu.memory_space<vmem>>, vector<1x1x512xf32>
    tpu.vector_store %arg9[%c0_19, %c0_20, %c0_21], %36 {strides = array<i32>} : memref<1x1x512xf32, #tpu.memory_space<vmem>>, vector<1x1x512xf32>,
    %c0_22 = arith.constant 0 : index
    %c0_23 = arith.constant 0 : index
    %c0_24 = arith.constant 0 : index
    %38 = vector.load %arg10[%c0_22, %c0_23, %c0_24] : memref<1x1x512xf32, #tpu.memory_space<vmem>>, vector<1x1x512xf32>
    %39 = arith.mulf %27, %27 : vector<16x512xf32>
    %cst_25 = arith.constant dense<0.000000e+00> : vector<512xf32>
    %40 = vector.multi_reduction <add>, %39, %cst_25 [0] : vector<16x512xf32> to vector<512xf32>
    %41 = vector.shape_cast %40 : vector<512xf32> to vector<1x512xf32>
    %42 = vector.shape_cast %41 : vector<1x512xf32> to vector<1x1x512xf32>
    %43 = arith.addf %38, %42 : vector<1x1x512xf32>
    %c0_26 = arith.constant 0 : index
    %c0_27 = arith.constant 0 : index
    %c0_28 = arith.constant 0 : index
    %44 = vector.load %arg10[%c0_26, %c0_27, %c0_28] : memref<1x1x512xf32, #tpu.memory_space<vmem>>, vector<1x1x512xf32>
    tpu.vector_store %arg10[%c0_26, %c0_27, %c0_28], %43 {strides = array<i32>} : memref<1x1x512xf32, #tpu.memory_space<vmem>>, vector<1x1x512xf32>,
    %c0_29 = arith.constant 0 : index
    %c0_30 = arith.constant 0 : index
    %c0_31 = arith.constant 0 : index
    %45 = vector.load %arg7[%c0_29, %c0_30, %c0_31] : memref<1x1x512xf32, #tpu.memory_space<vmem>>, vector<1x1x512xf32>
    %cst_32 = arith.constant dense<0xFF800000> : vector<512xf32>
    %46 = vector.multi_reduction <maximumf>, %29, %cst_32 [0] : vector<16x512xf32> to vector<512xf32>
    %47 = vector.shape_cast %46 : vector<512xf32> to vector<1x512xf32>
    %48 = vector.shape_cast %47 : vector<1x512xf32> to vector<1x1x512xf32>
    %49 = arith.maximumf %45, %48 : vector<1x1x512xf32>
    %c0_33 = arith.constant 0 : index
    %c0_34 = arith.constant 0 : index
    %c0_35 = arith.constant 0 : index
    %50 = vector.load %arg7[%c0_33, %c0_34, %c0_35] : memref<1x1x512xf32, #tpu.memory_space<vmem>>, vector<1x1x512xf32>
    tpu.vector_store %arg7[%c0_33, %c0_34, %c0_35], %49 {strides = array<i32>} : memref<1x1x512xf32, #tpu.memory_space<vmem>>, vector<1x1x512xf32>,
    %c0_36 = arith.constant 0 : index
    %c0_37 = arith.constant 0 : index
    %c0_38 = arith.constant 0 : index
    %51 = vector.load %arg8[%c0_36, %c0_37, %c0_38] : memref<1x1x512xf32, #tpu.memory_space<vmem>>, vector<1x1x512xf32>
    %cst_39 = arith.constant dense<0x7F800000> : vector<512xf32>
    %52 = vector.multi_reduction <minimumf>, %31, %cst_39 [0] : vector<16x512xf32> to vector<512xf32>
    %53 = vector.shape_cast %52 : vector<512xf32> to vector<1x512xf32>
    %54 = vector.shape_cast %53 : vector<1x512xf32> to vector<1x1x512xf32>
    %55 = arith.minimumf %51, %54 : vector<1x1x512xf32>
    %c0_40 = arith.constant 0 : index
    %c0_41 = arith.constant 0 : index
    %c0_42 = arith.constant 0 : index
    %56 = vector.load %arg8[%c0_40, %c0_41, %c0_42] : memref<1x1x512xf32, #tpu.memory_space<vmem>>, vector<1x1x512xf32>
    tpu.vector_store %arg8[%c0_40, %c0_41, %c0_42], %55 {strides = array<i32>} : memref<1x1x512xf32, #tpu.memory_space<vmem>>, vector<1x1x512xf32>,
    return
  }
  func.func @transform_0(%arg0: i32, %arg1: i32) -> (i32, i32, i32) {
    %c0_i32 = arith.constant 0 : i32
    %c0_i32_0 = arith.constant 0 : i32
    return %arg0, %arg1, %c0_i32 : i32, i32, i32
  }
  func.func @transform_1(%arg0: i32, %arg1: i32) -> (i32, i32) {
    %c0_i32 = arith.constant 0 : i32
    %c0_i32_0 = arith.constant 0 : i32
    %c0_i32_1 = arith.constant 0 : i32
    return %c0_i32, %c0_i32_0 : i32, i32
  }
  func.func @transform_2(%arg0: i32, %arg1: i32) -> (i32, i32) {
    %c0_i32 = arith.constant 0 : i32
    %c0_i32_0 = arith.constant 0 : i32
    %c0_i32_1 = arith.constant 0 : i32
    return %c0_i32, %c0_i32_0 : i32, i32
  }
  func.func @transform_3(%arg0: i32, %arg1: i32) -> (i32, i32) {
    %c0_i32 = arith.constant 0 : i32
    %c0_i32_0 = arith.constant 0 : i32
    %c0_i32_1 = arith.constant 0 : i32
    return %c0_i32, %c0_i32_0 : i32, i32
  }
  func.func @transform_4(%arg0: i32, %arg1: i32) -> (i32, i32) {
    %c0_i32 = arith.constant 0 : i32
    %c0_i32_0 = arith.constant 0 : i32
    %c0_i32_1 = arith.constant 0 : i32
    return %c0_i32, %c0_i32_0 : i32, i32
  }
  func.func @transform_5(%arg0: i32, %arg1: i32) -> (i32, i32, i32) {
    %c0_i32 = arith.constant 0 : i32
    %c0_i32_0 = arith.constant 0 : i32
    %c0_i32_1 = arith.constant 0 : i32
    return %arg0, %c0_i32, %c0_i32_0 : i32, i32, i32
  }
  func.func @transform_6(%arg0: i32, %arg1: i32) -> (i32, i32, i32) {
    %c0_i32 = arith.constant 0 : i32
    %c0_i32_0 = arith.constant 0 : i32
    %c0_i32_1 = arith.constant 0 : i32
    return %arg0, %c0_i32, %c0_i32_0 : i32, i32, i32
  }
  func.func @transform_7(%arg0: i32, %arg1: i32) -> (i32, i32, i32) {
    %c0_i32 = arith.constant 0 : i32
    %c0_i32_0 = arith.constant 0 : i32
    %c0_i32_1 = arith.constant 0 : i32
    return %arg0, %c0_i32, %c0_i32_0 : i32, i32, i32
  }
  func.func @transform_8(%arg0: i32, %arg1: i32) -> (i32, i32, i32) {
    %c0_i32 = arith.constant 0 : i32
    %c0_i32_0 = arith.constant 0 : i32
    %c0_i32_1 = arith.constant 0 : i32
    return %arg0, %c0_i32, %c0_i32_0 : i32, i32, i32
  }
}

module attributes {stable_mosaic.version = 11 : i64} {
  func.func @_heads_kernel(%arg0: i32, %arg1: memref<4x1x512xf32, #tpu.memory_space<vmem>>, %arg2: memref<4x1x512xf32, #tpu.memory_space<vmem>>, %arg3: memref<1x512xf32, #tpu.memory_space<vmem>>, %arg4: memref<1x512xf32, #tpu.memory_space<vmem>>, %arg5: memref<512x512xbf16, #tpu.memory_space<vmem>>, %arg6: memref<1x512xf32, #tpu.memory_space<vmem>>, %arg7: memref<1x512xf32, #tpu.memory_space<vmem>>, %arg8: memref<1x512xf32, #tpu.memory_space<vmem>>, %arg9: memref<512x256xbf16, #tpu.memory_space<vmem>>, %arg10: memref<1x256xf32, #tpu.memory_space<vmem>>, %arg11: memref<1x256xf32, #tpu.memory_space<vmem>>, %arg12: memref<1x256xf32, #tpu.memory_space<vmem>>, %arg13: memref<256x128xbf16, #tpu.memory_space<vmem>>, %arg14: memref<1x128xf32, #tpu.memory_space<vmem>>, %arg15: memref<4x128xf32, #tpu.memory_space<vmem>>) attributes {dimension_semantics = [#tpu.dimension_semantics<arbitrary>], iteration_bounds = array<i64: 1>, scalar_prefetch = 0 : i64, scratch_operands = 0 : i64, tpu.core_type = #tpu.core_type<tc>, window_params = [{pipeline_mode = #tpu.pipeline_mode<synchronous>, transform_indices = @transform_0, window_bounds = array<i64: 4, 1, 512>}, {pipeline_mode = #tpu.pipeline_mode<synchronous>, transform_indices = @transform_1, window_bounds = array<i64: 4, 1, 512>}, {pipeline_mode = #tpu.pipeline_mode<synchronous>, transform_indices = @transform_2, window_bounds = array<i64: 1, 512>}, {pipeline_mode = #tpu.pipeline_mode<synchronous>, transform_indices = @transform_3, window_bounds = array<i64: 1, 512>}, {pipeline_mode = #tpu.pipeline_mode<synchronous>, transform_indices = @transform_4, window_bounds = array<i64: 512, 512>}, {pipeline_mode = #tpu.pipeline_mode<synchronous>, transform_indices = @transform_5, window_bounds = array<i64: 1, 512>}, {pipeline_mode = #tpu.pipeline_mode<synchronous>, transform_indices = @transform_6, window_bounds = array<i64: 1, 512>}, {pipeline_mode = #tpu.pipeline_mode<synchronous>, transform_indices = @transform_7, window_bounds = array<i64: 1, 512>}, {pipeline_mode = #tpu.pipeline_mode<synchronous>, transform_indices = @transform_8, window_bounds = array<i64: 512, 256>}, {pipeline_mode = #tpu.pipeline_mode<synchronous>, transform_indices = @transform_9, window_bounds = array<i64: 1, 256>}, {pipeline_mode = #tpu.pipeline_mode<synchronous>, transform_indices = @transform_10, window_bounds = array<i64: 1, 256>}, {pipeline_mode = #tpu.pipeline_mode<synchronous>, transform_indices = @transform_11, window_bounds = array<i64: 1, 256>}, {pipeline_mode = #tpu.pipeline_mode<synchronous>, transform_indices = @transform_12, window_bounds = array<i64: 256, 128>}, {pipeline_mode = #tpu.pipeline_mode<synchronous>, transform_indices = @transform_13, window_bounds = array<i64: 1, 128>}, {pipeline_mode = #tpu.pipeline_mode<synchronous>, transform_indices = @transform_14, window_bounds = array<i64: 4, 128>}]} {
    %c0 = arith.constant 0 : index
    %c0_0 = arith.constant 0 : index
    %c0_1 = arith.constant 0 : index
    %0 = vector.load %arg1[%c0, %c0_0, %c0_1] : memref<4x1x512xf32, #tpu.memory_space<vmem>>, vector<4x1x512xf32>
    %1 = vector.shape_cast %0 : vector<4x1x512xf32> to vector<4x512xf32>
    %c0_2 = arith.constant 0 : index
    %c0_3 = arith.constant 0 : index
    %c0_4 = arith.constant 0 : index
    %2 = vector.load %arg2[%c0_2, %c0_3, %c0_4] : memref<4x1x512xf32, #tpu.memory_space<vmem>>, vector<4x1x512xf32>
    %3 = vector.shape_cast %2 : vector<4x1x512xf32> to vector<4x512xf32>
    %c0_5 = arith.constant 0 : index
    %c0_6 = arith.constant 0 : index
    %4 = vector.load %arg3[%c0_5, %c0_6] : memref<1x512xf32, #tpu.memory_space<vmem>>, vector<1x512xf32>
    %5 = vector.broadcast %4 : vector<1x512xf32> to vector<4x512xf32>
    %6 = arith.mulf %5, %1 : vector<4x512xf32>
    %7 = vector.broadcast %4 : vector<1x512xf32> to vector<4x512xf32>
    %8 = arith.mulf %7, %3 : vector<4x512xf32>
    %9 = arith.maximumf %6, %8 : vector<4x512xf32>
    %c0_7 = arith.constant 0 : index
    %c0_8 = arith.constant 0 : index
    %10 = vector.load %arg4[%c0_7, %c0_8] : memref<1x512xf32, #tpu.memory_space<vmem>>, vector<1x512xf32>
    %11 = vector.broadcast %10 : vector<1x512xf32> to vector<4x512xf32>
    %12 = arith.addf %9, %11 : vector<4x512xf32>
    %13 = arith.truncf %12 : vector<4x512xf32> to vector<4x512xbf16>
    %c0_9 = arith.constant 0 : index
    %c0_10 = arith.constant 0 : index
    %14 = vector.load %arg5[%c0_9, %c0_10] : memref<512x512xbf16, #tpu.memory_space<vmem>>, vector<512x512xbf16>
    %cst = arith.constant dense<0.000000e+00> : vector<4x512xf32>
    %15 = tpu.matmul %13, %14, %cst {dimension_numbers = #tpu.dot_dimension_numbers<[1], [0], [0], [1], [0, 0, 1, 1], [], []>} : vector<4x512xbf16>, vector<512x512xbf16>, vector<4x512xf32> -> vector<4x512xf32>
    %c0_11 = arith.constant 0 : index
    %c0_12 = arith.constant 0 : index
    %16 = vector.load %arg6[%c0_11, %c0_12] : memref<1x512xf32, #tpu.memory_space<vmem>>, vector<1x512xf32>
    %17 = vector.broadcast %16 : vector<1x512xf32> to vector<4x512xf32>
    %18 = arith.addf %15, %17 : vector<4x512xf32>
    %c0_13 = arith.constant 0 : index
    %c0_14 = arith.constant 0 : index
    %19 = vector.load %arg7[%c0_13, %c0_14] : memref<1x512xf32, #tpu.memory_space<vmem>>, vector<1x512xf32>
    %c0_15 = arith.constant 0 : index
    %c0_16 = arith.constant 0 : index
    %20 = vector.load %arg8[%c0_15, %c0_16] : memref<1x512xf32, #tpu.memory_space<vmem>>, vector<1x512xf32>
    %cst_17 = arith.constant dense<0.000000e+00> : vector<512xf32>
    %21 = vector.multi_reduction <add>, %18, %cst_17 [0] : vector<4x512xf32> to vector<512xf32>
    %22 = vector.shape_cast %21 : vector<512xf32> to vector<1x512xf32>
    %cst_18 = arith.constant 4.000000e+00 : f32
    %23 = vector.broadcast %cst_18 : f32 to vector<1x512xf32>
    %24 = arith.divf %22, %23 : vector<1x512xf32>
    %25 = vector.broadcast %24 : vector<1x512xf32> to vector<4x512xf32>
    %26 = arith.subf %18, %25 : vector<4x512xf32>
    %27 = arith.mulf %26, %26 : vector<4x512xf32>
    %cst_19 = arith.constant dense<0.000000e+00> : vector<512xf32>
    %28 = vector.multi_reduction <add>, %27, %cst_19 [0] : vector<4x512xf32> to vector<512xf32>
    %29 = vector.shape_cast %28 : vector<512xf32> to vector<1x512xf32>
    %cst_20 = arith.constant 4.000000e+00 : f32
    %30 = vector.broadcast %cst_20 : f32 to vector<1x512xf32>
    %31 = arith.divf %29, %30 : vector<1x512xf32>
    %32 = vector.broadcast %24 : vector<1x512xf32> to vector<4x512xf32>
    %33 = arith.subf %18, %32 : vector<4x512xf32>
    %cst_21 = arith.constant 9.99999974E-6 : f32
    %34 = vector.broadcast %cst_21 : f32 to vector<1x512xf32>
    %35 = arith.addf %31, %34 : vector<1x512xf32>
    %36 = math.rsqrt %35 : vector<1x512xf32>
    %37 = vector.broadcast %36 : vector<1x512xf32> to vector<4x512xf32>
    %38 = arith.mulf %33, %37 : vector<4x512xf32>
    %39 = vector.broadcast %19 : vector<1x512xf32> to vector<4x512xf32>
    %40 = arith.mulf %38, %39 : vector<4x512xf32>
    %41 = vector.broadcast %20 : vector<1x512xf32> to vector<4x512xf32>
    %42 = arith.addf %40, %41 : vector<4x512xf32>
    %cst_22 = arith.constant 0.000000e+00 : f32
    %43 = vector.broadcast %cst_22 : f32 to vector<4x512xf32>
    %44 = arith.maximumf %42, %43 : vector<4x512xf32>
    %45 = arith.truncf %44 : vector<4x512xf32> to vector<4x512xbf16>
    %c0_23 = arith.constant 0 : index
    %c0_24 = arith.constant 0 : index
    %46 = vector.load %arg9[%c0_23, %c0_24] : memref<512x256xbf16, #tpu.memory_space<vmem>>, vector<512x256xbf16>
    %cst_25 = arith.constant dense<0.000000e+00> : vector<4x256xf32>
    %47 = tpu.matmul %45, %46, %cst_25 {dimension_numbers = #tpu.dot_dimension_numbers<[1], [0], [0], [1], [0, 0, 1, 1], [], []>} : vector<4x512xbf16>, vector<512x256xbf16>, vector<4x256xf32> -> vector<4x256xf32>
    %c0_26 = arith.constant 0 : index
    %c0_27 = arith.constant 0 : index
    %48 = vector.load %arg10[%c0_26, %c0_27] : memref<1x256xf32, #tpu.memory_space<vmem>>, vector<1x256xf32>
    %49 = vector.broadcast %48 : vector<1x256xf32> to vector<4x256xf32>
    %50 = arith.addf %47, %49 : vector<4x256xf32>
    %c0_28 = arith.constant 0 : index
    %c0_29 = arith.constant 0 : index
    %51 = vector.load %arg11[%c0_28, %c0_29] : memref<1x256xf32, #tpu.memory_space<vmem>>, vector<1x256xf32>
    %c0_30 = arith.constant 0 : index
    %c0_31 = arith.constant 0 : index
    %52 = vector.load %arg12[%c0_30, %c0_31] : memref<1x256xf32, #tpu.memory_space<vmem>>, vector<1x256xf32>
    %cst_32 = arith.constant dense<0.000000e+00> : vector<256xf32>
    %53 = vector.multi_reduction <add>, %50, %cst_32 [0] : vector<4x256xf32> to vector<256xf32>
    %54 = vector.shape_cast %53 : vector<256xf32> to vector<1x256xf32>
    %cst_33 = arith.constant 4.000000e+00 : f32
    %55 = vector.broadcast %cst_33 : f32 to vector<1x256xf32>
    %56 = arith.divf %54, %55 : vector<1x256xf32>
    %57 = vector.broadcast %56 : vector<1x256xf32> to vector<4x256xf32>
    %58 = arith.subf %50, %57 : vector<4x256xf32>
    %59 = arith.mulf %58, %58 : vector<4x256xf32>
    %cst_34 = arith.constant dense<0.000000e+00> : vector<256xf32>
    %60 = vector.multi_reduction <add>, %59, %cst_34 [0] : vector<4x256xf32> to vector<256xf32>
    %61 = vector.shape_cast %60 : vector<256xf32> to vector<1x256xf32>
    %cst_35 = arith.constant 4.000000e+00 : f32
    %62 = vector.broadcast %cst_35 : f32 to vector<1x256xf32>
    %63 = arith.divf %61, %62 : vector<1x256xf32>
    %64 = vector.broadcast %56 : vector<1x256xf32> to vector<4x256xf32>
    %65 = arith.subf %50, %64 : vector<4x256xf32>
    %cst_36 = arith.constant 9.99999974E-6 : f32
    %66 = vector.broadcast %cst_36 : f32 to vector<1x256xf32>
    %67 = arith.addf %63, %66 : vector<1x256xf32>
    %68 = math.rsqrt %67 : vector<1x256xf32>
    %69 = vector.broadcast %68 : vector<1x256xf32> to vector<4x256xf32>
    %70 = arith.mulf %65, %69 : vector<4x256xf32>
    %71 = vector.broadcast %51 : vector<1x256xf32> to vector<4x256xf32>
    %72 = arith.mulf %70, %71 : vector<4x256xf32>
    %73 = vector.broadcast %52 : vector<1x256xf32> to vector<4x256xf32>
    %74 = arith.addf %72, %73 : vector<4x256xf32>
    %cst_37 = arith.constant 0.000000e+00 : f32
    %75 = vector.broadcast %cst_37 : f32 to vector<4x256xf32>
    %76 = arith.maximumf %74, %75 : vector<4x256xf32>
    %77 = arith.truncf %76 : vector<4x256xf32> to vector<4x256xbf16>
    %c0_38 = arith.constant 0 : index
    %c0_39 = arith.constant 0 : index
    %78 = vector.load %arg13[%c0_38, %c0_39] : memref<256x128xbf16, #tpu.memory_space<vmem>>, vector<256x128xbf16>
    %cst_40 = arith.constant dense<0.000000e+00> : vector<4x128xf32>
    %79 = tpu.matmul %77, %78, %cst_40 {dimension_numbers = #tpu.dot_dimension_numbers<[1], [0], [0], [1], [0, 0, 1, 1], [], []>} : vector<4x256xbf16>, vector<256x128xbf16>, vector<4x128xf32> -> vector<4x128xf32>
    %c0_41 = arith.constant 0 : index
    %c0_42 = arith.constant 0 : index
    %80 = vector.load %arg14[%c0_41, %c0_42] : memref<1x128xf32, #tpu.memory_space<vmem>>, vector<1x128xf32>
    %81 = vector.broadcast %80 : vector<1x128xf32> to vector<4x128xf32>
    %82 = arith.addf %79, %81 : vector<4x128xf32>
    %c0_43 = arith.constant 0 : index
    %c0_44 = arith.constant 0 : index
    %83 = vector.load %arg15[%c0_43, %c0_44] : memref<4x128xf32, #tpu.memory_space<vmem>>, vector<4x128xf32>
    tpu.vector_store %arg15[%c0_43, %c0_44], %82 {strides = array<i32>} : memref<4x128xf32, #tpu.memory_space<vmem>>, vector<4x128xf32>,
    return
  }
  func.func @transform_0(%arg0: i32) -> (i32, i32, i32) {
    %c0_i32 = arith.constant 0 : i32
    %c0_i32_0 = arith.constant 0 : i32
    %c0_i32_1 = arith.constant 0 : i32
    %c0_i32_2 = arith.constant 0 : i32
    return %c0_i32, %c0_i32_0, %c0_i32_1 : i32, i32, i32
  }
  func.func @transform_1(%arg0: i32) -> (i32, i32, i32) {
    %c0_i32 = arith.constant 0 : i32
    %c0_i32_0 = arith.constant 0 : i32
    %c0_i32_1 = arith.constant 0 : i32
    %c0_i32_2 = arith.constant 0 : i32
    return %c0_i32, %c0_i32_0, %c0_i32_1 : i32, i32, i32
  }
  func.func @transform_2(%arg0: i32) -> (i32, i32) {
    %c0_i32 = arith.constant 0 : i32
    %c0_i32_0 = arith.constant 0 : i32
    %c0_i32_1 = arith.constant 0 : i32
    return %c0_i32, %c0_i32_0 : i32, i32
  }
  func.func @transform_3(%arg0: i32) -> (i32, i32) {
    %c0_i32 = arith.constant 0 : i32
    %c0_i32_0 = arith.constant 0 : i32
    %c0_i32_1 = arith.constant 0 : i32
    return %c0_i32, %c0_i32_0 : i32, i32
  }
  func.func @transform_4(%arg0: i32) -> (i32, i32) {
    %c0_i32 = arith.constant 0 : i32
    %c0_i32_0 = arith.constant 0 : i32
    %c0_i32_1 = arith.constant 0 : i32
    return %c0_i32, %c0_i32_0 : i32, i32
  }
  func.func @transform_5(%arg0: i32) -> (i32, i32) {
    %c0_i32 = arith.constant 0 : i32
    %c0_i32_0 = arith.constant 0 : i32
    %c0_i32_1 = arith.constant 0 : i32
    return %c0_i32, %c0_i32_0 : i32, i32
  }
  func.func @transform_6(%arg0: i32) -> (i32, i32) {
    %c0_i32 = arith.constant 0 : i32
    %c0_i32_0 = arith.constant 0 : i32
    %c0_i32_1 = arith.constant 0 : i32
    return %c0_i32, %c0_i32_0 : i32, i32
  }
  func.func @transform_7(%arg0: i32) -> (i32, i32) {
    %c0_i32 = arith.constant 0 : i32
    %c0_i32_0 = arith.constant 0 : i32
    %c0_i32_1 = arith.constant 0 : i32
    return %c0_i32, %c0_i32_0 : i32, i32
  }
  func.func @transform_8(%arg0: i32) -> (i32, i32) {
    %c0_i32 = arith.constant 0 : i32
    %c0_i32_0 = arith.constant 0 : i32
    %c0_i32_1 = arith.constant 0 : i32
    return %c0_i32, %c0_i32_0 : i32, i32
  }
  func.func @transform_9(%arg0: i32) -> (i32, i32) {
    %c0_i32 = arith.constant 0 : i32
    %c0_i32_0 = arith.constant 0 : i32
    %c0_i32_1 = arith.constant 0 : i32
    return %c0_i32, %c0_i32_0 : i32, i32
  }
  func.func @transform_10(%arg0: i32) -> (i32, i32) {
    %c0_i32 = arith.constant 0 : i32
    %c0_i32_0 = arith.constant 0 : i32
    %c0_i32_1 = arith.constant 0 : i32
    return %c0_i32, %c0_i32_0 : i32, i32
  }
  func.func @transform_11(%arg0: i32) -> (i32, i32) {
    %c0_i32 = arith.constant 0 : i32
    %c0_i32_0 = arith.constant 0 : i32
    %c0_i32_1 = arith.constant 0 : i32
    return %c0_i32, %c0_i32_0 : i32, i32
  }
  func.func @transform_12(%arg0: i32) -> (i32, i32) {
    %c0_i32 = arith.constant 0 : i32
    %c0_i32_0 = arith.constant 0 : i32
    %c0_i32_1 = arith.constant 0 : i32
    return %c0_i32, %c0_i32_0 : i32, i32
  }
  func.func @transform_13(%arg0: i32) -> (i32, i32) {
    %c0_i32 = arith.constant 0 : i32
    %c0_i32_0 = arith.constant 0 : i32
    %c0_i32_1 = arith.constant 0 : i32
    return %c0_i32, %c0_i32_0 : i32, i32
  }
  func.func @transform_14(%arg0: i32) -> (i32, i32) {
    %c0_i32 = arith.constant 0 : i32
    %c0_i32_0 = arith.constant 0 : i32
    %c0_i32_1 = arith.constant 0 : i32
    return %c0_i32, %c0_i32_0 : i32, i32
  }
}

</mosaic_0001>

<llo_original>
// kernel: pointnet_encoder.5
$region0: #{pointnet_encoder.5}
  #allocation0 [shape = 'u32[]', space=smem, size = 0x4, offset = 0x4, fixed_abs, tag = 'smem constant byte address 0x4 - core index']
  #allocation1 [shape = 'u32[72,128]{1,0:T(1,128)}', space=vmem, size = 0x9000, scoped, tag = 'internal scratch']
  %s0 = inlined_call_operand.vmem [shape: f32[160,3], index: 0, kind: input, shape index: {}]
  %s1 = inlined_call_operand.hbm [shape: f32[3,128], index: 1, kind: input, shape index: {}]
  %s2 = inlined_call_operand.hbm [shape: f32[1,128], index: 2, kind: input, shape index: {}]
  %s3 = inlined_call_operand.vmem [shape: f32[4,1,128], index: 3, kind: output, shape index: {0}]
  %s4 = inlined_call_operand.vmem [shape: f32[4,1,128], index: 4, kind: output, shape index: {1}]
  %5 = xla_tuple %s3, %s4
  %s6 = sld [smem:[#allocation0]]
  $region61: #{pointnet_encoder.5} parent=0
    _
  %s8 = ssub.s32 1, %s6
  %s9 = scalar_select 0, %s8, %s6
  $region1: #{pointnet_encoder.5} parent=0
    #allocation2 [shape = 'u8[2048]{0}', space=vmem, size = 0x800, scoped, tag = 'input window, operand 1, single buffered']
    #allocation3 [shape = 's32[2]{0}', space=sflag, size = 0x8, scoped, tag = 'scoped memory for pointnet_encoder.5']
    #allocation4 [shape = 'u8[512]{0}', space=vmem, size = 0x400, scoped, tag = 'input window, operand 2, single buffered']
    #allocation5 [shape = 's32[1]{0}', space=sflag, size = 0x4, scoped, tag = 'scoped memory for pointnet_encoder.5']
    %10 = vsyncpa [#allocation3], 0
    %11 = vsyncpa [#allocation5], 0
    loop: start=0, step=1, limit=6
    $region2: #{pointnet_encoder.5} parent=1 // loop_pre_header
      _
    $region3: #{pointnet_encoder.5} parent=1 // loop_header
      %s13 = sphi 0, %s17
      %p14 = scmp.ge.s32.totalorder %s13, 6
      %s23 = sphi 0, %s25
      %s26 = sphi 0, %s23
      %s27 = sphi 0, %s26
      %s43 = sphi 0, %s27
      %s47 = sphi 0, %s47
      %s49 = sphi 0, %s47
      %s50 = sphi 0, %s49
      %s64 = sphi 0, %s50
      %s68 = sphi 0, %s68
      %s70 = sphi 0, %s68
      %s71 = sphi 0, %s70
      %s85 = sphi 0, %s71
      %s91 = sphi 0, %s93
      %s94 = sphi 0, %s91
      %s95 = sphi 0, %s94
      %s111 = sphi 0, %s95
      %s117 = sphi 0, %s119
      %s120 = sphi 0, %s117
      %s121 = sphi 0, %s120
      %s137 = sphi 0, %s121
    $region4: #{pointnet_encoder.5} parent=1 // loop_header_branch
      %16 = sbr.rel (%p14) target = $region8
    $region5: #{pointnet_encoder.5} parent=1 // loop_body
      %s18 = ssub.s32 %s13, 1
      %s19 = ssub.s32 %s13, 2
      %s20 = sadd.s32 %s13, 1
      %s21 = ssub.s32 %s13, %s20
      %p22 = scmp.eq.s32.totalorder %s21, 0
      %s24 = sadd.s32 %s23, 1
      %s25 = scalar_select %p22, %s23, %s24
      %p28 = pneg %p22
      %p29 = scmp.eq.s32.totalorder %s13, 3
      %p30 = por %p28, %p29
      %p31 = scmp.ne.s32.totalorder %s23, %s26
      %p32 = scmp.eq.s32.totalorder %s13, 0
      %p33 = por %p31, %p32
      %p34 = scmp.ne.s32.totalorder %s23, %s26
      %p35 = scmp.eq.s32.totalorder %s18, 3
      %p36 = por %p34, %p35
      %p37 = scmp.ne.s32.totalorder %s26, %s27
      %p38 = scmp.eq.s32.totalorder %s18, 0
      %p39 = por %p37, %p38
      %p40 = scmp.ne.s32.totalorder %s26, %s27
      %p41 = scmp.eq.s32.totalorder %s19, 3
      %p42 = por %p40, %p41
      %p44 = scmp.ne.s32.totalorder %s27, %s43
      %p45 = scmp.eq.s32.totalorder %s19, 0
      %p46 = por %p44, %p45
      %s48 = sadd.s32 %s47, 1
      %p51 = scmp.eq.s32.totalorder %s13, 3
      %p52 = scmp.ne.s32.totalorder %s47, %s49
      %p53 = scmp.eq.s32.totalorder %s13, 0
      %p54 = por %p52, %p53
      %p55 = scmp.ne.s32.totalorder %s47, %s49
      %p56 = scmp.eq.s32.totalorder %s18, 3
      %p57 = por %p55, %p56
      %p58 = scmp.ne.s32.totalorder %s49, %s50
      %p59 = scmp.eq.s32.totalorder %s18, 0
      %p60 = por %p58, %p59
      %p61 = scmp.ne.s32.totalorder %s49, %s50
      %p62 = scmp.eq.s32.totalorder %s19, 3
      %p63 = por %p61, %p62
      %p65 = scmp.ne.s32.totalorder %s50, %s64
      %p66 = scmp.eq.s32.totalorder %s19, 0
      %p67 = por %p65, %p66
      %s69 = sadd.s32 %s68, 1
      %p72 = scmp.eq.s32.totalorder %s13, 3
      %p73 = scmp.ne.s32.totalorder %s68, %s70
      %p74 = scmp.eq.s32.totalorder %s13, 0
      %p75 = por %p73, %p74
      %p76 = scmp.ne.s32.totalorder %s68, %s70
      %p77 = scmp.eq.s32.totalorder %s18, 3
      %p78 = por %p76, %p77
      %p79 = scmp.ne.s32.totalorder %s70, %s71
      %p80 = scmp.eq.s32.totalorder %s18, 0
      %p81 = por %p79, %p80
      %p82 = scmp.ne.s32.totalorder %s70, %s71
      %p83 = scmp.eq.s32.totalorder %s19, 3
      %p84 = por %p82, %p83
      %p86 = scmp.ne.s32.totalorder %s71, %s85
      %p87 = scmp.eq.s32.totalorder %s19, 0
      %p88 = por %p86, %p87
      %s89 = ssub.s32 %s13, %s20
      %p90 = scmp.eq.s32.totalorder %s89, 0
      %s92 = sadd.s32 %s91, 1
      %s93 = scalar_select %p90, %s91, %s92
      %p96 = pneg %p90
      %p97 = scmp.eq.s32.totalorder %s13, 3
      %p98 = por %p96, %p97
      %p99 = scmp.ne.s32.totalorder %s91, %s94
      %p100 = scmp.eq.s32.totalorder %s13, 0
      %p101 = por %p99, %p100
      %p102 = scmp.ne.s32.totalorder %s91, %s94
      %p103 = scmp.eq.s32.totalorder %s18, 3
      %p104 = por %p102, %p103
      %p105 = scmp.ne.s32.totalorder %s94, %s95
      %p106 = scmp.eq.s32.totalorder %s18, 0
      %p107 = por %p105, %p106
      %p108 = scmp.ne.s32.totalorder %s94, %s95
      %p109 = scmp.eq.s32.totalorder %s19, 3
      %p110 = por %p108, %p109
      %p112 = scmp.ne.s32.totalorder %s95, %s111
      %p113 = scmp.eq.s32.totalorder %s19, 0
      %p114 = por %p112, %p113
      %s115 = ssub.s32 %s13, %s20
      %p116 = scmp.eq.s32.totalorder %s115, 0
      %s118 = sadd.s32 %s117, 1
      %s119 = scalar_select %p116, %s117, %s118
      %p122 = pneg %p116
      %p123 = scmp.eq.s32.totalorder %s13, 3
      %p124 = por %p122, %p123
      %p125 = scmp.ne.s32.totalorder %s117, %s120
      %p126 = scmp.eq.s32.totalorder %s13, 0
      %p127 = por %p125, %p126
      %p128 = scmp.ne.s32.totalorder %s117, %s120
      %p129 = scmp.eq.s32.totalorder %s18, 3
      %p130 = por %p128, %p129
      %p131 = scmp.ne.s32.totalorder %s120, %s121
      %p132 = scmp.eq.s32.totalorder %s18, 0
      %p133 = por %p131, %p132
      %p134 = scmp.ne.s32.totalorder %s120, %s121
      %p135 = scmp.eq.s32.totalorder %s19, 3
      %p136 = por %p134, %p135
      %p138 = scmp.ne.s32.totalorder %s121, %s137
      %p139 = scmp.eq.s32.totalorder %s19, 0
      %p140 = por %p138, %p139
      %p141 = scmp.le.s32.totalorder 1, %s13
      %p142 = scmp.lt.s32.totalorder %s13, 5
      %p143 = pnand %p141, %p142
      %p144 = pneg %p143
      // Predicated region
      $region9: #{pointnet_encoder.5} parent=5 // pred_check
        _
      $region10: #{pointnet_encoder.5} parent=5 // pred_check_branch
        %146 = sbr.rel (%p143) target = $region12
      $region11: #{pointnet_encoder.5} parent=5 // pred_region
        %s147 = ssub.s32 %s13, 1
        // Predicated region
        $region13: #{pointnet_encoder.5} parent=11 // pred_check
          %p148 = pneg %p60
        $region14: #{pointnet_encoder.5} parent=11 // pred_check_branch
          %150 = sbr.rel (%p148) target = $region16
        $region15: #{pointnet_encoder.5} parent=11 // pred_region
          %152 = vsyncadd [#allocation3], 0
          %s154 = sshll.u32 %s1, 4
          %s155 = int_to_ptr.hbm [resolvable:$true] %s154
          %s156 = sshll.u32 [#allocation2], 4
          %s157 = int_to_ptr.vmem [resolvable:$true] %s156
          %159 = dma.hbm_to_vmem [thread:$0]  %s155, 64, %s157, [#allocation3]
        $region16: #{pointnet_encoder.5} parent=11 // pred_fallthru
          _
        // Predicated region
        $region17: #{pointnet_encoder.5} parent=11 // pred_check
          %p160 = pneg %p81
        $region18: #{pointnet_encoder.5} parent=11 // pred_check_branch
          %162 = sbr.rel (%p160) target = $region20
        $region19: #{pointnet_encoder.5} parent=11 // pred_region
          %164 = vsyncadd [#allocation5], 0
          %s166 = sshll.u32 %s2, 4
          %s167 = int_to_ptr.hbm [resolvable:$true] %s166
          %s168 = sshll.u32 [#allocation4], 4
          %s169 = int_to_ptr.vmem [resolvable:$true] %s168
          %171 = dma.hbm_to_vmem [thread:$0]  %s167, 16, %s169, [#allocation5]
        $region20: #{pointnet_encoder.5} parent=11 // pred_fallthru
          _
      $region12: #{pointnet_encoder.5} parent=5 // pred_fallthru
        _
      %p172 = scmp.lt.s32.totalorder %s13, 4
      // Predicated region
      $region21: #{pointnet_encoder.5} parent=5 // pred_check
        %p173 = pneg %p172
      $region22: #{pointnet_encoder.5} parent=5 // pred_check_branch
        %175 = sbr.rel (%p173) target = $region24
      $region23: #{pointnet_encoder.5} parent=5 // pred_region
        // Predicated region
        $region25: #{pointnet_encoder.5} parent=23 // pred_check
          %p176 = pneg %p33
        $region26: #{pointnet_encoder.5} parent=23 // pred_check_branch
          %178 = sbr.rel (%p176) target = $region28
        $region27: #{pointnet_encoder.5} parent=23 // pred_region
          %s179 = smul.u32 6, %s13
          %s180 = ssub.s32 20, %s179
          %p181 = scmp.lt.s32.totalorder %s180, 6
          %s182 = scalar_select %p181, %s180, 6
          %s183 = smul.u32 8, %s182
          %p184 = scmp.lt.s32.totalorder %s179, 19
          %s185 = scalar_select %p184, %s179, 19
          %s186 = smul.addr %s185, 8
          %s187 = scalar_lea.vmem %s0, %s186
          %s188 = smul.u32 6, %s13
          %s189 = ssub.s32 20, %s188
          %p190 = scmp.lt.s32.totalorder %s189, 6
          %s191 = scalar_select %p190, %s189, 6
          %s192 = smul.u32 8, %s191
        $region28: #{pointnet_encoder.5} parent=23 // pred_fallthru
          _
      $region24: #{pointnet_encoder.5} parent=5 // pred_fallthru
        _
      %p193 = scmp.le.s32.totalorder 1, %s13
      %p194 = scmp.lt.s32.totalorder %s13, 5
      %p195 = pnand %p193, %p194
      %p196 = pneg %p195
      // Predicated region
      $region29: #{pointnet_encoder.5} parent=5 // pred_check
        _
      $region30: #{pointnet_encoder.5} parent=5 // pred_check_branch
        %198 = sbr.rel (%p195) target = $region32
      $region31: #{pointnet_encoder.5} parent=5 // pred_region
        %s199 = ssub.s32 %s13, 1
        // Predicated region
        $region33: #{pointnet_encoder.5} parent=31 // pred_check
          %p200 = pneg %p60
        $region34: #{pointnet_encoder.5} parent=31 // pred_check_branch
          %202 = sbr.rel (%p200) target = $region36
        $region35: #{pointnet_encoder.5} parent=31 // pred_region
          %204 = dma.done [#allocation3], 64
        $region36: #{pointnet_encoder.5} parent=31 // pred_fallthru
          _
        // Predicated region
        $region37: #{pointnet_encoder.5} parent=31 // pred_check
          %p205 = pneg %p81
        $region38: #{pointnet_encoder.5} parent=31 // pred_check_branch
          %207 = sbr.rel (%p205) target = $region40
        $region39: #{pointnet_encoder.5} parent=31 // pred_region
          %209 = dma.done [#allocation5], 16
        $region40: #{pointnet_encoder.5} parent=31 // pred_fallthru
          _
        %s210 = smul.u32 6, %s18
        %s211 = ssub.s32 20, %s210
        %p212 = scmp.lt.s32.totalorder %s211, 6
        %s213 = scalar_select %p212, %s211, 6
        %s214 = smul.u32 8, %s213
        %p215 = scmp.lt.s32.totalorder %s210, 19
        %s216 = scalar_select %p215, %s210, 19
        %s217 = smul.addr %s216, 8
        %s218 = scalar_lea.vmem %s0, %s217
        %p219 = pneg %p39
        %p220 = pneg %p36
        %p221 = pneg %p60
        %p222 = pneg %p57
        %p223 = pneg %p81
        %p224 = pneg %p78
        %p225 = pneg %p107
        %p226 = pneg %p104
        %p227 = scmp.lt.s32.totalorder %s18, 3
        %s228 = scalar_select %p227, %s18, 3
        %s229 = scalar_lea.vmem %s3, %s228
        %p230 = pneg %p133
        %p231 = pneg %p130
        %p232 = scmp.lt.s32.totalorder %s18, 3
        %s233 = scalar_select %p232, %s18, 3
        %s234 = scalar_lea.vmem %s4, %s233
        %s235 = smul.u32 6, %s18
        %s236 = ssub.s32 20, %s235
        %p237 = scmp.lt.s32.totalorder %s236, 6
        %s238 = scalar_select %p237, %s236, 6
        %s239 = smul.u32 8, %s238
        %p240 = scmp.lt.s32.totalorder %s235, 19
        %s241 = scalar_select %p240, %s235, 19
        %s242 = smul.addr %s241, 8
        %s243 = scalar_lea.vmem %s0, %s242
        %s244 = smul.u32 6, %s18
        %s245 = ssub.s32 20, %s244
        %p246 = scmp.lt.s32.totalorder %s245, 6
        %s247 = scalar_select %p246, %s245, 6
        %s248 = smul.u32 8, %s247
        %p249 = scmp.lt.s32.totalorder %s18, 3
        %s250 = scalar_select %p249, %s18, 3
        %s251 = scalar_lea.vmem %s3, %s250
        %p252 = scmp.lt.s32.totalorder %s18, 3
        %s253 = scalar_select %p252, %s18, 3
        %s254 = scalar_lea.vmem %s4, %s253
        %v255 = vld [vmem:[%s243] sm:$0xff]
        %v256 = vld [vmem:[%s243 + $0x8] sm:$0xff]
        %v257 = vld [vmem:[%s243 + $0x10] sm:$0xff]
        %v258 = vld [vmem:[%s243 + $0x18] sm:$0xff]
        %v259 = vld [vmem:[%s243 + $0x20] sm:$0xff]
        %v260 = vld [vmem:[%s243 + $0x28] sm:$0xff]
        %v261 = vld [vmem:[#allocation2] sm:$0x1]
        %263 = vset.pattern.permute.xlu0 0
        %264 = vperm.xlu0 %263, %v255
        %v265 = vpop.permute.xlu0 %264
        %268 = vset.pattern.permute.xlu0 0
        %269 = vperm.xlu0 %268, %v256
        %v270 = vpop.permute.xlu0 %269
        %273 = vset.pattern.permute.xlu0 0
        %274 = vperm.xlu0 %273, %v257
        %v275 = vpop.permute.xlu0 %274
        %278 = vset.pattern.permute.xlu0 0
        %279 = vperm.xlu0 %278, %v258
        %v280 = vpop.permute.xlu0 %279
        %283 = vset.pattern.permute.xlu0 0
        %284 = vperm.xlu0 %283, %v259
        %v285 = vpop.permute.xlu0 %284
        %288 = vset.pattern.permute.xlu0 0
        %289 = vperm.xlu0 %288, %v260
        %v290 = vpop.permute.xlu0 %289
        %v292 = vperm.slane %v261, 0
        %v293 = vmul.f32 %v265, %v292
        %v294 = vmul.f32 %v270, %v292
        %v295 = vmul.f32 %v275, %v292
        %v296 = vmul.f32 %v280, %v292
        %v297 = vmul.f32 %v285, %v292
        %v298 = vmul.f32 %v290, %v292
        %v299 = vld [vmem:[#allocation2 + $0x1] sm:$0x1]
        %300 = vset.pattern.permute.xlu0 1
        %301 = vperm.xlu0 %300, %v255
        %v302 = vpop.permute.xlu0 %301
        %304 = vset.pattern.permute.xlu0 1
        %305 = vperm.xlu0 %304, %v256
        %v306 = vpop.permute.xlu0 %305
        %308 = vset.pattern.permute.xlu0 1
        %309 = vperm.xlu0 %308, %v257
        %v310 = vpop.permute.xlu0 %309
        %312 = vset.pattern.permute.xlu0 1
        %313 = vperm.xlu0 %312, %v258
        %v314 = vpop.permute.xlu0 %313
        %316 = vset.pattern.permute.xlu0 1
        %317 = vperm.xlu0 %316, %v259
        %v318 = vpop.permute.xlu0 %317
        %320 = vset.pattern.permute.xlu0 1
        %321 = vperm.xlu0 %320, %v260
        %v322 = vpop.permute.xlu0 %321
        %v324 = vperm.slane %v299, 0
        %v325 = vmul.f32 %v302, %v324
        %v326 = vmul.f32 %v306, %v324
        %v327 = vmul.f32 %v310, %v324
        %v328 = vmul.f32 %v314, %v324
        %v329 = vmul.f32 %v318, %v324
        %v330 = vmul.f32 %v322, %v324
        %v331 = vadd.f32 %v293, %v325
        %v332 = vadd.f32 %v294, %v326
        %v333 = vadd.f32 %v295, %v327
        %v334 = vadd.f32 %v296, %v328
        %v335 = vadd.f32 %v297, %v329
        %v336 = vadd.f32 %v298, %v330
        %v337 = vld [vmem:[#allocation2 + $0x2] sm:$0x1]
        %338 = vset.pattern.permute.xlu0 2
        %339 = vperm.xlu0 %338, %v255
        %v340 = vpop.permute.xlu0 %339
        %342 = vset.pattern.permute.xlu0 2
        %343 = vperm.xlu0 %342, %v256
        %v344 = vpop.permute.xlu0 %343
        %346 = vset.pattern.permute.xlu0 2
        %347 = vperm.xlu0 %346, %v257
        %v348 = vpop.permute.xlu0 %347
        %350 = vset.pattern.permute.xlu0 2
        %351 = vperm.xlu0 %350, %v258
        %v352 = vpop.permute.xlu0 %351
        %354 = vset.pattern.permute.xlu0 2
        %355 = vperm.xlu0 %354, %v259
        %v356 = vpop.permute.xlu0 %355
        %358 = vset.pattern.permute.xlu0 2
        %359 = vperm.xlu0 %358, %v260
        %v360 = vpop.permute.xlu0 %359
        %v362 = vperm.slane %v337, 0
        %v363 = vmul.f32 %v340, %v362
        %v364 = vmul.f32 %v344, %v362
        %v365 = vmul.f32 %v348, %v362
        %v366 = vmul.f32 %v352, %v362
        %v367 = vmul.f32 %v356, %v362
        %v368 = vmul.f32 %v360, %v362
        %v369 = vadd.f32 %v331, %v363
        %v370 = vadd.f32 %v332, %v364
        %v371 = vadd.f32 %v333, %v365
        %v372 = vadd.f32 %v334, %v366
        %v373 = vadd.f32 %v335, %v367
        %v374 = vadd.f32 %v336, %v368
        %v375 = vld [vmem:[#allocation4] sm:$0x1]
        %v377 = vperm.slane %v375, 0
        %v379 = vadd.f32 %v369, %v377
        %v380 = vadd.f32 %v370, %v377
        %v381 = vadd.f32 %v371, %v377
        %v382 = vadd.f32 %v372, %v377
        %v383 = vadd.f32 %v373, %v377
        %v384 = vadd.f32 %v374, %v377
        %s385 = smul.u32 %s18, 48
        %v386 = vlaneseq
        %v387 = vshrl.u32 %v386, 7
        %v388 = vadd.s32 %v387, 8
        %v389 = vadd.s32 %v387, 16
        %v390 = vadd.s32 %v387, 24
        %v391 = vadd.s32 %v387, 32
        %v392 = vadd.s32 %v387, 40
        %v393 = vstv %s385
        %v394 = vadd.s32 %v387, %v393
        %v395 = vadd.s32 %v388, %v393
        %v396 = vadd.s32 %v389, %v393
        %v397 = vadd.s32 %v390, %v393
        %v398 = vadd.s32 %v391, %v393
        %v399 = vadd.s32 %v392, %v393
        %vm400 = vcmp.lt.s32.totalorder %v394, 160
        %vm401 = vcmp.lt.s32.totalorder %v395, 160
        %vm402 = vcmp.lt.s32.totalorder %v396, 160
        %vm403 = vcmp.lt.s32.totalorder %v397, 160
        %vm404 = vcmp.lt.s32.totalorder %v398, 160
        %vm405 = vcmp.lt.s32.totalorder %v399, 160
        %v406 = vsel %vm400, %v379, 0.0
        %v407 = vsel %vm401, %v380, 0.0
        %v408 = vsel %vm402, %v381, 0.0
        %v409 = vsel %vm403, %v382, 0.0
        %v410 = vsel %vm404, %v383, 0.0
        %v411 = vsel %vm405, %v384, 0.0
        %v412 = vadd.f32 %v406, %v407
        %v413 = vadd.f32 %v412, %v408
        %v414 = vadd.f32 %v413, %v409
        %v415 = vadd.f32 %v414, %v410
        %v416 = vadd.f32 %v415, %v411
        %v417 = vrot.slane %v416, 4
        %v418 = vadd.f32 %v416, %v417
        %v419 = vrot.slane %v418, 2
        %v420 = vadd.f32 %v418, %v419
        %v421 = vrot.slane %v420, 1
        %v422 = vadd.f32 %v420, %v421
        %423 = vst [vmem:[%s251] sm:$0x1] %v422
        %v424 = vmul.f32 %v406, %v406
        %v425 = vmul.f32 %v407, %v407
        %v426 = vmul.f32 %v408, %v408
        %v427 = vmul.f32 %v409, %v409
        %v428 = vmul.f32 %v410, %v410
        %v429 = vmul.f32 %v411, %v411
        %v430 = vadd.f32 %v424, %v425
        %v431 = vadd.f32 %v430, %v426
        %v432 = vadd.f32 %v431, %v427
        %v433 = vadd.f32 %v432, %v428
        %v434 = vadd.f32 %v433, %v429
        %v435 = vrot.slane %v434, 4
        %v436 = vadd.f32 %v434, %v435
        %v437 = vrot.slane %v436, 2
        %v438 = vadd.f32 %v436, %v437
        %v439 = vrot.slane %v438, 1
        %v440 = vadd.f32 %v438, %v439
        %441 = vst [vmem:[%s254] sm:$0x1] %v440
        %p442 = scmp.lt.s32.totalorder %s18, 3
        %s443 = scalar_select %p442, %s18, 3
        %s444 = scalar_lea.vmem %s3, %s443
        %p445 = scmp.lt.s32.totalorder %s18, 3
        %s446 = scalar_select %p445, %s18, 3
        %s447 = scalar_lea.vmem %s4, %s446
        // Predicated region
        $region41: #{pointnet_encoder.5} parent=31 // pred_check
          %p448 = pneg %p104
        $region42: #{pointnet_encoder.5} parent=31 // pred_check_branch
          %450 = sbr.rel (%p448) target = $region44
        $region43: #{pointnet_encoder.5} parent=31 // pred_region
          _
        $region44: #{pointnet_encoder.5} parent=31 // pred_fallthru
          _
        // Predicated region
        $region45: #{pointnet_encoder.5} parent=31 // pred_check
          %p451 = pneg %p130
        $region46: #{pointnet_encoder.5} parent=31 // pred_check_branch
          %453 = sbr.rel (%p451) target = $region48
        $region47: #{pointnet_encoder.5} parent=31 // pred_region
          _
        $region48: #{pointnet_encoder.5} parent=31 // pred_fallthru
          _
      $region32: #{pointnet_encoder.5} parent=5 // pred_fallthru
        _
      %p454 = scmp.le.s32.totalorder 2, %s13
      // Predicated region
      $region49: #{pointnet_encoder.5} parent=5 // pred_check
        %p455 = pneg %p454
      $region50: #{pointnet_encoder.5} parent=5 // pred_check_branch
        %457 = sbr.rel (%p455) target = $region52
      $region51: #{pointnet_encoder.5} parent=5 // pred_region
        %s458 = ssub.s32 %s13, 2
        // Predicated region
        $region53: #{pointnet_encoder.5} parent=51 // pred_check
          %p459 = pneg %p110
        $region54: #{pointnet_encoder.5} parent=51 // pred_check_branch
          %461 = sbr.rel (%p459) target = $region56
        $region55: #{pointnet_encoder.5} parent=51 // pred_region
          %p462 = scmp.lt.s32.totalorder %s19, 3
          %s463 = scalar_select %p462, %s19, 3
          %s464 = scalar_lea.vmem %s3, %s463
        $region56: #{pointnet_encoder.5} parent=51 // pred_fallthru
          _
        // Predicated region
        $region57: #{pointnet_encoder.5} parent=51 // pred_check
          %p465 = pneg %p136
        $region58: #{pointnet_encoder.5} parent=51 // pred_check_branch
          %467 = sbr.rel (%p465) target = $region60
        $region59: #{pointnet_encoder.5} parent=51 // pred_region
          %p468 = scmp.lt.s32.totalorder %s19, 3
          %s469 = scalar_select %p468, %s19, 3
          %s470 = scalar_lea.vmem %s4, %s469
        $region60: #{pointnet_encoder.5} parent=51 // pred_fallthru
          _
      $region52: #{pointnet_encoder.5} parent=5 // pred_fallthru
        _
    $region6: #{pointnet_encoder.5} parent=1 // loop_footer
      %s17 = sadd.s32 1, %s13
    $region7: #{pointnet_encoder.5} parent=1 // loop_footer_branch
      %12 = sbr.rel target = $region3
    $region8: #{pointnet_encoder.5} parent=1 // loop_exit
      _
    %471 = vsyncpa [#allocation3], 1
    %s472 = scalar_lea.sflag [#allocation3], 1
    %473 = vsyncpa %s472, 1
    %474 = vsyncpa [#allocation5], 1

// kernel: pointnet_encoder.6
$region0: #{pointnet_encoder.6}
  #allocation0 [shape = 'u32[]', space=smem, size = 0x4, offset = 0x4, fixed_abs, tag = 'smem constant byte address 0x4 - core index']
  #allocation1 [shape = 'u32[72,128]{1,0:T(1,128)}', space=vmem, size = 0x9000, scoped, tag = 'internal scratch']
  %s0 = inlined_call_operand.vmem [shape: f32[160,3], index: 0, kind: input, shape index: {}]
  %s1 = inlined_call_operand.hbm [shape: f32[3,128], index: 1, kind: input, shape index: {}]
  %s2 = inlined_call_operand.hbm [shape: f32[1,128], index: 2, kind: input, shape index: {}]
  %s3 = inlined_call_operand.vmem [shape: f32[1,128], index: 3, kind: input, shape index: {}]
  %s4 = inlined_call_operand.vmem [shape: f32[1,128], index: 4, kind: input, shape index: {}]
  %s5 = inlined_call_operand.hbm [shape: bf16[128,128], index: 5, kind: input, shape index: {}]
  %s6 = inlined_call_operand.hbm [shape: f32[1,128], index: 6, kind: input, shape index: {}]
  %s7 = inlined_call_operand.vmem [shape: bf16[160,128], index: 7, kind: output, shape index: {0}]
  %s8 = inlined_call_operand.vmem [shape: f32[4,1,128], index: 8, kind: output, shape index: {1}]
  %s9 = inlined_call_operand.vmem [shape: f32[4,1,128], index: 9, kind: output, shape index: {2}]
  %10 = xla_tuple %s7, %s8, %s9
  %s11 = sld [smem:[#allocation0]]
  $region137: #{pointnet_encoder.6} parent=0
    _
  %s13 = ssub.s32 1, %s11
  %s14 = scalar_select 0, %s13, %s11
  $region1: #{pointnet_encoder.6} parent=0
    #allocation2 [shape = 'u8[2048]{0}', space=vmem, size = 0x800, scoped, tag = 'input window, operand 1, single buffered']
    #allocation3 [shape = 's32[2]{0}', space=sflag, size = 0x8, scoped, tag = 'scoped memory for pointnet_encoder.6']
    #allocation4 [shape = 'u8[512]{0}', space=vmem, size = 0x400, scoped, tag = 'input window, operand 2, single buffered']
    #allocation5 [shape = 's32[1]{0}', space=sflag, size = 0x4, scoped, tag = 'scoped memory for pointnet_encoder.6']
    #allocation6 [shape = 'u8[32768]{0}', space=vmem, size = 0x8000, scoped, tag = 'input window, operand 5, single buffered']
    #allocation7 [shape = 'u8[512]{0}', space=vmem, size = 0x400, scoped, tag = 'input window, operand 6, single buffered']
    #allocation8 [shape = 's32[1]{0}', space=sflag, size = 0x4, scoped, tag = 'scoped memory for pointnet_encoder.6']
    #allocation9 [shape = 'u8[24576]{0}', space=vmem, size = 0x6000, scoped, tag = 'output window, operand 0']
    %15 = vsyncpa [#allocation3], 0
    %16 = vsyncpa [#allocation5], 0
    %17 = vsyncpa [#allocation8], 0
    loop: start=0, step=1, limit=6
    $region2: #{pointnet_encoder.6} parent=1 // loop_pre_header
      _
    $region3: #{pointnet_encoder.6} parent=1 // loop_header
      %s19 = sphi 0, %s23
      %p20 = scmp.ge.s32.totalorder %s19, 6
      %s29 = sphi 0, %s31
      %s32 = sphi 0, %s29
      %s33 = sphi 0, %s32
      %s49 = sphi 0, %s33
      %s53 = sphi 0, %s53
      %s55 = sphi 0, %s53
      %s56 = sphi 0, %s55
      %s70 = sphi 0, %s56
      %s74 = sphi 0, %s74
      %s76 = sphi 0, %s74
      %s77 = sphi 0, %s76
      %s91 = sphi 0, %s77
      %s95 = sphi 0, %s95
      %s97 = sphi 0, %s95
      %s98 = sphi 0, %s97
      %s112 = sphi 0, %s98
      %s116 = sphi 0, %s116
      %s118 = sphi 0, %s116
      %s119 = sphi 0, %s118
      %s133 = sphi 0, %s119
      %s137 = sphi 0, %s137
      %s139 = sphi 0, %s137
      %s140 = sphi 0, %s139
      %s154 = sphi 0, %s140
      %s158 = sphi 0, %s158
      %s160 = sphi 0, %s158
      %s161 = sphi 0, %s160
      %s175 = sphi 0, %s161
      %s181 = sphi 0, %s183
      %s184 = sphi 0, %s181
      %s185 = sphi 0, %s184
      %s201 = sphi 0, %s185
      %s207 = sphi 0, %s209
      %s210 = sphi 0, %s207
      %s211 = sphi 0, %s210
      %s227 = sphi 0, %s211
      %s233 = sphi 0, %s235
      %s236 = sphi 0, %s233
      %s237 = sphi 0, %s236
      %s253 = sphi 0, %s237
    $region4: #{pointnet_encoder.6} parent=1 // loop_header_branch
      %22 = sbr.rel (%p20) target = $region8
    $region5: #{pointnet_encoder.6} parent=1 // loop_body
      %s24 = ssub.s32 %s19, 1
      %s25 = ssub.s32 %s19, 2
      %s26 = sadd.s32 %s19, 1
      %s27 = ssub.s32 %s19, %s26
      %p28 = scmp.eq.s32.totalorder %s27, 0
      %s30 = sadd.s32 %s29, 1
      %s31 = scalar_select %p28, %s29, %s30
      %p34 = pneg %p28
      %p35 = scmp.eq.s32.totalorder %s19, 3
      %p36 = por %p34, %p35
      %p37 = scmp.ne.s32.totalorder %s29, %s32
      %p38 = scmp.eq.s32.totalorder %s19, 0
      %p39 = por %p37, %p38
      %p40 = scmp.ne.s32.totalorder %s29, %s32
      %p41 = scmp.eq.s32.totalorder %s24, 3
      %p42 = por %p40, %p41
      %p43 = scmp.ne.s32.totalorder %s32, %s33
      %p44 = scmp.eq.s32.totalorder %s24, 0
      %p45 = por %p43, %p44
      %p46 = scmp.ne.s32.totalorder %s32, %s33
      %p47 = scmp.eq.s32.totalorder %s25, 3
      %p48 = por %p46, %p47
      %p50 = scmp.ne.s32.totalorder %s33, %s49
      %p51 = scmp.eq.s32.totalorder %s25, 0
      %p52 = por %p50, %p51
      %s54 = sadd.s32 %s53, 1
      %p57 = scmp.eq.s32.totalorder %s19, 3
      %p58 = scmp.ne.s32.totalorder %s53, %s55
      %p59 = scmp.eq.s32.totalorder %s19, 0
      %p60 = por %p58, %p59
      %p61 = scmp.ne.s32.totalorder %s53, %s55
      %p62 = scmp.eq.s32.totalorder %s24, 3
      %p63 = por %p61, %p62
      %p64 = scmp.ne.s32.totalorder %s55, %s56
      %p65 = scmp.eq.s32.totalorder %s24, 0
      %p66 = por %p64, %p65
      %p67 = scmp.ne.s32.totalorder %s55, %s56
      %p68 = scmp.eq.s32.totalorder %s25, 3
      %p69 = por %p67, %p68
      %p71 = scmp.ne.s32.totalorder %s56, %s70
      %p72 = scmp.eq.s32.totalorder %s25, 0
      %p73 = por %p71, %p72
      %s75 = sadd.s32 %s74, 1
      %p78 = scmp.eq.s32.totalorder %s19, 3
      %p79 = scmp.ne.s32.totalorder %s74, %s76
      %p80 = scmp.eq.s32.totalorder %s19, 0
      %p81 = por %p79, %p80
      %p82 = scmp.ne.s32.totalorder %s74, %s76
      %p83 = scmp.eq.s32.totalorder %s24, 3
      %p84 = por %p82, %p83
      %p85 = scmp.ne.s32.totalorder %s76, %s77
      %p86 = scmp.eq.s32.totalorder %s24, 0
      %p87 = por %p85, %p86
      %p88 = scmp.ne.s32.totalorder %s76, %s77
      %p89 = scmp.eq.s32.totalorder %s25, 3
      %p90 = por %p88, %p89
      %p92 = scmp.ne.s32.totalorder %s77, %s91
      %p93 = scmp.eq.s32.totalorder %s25, 0
      %p94 = por %p92, %p93
      %s96 = sadd.s32 %s95, 1
      %p99 = scmp.eq.s32.totalorder %s19, 3
      %p100 = scmp.ne.s32.totalorder %s95, %s97
      %p101 = scmp.eq.s32.totalorder %s19, 0
      %p102 = por %p100, %p101
      %p103 = scmp.ne.s32.totalorder %s95, %s97
      %p104 = scmp.eq.s32.totalorder %s24, 3
      %p105 = por %p103, %p104
      %p106 = scmp.ne.s32.totalorder %s97, %s98
      %p107 = scmp.eq.s32.totalorder %s24, 0
      %p108 = por %p106, %p107
      %p109 = scmp.ne.s32.totalorder %s97, %s98
      %p110 = scmp.eq.s32.totalorder %s25, 3
      %p111 = por %p109, %p110
      %p113 = scmp.ne.s32.totalorder %s98, %s112
      %p114 = scmp.eq.s32.totalorder %s25, 0
      %p115 = por %p113, %p114
      %s117 = sadd.s32 %s116, 1
      %p120 = scmp.eq.s32.totalorder %s19, 3
      %p121 = scmp.ne.s32.totalorder %s116, %s118
      %p122 = scmp.eq.s32.totalorder %s19, 0
      %p123 = por %p121, %p122
      %p124 = scmp.ne.s32.totalorder %s116, %s118
      %p125 = scmp.eq.s32.totalorder %s24, 3
      %p126 = por %p124, %p125
      %p127 = scmp.ne.s32.totalorder %s118, %s119
      %p128 = scmp.eq.s32.totalorder %s24, 0
      %p129 = por %p127, %p128
      %p130 = scmp.ne.s32.totalorder %s118, %s119
      %p131 = scmp.eq.s32.totalorder %s25, 3
      %p132 = por %p130, %p131
      %p134 = scmp.ne.s32.totalorder %s119, %s133
      %p135 = scmp.eq.s32.totalorder %s25, 0
      %p136 = por %p134, %p135
      %s138 = sadd.s32 %s137, 1
      %p141 = scmp.eq.s32.totalorder %s19, 3
      %p142 = scmp.ne.s32.totalorder %s137, %s139
      %p143 = scmp.eq.s32.totalorder %s19, 0
      %p144 = por %p142, %p143
      %p145 = scmp.ne.s32.totalorder %s137, %s139
      %p146 = scmp.eq.s32.totalorder %s24, 3
      %p147 = por %p145, %p146
      %p148 = scmp.ne.s32.totalorder %s139, %s140
      %p149 = scmp.eq.s32.totalorder %s24, 0
      %p150 = por %p148, %p149
      %p151 = scmp.ne.s32.totalorder %s139, %s140
      %p152 = scmp.eq.s32.totalorder %s25, 3
      %p153 = por %p151, %p152
      %p155 = scmp.ne.s32.totalorder %s140, %s154
      %p156 = scmp.eq.s32.totalorder %s25, 0
      %p157 = por %p155, %p156
      %s159 = sadd.s32 %s158, 1
      %p162 = scmp.eq.s32.totalorder %s19, 3
      %p163 = scmp.ne.s32.totalorder %s158, %s160
      %p164 = scmp.eq.s32.totalorder %s19, 0
      %p165 = por %p163, %p164
      %p166 = scmp.ne.s32.totalorder %s158, %s160
      %p167 = scmp.eq.s32.totalorder %s24, 3
      %p168 = por %p166, %p167
      %p169 = scmp.ne.s32.totalorder %s160, %s161
      %p170 = scmp.eq.s32.totalorder %s24, 0
      %p171 = por %p169, %p170
      %p172 = scmp.ne.s32.totalorder %s160, %s161
      %p173 = scmp.eq.s32.totalorder %s25, 3
      %p174 = por %p172, %p173
      %p176 = scmp.ne.s32.totalorder %s161, %s175
      %p177 = scmp.eq.s32.totalorder %s25, 0
      %p178 = por %p176, %p177
      %s179 = ssub.s32 %s19, %s26
      %p180 = scmp.eq.s32.totalorder %s179, 0
      %s182 = sadd.s32 %s181, 1
      %s183 = scalar_select %p180, %s181, %s182
      %p186 = pneg %p180
      %p187 = scmp.eq.s32.totalorder %s19, 3
      %p188 = por %p186, %p187
      %p189 = scmp.ne.s32.totalorder %s181, %s184
      %p190 = scmp.eq.s32.totalorder %s19, 0
      %p191 = por %p189, %p190
      %p192 = scmp.ne.s32.totalorder %s181, %s184
      %p193 = scmp.eq.s32.totalorder %s24, 3
      %p194 = por %p192, %p193
      %p195 = scmp.ne.s32.totalorder %s184, %s185
      %p196 = scmp.eq.s32.totalorder %s24, 0
      %p197 = por %p195, %p196
      %p198 = scmp.ne.s32.totalorder %s184, %s185
      %p199 = scmp.eq.s32.totalorder %s25, 3
      %p200 = por %p198, %p199
      %p202 = scmp.ne.s32.totalorder %s185, %s201
      %p203 = scmp.eq.s32.totalorder %s25, 0
      %p204 = por %p202, %p203
      %s205 = ssub.s32 %s19, %s26
      %p206 = scmp.eq.s32.totalorder %s205, 0
      %s208 = sadd.s32 %s207, 1
      %s209 = scalar_select %p206, %s207, %s208
      %p212 = pneg %p206
      %p213 = scmp.eq.s32.totalorder %s19, 3
      %p214 = por %p212, %p213
      %p215 = scmp.ne.s32.totalorder %s207, %s210
      %p216 = scmp.eq.s32.totalorder %s19, 0
      %p217 = por %p215, %p216
      %p218 = scmp.ne.s32.totalorder %s207, %s210
      %p219 = scmp.eq.s32.totalorder %s24, 3
      %p220 = por %p218, %p219
      %p221 = scmp.ne.s32.totalorder %s210, %s211
      %p222 = scmp.eq.s32.totalorder %s24, 0
      %p223 = por %p221, %p222
      %p224 = scmp.ne.s32.totalorder %s210, %s211
      %p225 = scmp.eq.s32.totalorder %s25, 3
      %p226 = por %p224, %p225
      %p228 = scmp.ne.s32.totalorder %s211, %s227
      %p229 = scmp.eq.s32.totalorder %s25, 0
      %p230 = por %p228, %p229
      %s231 = ssub.s32 %s19, %s26
      %p232 = scmp.eq.s32.totalorder %s231, 0
      %s234 = sadd.s32 %s233, 1
      %s235 = scalar_select %p232, %s233, %s234
      %p238 = pneg %p232
      %p239 = scmp.eq.s32.totalorder %s19, 3
      %p240 = por %p238, %p239
      %p241 = scmp.ne.s32.totalorder %s233, %s236
      %p242 = scmp.eq.s32.totalorder %s19, 0
      %p243 = por %p241, %p242
      %p244 = scmp.ne.s32.totalorder %s233, %s236
      %p245 = scmp.eq.s32.totalorder %s24, 3
      %p246 = por %p244, %p245
      %p247 = scmp.ne.s32.totalorder %s236, %s237
      %p248 = scmp.eq.s32.totalorder %s24, 0
      %p249 = por %p247, %p248
      %p250 = scmp.ne.s32.totalorder %s236, %s237
      %p251 = scmp.eq.s32.totalorder %s25, 3
      %p252 = por %p250, %p251
      %p254 = scmp.ne.s32.totalorder %s237, %s253
      %p255 = scmp.eq.s32.totalorder %s25, 0
      %p256 = por %p254, %p255
      %p257 = scmp.le.s32.totalorder 1, %s19
      %p258 = scmp.lt.s32.totalorder %s19, 5
      %p259 = pnand %p257, %p258
      %p260 = pneg %p259
      // Predicated region
      $region9: #{pointnet_encoder.6} parent=5 // pred_check
        _
      $region10: #{pointnet_encoder.6} parent=5 // pred_check_branch
        %262 = sbr.rel (%p259) target = $region12
      $region11: #{pointnet_encoder.6} parent=5 // pred_region
        %s263 = ssub.s32 %s19, 1
        // Predicated region
        $region13: #{pointnet_encoder.6} parent=11 // pred_check
          %p264 = pneg %p66
        $region14: #{pointnet_encoder.6} parent=11 // pred_check_branch
          %266 = sbr.rel (%p264) target = $region16
        $region15: #{pointnet_encoder.6} parent=11 // pred_region
          %268 = vsyncadd [#allocation3], 0
          %s270 = sshll.u32 %s1, 4
          %s271 = int_to_ptr.hbm [resolvable:$true] %s270
          %s272 = sshll.u32 [#allocation2], 4
          %s273 = int_to_ptr.vmem [resolvable:$true] %s272
          %275 = dma.hbm_to_vmem [thread:$0]  %s271, 64, %s273, [#allocation3]
        $region16: #{pointnet_encoder.6} parent=11 // pred_fallthru
          _
        // Predicated region
        $region17: #{pointnet_encoder.6} parent=11 // pred_check
          %p276 = pneg %p87
        $region18: #{pointnet_encoder.6} parent=11 // pred_check_branch
          %278 = sbr.rel (%p276) target = $region20
        $region19: #{pointnet_encoder.6} parent=11 // pred_region
          %280 = vsyncadd [#allocation5], 0
          %s282 = sshll.u32 %s2, 4
          %s283 = int_to_ptr.hbm [resolvable:$true] %s282
          %s284 = sshll.u32 [#allocation4], 4
          %s285 = int_to_ptr.vmem [resolvable:$true] %s284
          %287 = dma.hbm_to_vmem [thread:$0]  %s283, 16, %s285, [#allocation5]
        $region20: #{pointnet_encoder.6} parent=11 // pred_fallthru
          _
        // Predicated region
        $region21: #{pointnet_encoder.6} parent=11 // pred_check
          %p288 = pneg %p108
        $region22: #{pointnet_encoder.6} parent=11 // pred_check_branch
          %290 = sbr.rel (%p288) target = $region24
        $region23: #{pointnet_encoder.6} parent=11 // pred_region
          _
        $region24: #{pointnet_encoder.6} parent=11 // pred_fallthru
          _
        // Predicated region
        $region25: #{pointnet_encoder.6} parent=11 // pred_check
          %p291 = pneg %p129
        $region26: #{pointnet_encoder.6} parent=11 // pred_check_branch
          %293 = sbr.rel (%p291) target = $region28
        $region27: #{pointnet_encoder.6} parent=11 // pred_region
          _
        $region28: #{pointnet_encoder.6} parent=11 // pred_fallthru
          _
        // Predicated region
        $region29: #{pointnet_encoder.6} parent=11 // pred_check
          %p294 = pneg %p150
        $region30: #{pointnet_encoder.6} parent=11 // pred_check_branch
          %296 = sbr.rel (%p294) target = $region32
        $region31: #{pointnet_encoder.6} parent=11 // pred_region
          %298 = vsyncadd [#allocation5], 0
          %s299 = sshll.u32 %s5, 4
          %s300 = int_to_ptr.hbm [resolvable:$true] %s299
          %s301 = sshll.u32 [#allocation6], 4
          %s302 = int_to_ptr.vmem [resolvable:$true] %s301
          %307 = dma.hbm_to_vmem [thread:$0]  %s300, 1024, %s302, [#allocation5], 64, 64, 4
        $region32: #{pointnet_encoder.6} parent=11 // pred_fallthru
          _
        // Predicated region
        $region33: #{pointnet_encoder.6} parent=11 // pred_check
          %p308 = pneg %p171
        $region34: #{pointnet_encoder.6} parent=11 // pred_check_branch
          %310 = sbr.rel (%p308) target = $region36
        $region35: #{pointnet_encoder.6} parent=11 // pred_region
          %312 = vsyncadd [#allocation8], 0
          %s314 = sshll.u32 %s6, 4
          %s315 = int_to_ptr.hbm [resolvable:$true] %s314
          %s316 = sshll.u32 [#allocation7], 4
          %s317 = int_to_ptr.vmem [resolvable:$true] %s316
          %319 = dma.hbm_to_vmem [thread:$0]  %s315, 16, %s317, [#allocation8]
        $region36: #{pointnet_encoder.6} parent=11 // pred_fallthru
          _
      $region12: #{pointnet_encoder.6} parent=5 // pred_fallthru
        _
      %p320 = scmp.lt.s32.totalorder %s19, 4
      // Predicated region
      $region37: #{pointnet_encoder.6} parent=5 // pred_check
        %p321 = pneg %p320
      $region38: #{pointnet_encoder.6} parent=5 // pred_check_branch
        %323 = sbr.rel (%p321) target = $region40
      $region39: #{pointnet_encoder.6} parent=5 // pred_region
        // Predicated region
        $region41: #{pointnet_encoder.6} parent=39 // pred_check
          %p324 = pneg %p39
        $region42: #{pointnet_encoder.6} parent=39 // pred_check_branch
          %326 = sbr.rel (%p324) target = $region44
        $region43: #{pointnet_encoder.6} parent=39 // pred_region
          %s327 = smul.u32 6, %s19
          %s328 = ssub.s32 20, %s327
          %p329 = scmp.lt.s32.totalorder %s328, 6
          %s330 = scalar_select %p329, %s328, 6
          %s331 = smul.u32 8, %s330
          %p332 = scmp.lt.s32.totalorder %s327, 19
          %s333 = scalar_select %p332, %s327, 19
          %s334 = smul.addr %s333, 8
          %s335 = scalar_lea.vmem %s0, %s334
          %s336 = smul.u32 6, %s19
          %s337 = ssub.s32 20, %s336
          %p338 = scmp.lt.s32.totalorder %s337, 6
          %s339 = scalar_select %p338, %s337, 6
          %s340 = smul.u32 8, %s339
        $region44: #{pointnet_encoder.6} parent=39 // pred_fallthru
          _
      $region40: #{pointnet_encoder.6} parent=5 // pred_fallthru
        _
      %p341 = scmp.le.s32.totalorder 1, %s19
      %p342 = scmp.lt.s32.totalorder %s19, 5
      %p343 = pnand %p341, %p342
      %p344 = pneg %p343
      // Predicated region
      $region45: #{pointnet_encoder.6} parent=5 // pred_check
        _
      $region46: #{pointnet_encoder.6} parent=5 // pred_check_branch
        %346 = sbr.rel (%p343) target = $region48
      $region47: #{pointnet_encoder.6} parent=5 // pred_region
        %s347 = ssub.s32 %s19, 1
        // Predicated region
        $region49: #{pointnet_encoder.6} parent=47 // pred_check
          %p348 = pneg %p66
        $region50: #{pointnet_encoder.6} parent=47 // pred_check_branch
          %350 = sbr.rel (%p348) target = $region52
        $region51: #{pointnet_encoder.6} parent=47 // pred_region
          %352 = dma.done [#allocation3], 64
        $region52: #{pointnet_encoder.6} parent=47 // pred_fallthru
          _
        // Predicated region
        $region53: #{pointnet_encoder.6} parent=47 // pred_check
          %p353 = pneg %p87
        $region54: #{pointnet_encoder.6} parent=47 // pred_check_branch
          %355 = sbr.rel (%p353) target = $region56
        $region55: #{pointnet_encoder.6} parent=47 // pred_region
          %357 = dma.done [#allocation5], 16
        $region56: #{pointnet_encoder.6} parent=47 // pred_fallthru
          _
        // Predicated region
        $region57: #{pointnet_encoder.6} parent=47 // pred_check
          %p358 = pneg %p150
        $region58: #{pointnet_encoder.6} parent=47 // pred_check_branch
          %360 = sbr.rel (%p358) target = $region60
        $region59: #{pointnet_encoder.6} parent=47 // pred_region
          %362 = dma.done [#allocation5], 1024
        $region60: #{pointnet_encoder.6} parent=47 // pred_fallthru
          _
        // Predicated region
        $region61: #{pointnet_encoder.6} parent=47 // pred_check
          %p363 = pneg %p171
        $region62: #{pointnet_encoder.6} parent=47 // pred_check_branch
          %365 = sbr.rel (%p363) target = $region64
        $region63: #{pointnet_encoder.6} parent=47 // pred_region
          %367 = dma.done [#allocation8], 16
        $region64: #{pointnet_encoder.6} parent=47 // pred_fallthru
          _
        %s368 = smul.u32 6, %s24
        %s369 = ssub.s32 20, %s368
        %p370 = scmp.lt.s32.totalorder %s369, 6
        %s371 = scalar_select %p370, %s369, 6
        %s372 = smul.u32 8, %s371
        %p373 = scmp.lt.s32.totalorder %s368, 19
        %s374 = scalar_select %p373, %s368, 19
        %s375 = smul.addr %s374, 8
        %s376 = scalar_lea.vmem %s0, %s375
        %p377 = pneg %p45
        %p378 = pneg %p42
        %p379 = pneg %p66
        %p380 = pneg %p63
        %p381 = pneg %p87
        %p382 = pneg %p84
        %p383 = pneg %p108
        %p384 = pneg %p105
        %p385 = pneg %p129
        %p386 = pneg %p126
        %p387 = pneg %p150
        %p388 = pneg %p147
        %p389 = pneg %p171
        %p390 = pneg %p168
        %p391 = pneg %p197
        %p392 = pneg %p194
        %s393 = sand.u32 %s184, 1
        %s394 = sand.u32 %s184, 1
        %s395 = smul.addr %s394, 24
        %s396 = scalar_lea.vmem [#allocation9], %s395
        %p397 = pneg %p223
        %p398 = pneg %p220
        %p399 = scmp.lt.s32.totalorder %s24, 3
        %s400 = scalar_select %p399, %s24, 3
        %s401 = scalar_lea.vmem %s8, %s400
        %p402 = pneg %p249
        %p403 = pneg %p246
        %p404 = scmp.lt.s32.totalorder %s24, 3
        %s405 = scalar_select %p404, %s24, 3
        %s406 = scalar_lea.vmem %s9, %s405
        %s407 = smul.u32 6, %s24
        %s408 = ssub.s32 20, %s407
        %p409 = scmp.lt.s32.totalorder %s408, 6
        %s410 = scalar_select %p409, %s408, 6
        %s411 = smul.u32 8, %s410
        %p412 = scmp.lt.s32.totalorder %s407, 19
        %s413 = scalar_select %p412, %s407, 19
        %s414 = smul.addr %s413, 8
        %s415 = scalar_lea.vmem %s0, %s414
        %s416 = smul.u32 6, %s24
        %s417 = ssub.s32 20, %s416
        %p418 = scmp.lt.s32.totalorder %s417, 6
        %s419 = scalar_select %p418, %s417, 6
        %s420 = smul.u32 8, %s419
        %s421 = smul.u32 6, %s24
        %s422 = ssub.s32 20, %s421
        %p423 = scmp.lt.s32.totalorder %s422, 6
        %s424 = scalar_select %p423, %s422, 6
        %s425 = smul.u32 4, %s424
        %p426 = scmp.lt.s32.totalorder %s24, 3
        %s427 = scalar_select %p426, %s24, 3
        %s428 = scalar_lea.vmem %s8, %s427
        %p429 = scmp.lt.s32.totalorder %s24, 3
        %s430 = scalar_select %p429, %s24, 3
        %s431 = scalar_lea.vmem %s9, %s430
        %v432 = vld [vmem:[%s415] sm:$0xff]
        %v433 = vld [vmem:[%s415 + $0x8] sm:$0xff]
        %v434 = vld [vmem:[%s415 + $0x10] sm:$0xff]
        %v435 = vld [vmem:[%s415 + $0x18] sm:$0xff]
        %v436 = vld [vmem:[%s415 + $0x20] sm:$0xff]
        %v437 = vld [vmem:[%s415 + $0x28] sm:$0xff]
        %v438 = vld [vmem:[#allocation2] sm:$0x1]
        %440 = vset.pattern.permute.xlu0 0
        %441 = vperm.xlu0 %440, %v432
        %v442 = vpop.permute.xlu0 %441
        %445 = vset.pattern.permute.xlu0 0
        %446 = vperm.xlu0 %445, %v433
        %v447 = vpop.permute.xlu0 %446
        %450 = vset.pattern.permute.xlu0 0
        %451 = vperm.xlu0 %450, %v434
        %v452 = vpop.permute.xlu0 %451
        %455 = vset.pattern.permute.xlu0 0
        %456 = vperm.xlu0 %455, %v435
        %v457 = vpop.permute.xlu0 %456
        %460 = vset.pattern.permute.xlu0 0
        %461 = vperm.xlu0 %460, %v436
        %v462 = vpop.permute.xlu0 %461
        %465 = vset.pattern.permute.xlu0 0
        %466 = vperm.xlu0 %465, %v437
        %v467 = vpop.permute.xlu0 %466
        %v469 = vperm.slane %v438, 0
        %v470 = vmul.f32 %v442, %v469
        %v471 = vmul.f32 %v447, %v469
        %v472 = vmul.f32 %v452, %v469
        %v473 = vmul.f32 %v457, %v469
        %v474 = vmul.f32 %v462, %v469
        %v475 = vmul.f32 %v467, %v469
        %v476 = vld [vmem:[#allocation2 + $0x1] sm:$0x1]
        %477 = vset.pattern.permute.xlu0 1
        %478 = vperm.xlu0 %477, %v432
        %v479 = vpop.permute.xlu0 %478
        %481 = vset.pattern.permute.xlu0 1
        %482 = vperm.xlu0 %481, %v433
        %v483 = vpop.permute.xlu0 %482
        %485 = vset.pattern.permute.xlu0 1
        %486 = vperm.xlu0 %485, %v434
        %v487 = vpop.permute.xlu0 %486
        %489 = vset.pattern.permute.xlu0 1
        %490 = vperm.xlu0 %489, %v435
        %v491 = vpop.permute.xlu0 %490
        %493 = vset.pattern.permute.xlu0 1
        %494 = vperm.xlu0 %493, %v436
        %v495 = vpop.permute.xlu0 %494
        %497 = vset.pattern.permute.xlu0 1
        %498 = vperm.xlu0 %497, %v437
        %v499 = vpop.permute.xlu0 %498
        %v501 = vperm.slane %v476, 0
        %v502 = vmul.f32 %v479, %v501
        %v503 = vmul.f32 %v483, %v501
        %v504 = vmul.f32 %v487, %v501
        %v505 = vmul.f32 %v491, %v501
        %v506 = vmul.f32 %v495, %v501
        %v507 = vmul.f32 %v499, %v501
        %v508 = vadd.f32 %v470, %v502
        %v509 = vadd.f32 %v471, %v503
        %v510 = vadd.f32 %v472, %v504
        %v511 = vadd.f32 %v473, %v505
        %v512 = vadd.f32 %v474, %v506
        %v513 = vadd.f32 %v475, %v507
        %v514 = vld [vmem:[#allocation2 + $0x2] sm:$0x1]
        %515 = vset.pattern.permute.xlu0 2
        %516 = vperm.xlu0 %515, %v432
        %v517 = vpop.permute.xlu0 %516
        %519 = vset.pattern.permute.xlu0 2
        %520 = vperm.xlu0 %519, %v433
        %v521 = vpop.permute.xlu0 %520
        %523 = vset.pattern.permute.xlu0 2
        %524 = vperm.xlu0 %523, %v434
        %v525 = vpop.permute.xlu0 %524
        %527 = vset.pattern.permute.xlu0 2
        %528 = vperm.xlu0 %527, %v435
        %v529 = vpop.permute.xlu0 %528
        %531 = vset.pattern.permute.xlu0 2
        %532 = vperm.xlu0 %531, %v436
        %v533 = vpop.permute.xlu0 %532
        %535 = vset.pattern.permute.xlu0 2
        %536 = vperm.xlu0 %535, %v437
        %v537 = vpop.permute.xlu0 %536
        %v539 = vperm.slane %v514, 0
        %v540 = vmul.f32 %v517, %v539
        %v541 = vmul.f32 %v521, %v539
        %v542 = vmul.f32 %v525, %v539
        %v543 = vmul.f32 %v529, %v539
        %v544 = vmul.f32 %v533, %v539
        %v545 = vmul.f32 %v537, %v539
        %v546 = vadd.f32 %v508, %v540
        %v547 = vadd.f32 %v509, %v541
        %v548 = vadd.f32 %v510, %v542
        %v549 = vadd.f32 %v511, %v543
        %v550 = vadd.f32 %v512, %v544
        %v551 = vadd.f32 %v513, %v545
        %v552 = vld [vmem:[#allocation4] sm:$0x1]
        %v554 = vperm.slane %v552, 0
        %v556 = vadd.f32 %v546, %v554
        %v557 = vadd.f32 %v547, %v554
        %v558 = vadd.f32 %v548, %v554
        %v559 = vadd.f32 %v549, %v554
        %v560 = vadd.f32 %v550, %v554
        %v561 = vadd.f32 %v551, %v554
        %v562 = vld [vmem:[%s3] sm:$0x1]
        %v564 = vperm.slane %v562, 0
        %v566 = vmul.f32 %v556, %v564
        %v567 = vmul.f32 %v557, %v564
        %v568 = vmul.f32 %v558, %v564
        %v569 = vmul.f32 %v559, %v564
        %v570 = vmul.f32 %v560, %v564
        %v571 = vmul.f32 %v561, %v564
        %v572 = vld [vmem:[%s4] sm:$0x1]
        %v574 = vperm.slane %v572, 0
        %v576 = vadd.f32 %v566, %v574
        %v577 = vadd.f32 %v567, %v574
        %v578 = vadd.f32 %v568, %v574
        %v579 = vadd.f32 %v569, %v574
        %v580 = vadd.f32 %v570, %v574
        %v581 = vadd.f32 %v571, %v574
        %v582 = vmax.f32 %v576, 0.0
        %v583 = vmax.f32 %v577, 0.0
        %v584 = vmax.f32 %v578, 0.0
        %v585 = vmax.f32 %v579, 0.0
        %v586 = vmax.f32 %v580, 0.0
        %v587 = vmax.f32 %v581, 0.0
        %v588 = vpack.c.bf16 %v583, %v582
        %v589 = vpack.c.bf16 %v585, %v584
        %v590 = vpack.c.bf16 %v587, %v586
        %v591 = vld [vmem:[#allocation6] sm:$0xf]
        %v592 = vld [vmem:[#allocation6 + $0x4] sm:$0xf]
        %v593 = vld [vmem:[#allocation6 + $0x8] sm:$0xf]
        %v594 = vld [vmem:[#allocation6 + $0xc] sm:$0xf]
        %v595 = vld [vmem:[#allocation6 + $0x10] sm:$0xf]
        %v596 = vld [vmem:[#allocation6 + $0x14] sm:$0xf]
        %v597 = vld [vmem:[#allocation6 + $0x18] sm:$0xf]
        %v598 = vld [vmem:[#allocation6 + $0x1c] sm:$0xf]
        %v599 = vld [vmem:[#allocation6 + $0x20] sm:$0xf]
        %v600 = vld [vmem:[#allocation6 + $0x24] sm:$0xf]
        %v601 = vld [vmem:[#allocation6 + $0x28] sm:$0xf]
        %v602 = vld [vmem:[#allocation6 + $0x2c] sm:$0xf]
        %v603 = vld [vmem:[#allocation6 + $0x30] sm:$0xf]
        %v604 = vld [vmem:[#allocation6 + $0x34] sm:$0xf]
        %v605 = vld [vmem:[#allocation6 + $0x38] sm:$0xf]
        %v606 = vld [vmem:[#allocation6 + $0x3c] sm:$0xf]
        %v607 = vld [vmem:[#allocation7] sm:$0x1]
        %v609 = vperm.slane %v607, 0
        %v627 = vunpack.c.l.b16 %v591
        %v628 = vunpack.c.l.b16 %v592
        %v629 = vunpack.c.l.b16 %v593
        %v630 = vunpack.c.l.b16 %v594
        %v631 = vunpack.c.l.b16 %v595
        %v632 = vunpack.c.l.b16 %v596
        %v633 = vunpack.c.l.b16 %v597
        %v634 = vunpack.c.l.b16 %v598
        %v635 = vunpack.c.l.b16 %v599
        %v636 = vunpack.c.l.b16 %v600
        %v637 = vunpack.c.l.b16 %v601
        %v638 = vunpack.c.l.b16 %v602
        %v639 = vunpack.c.l.b16 %v603
        %v640 = vunpack.c.l.b16 %v604
        %v641 = vunpack.c.l.b16 %v605
        %v642 = vunpack.c.l.b16 %v606
        %v643 = vpack.c.b16 %v628, %v627
        %v644 = vpack.c.b16 %v630, %v629
        %v645 = vpack.c.b16 %v632, %v631
        %v646 = vpack.c.b16 %v634, %v633
        %v647 = vpack.c.b16 %v636, %v635
        %v648 = vpack.c.b16 %v638, %v637
        %v649 = vpack.c.b16 %v640, %v639
        %v650 = vpack.c.b16 %v642, %v641
        %659 = vmatpush.bf16.msra.mxu0 %v650
        %660 = vmatpush.bf16.msra.mxu0 %v649
        %661 = vmatpush.bf16.msra.mxu0 %v648
        %662 = vmatpush.bf16.msra.mxu0 %v647
        %663 = vmatpush.bf16.msra.mxu0 %v646
        %664 = vmatpush.bf16.msra.mxu0 %v645
        %665 = vmatpush.bf16.msra.mxu0 %v644
        %666 = vmatpush.bf16.msra.mxu0 %v643
        %667 = vmatmul.bf16.gmra.mxu0 %v588
        %v668 = vpop.f32.mrf.mxu0
        %v669 = vadd.f32 %v609, %v668
        %v670 = vpop.f32.mrf.mxu0
        %v671 = vadd.f32 %v609, %v670
        %672 = vmatmul.bf16.gmra.mxu0 %v589
        %v673 = vpop.f32.mrf.mxu0
        %v674 = vadd.f32 %v609, %v673
        %v675 = vpop.f32.mrf.mxu0
        %v676 = vadd.f32 %v609, %v675
        %677 = vmatmul.bf16.gmra.mxu0 %v590
        %v678 = vpop.f32.mrf.mxu0
        %v679 = vadd.f32 %v609, %v678
        %v680 = vpop.f32.mrf.mxu0
        %v681 = vadd.f32 %v609, %v680
        %682 = vdwg.mxu0
        %v683 = vpack.c.bf16 %v669, %v669
        %v684 = vpack.c.bf16 %v671, %v671
        %v685 = vpack.c.bf16 %v674, %v674
        %v686 = vpack.c.bf16 %v676, %v676
        %v687 = vpack.c.bf16 %v679, %v679
        %v688 = vpack.c.bf16 %v681, %v681
        %689 = vst [vmem:[%s396] sm:$0xf] %v683
        %690 = vst [vmem:[%s396 + $0x4] sm:$0xf] %v684
        %691 = vst [vmem:[%s396 + $0x8] sm:$0xf] %v685
        %692 = vst [vmem:[%s396 + $0xc] sm:$0xf] %v686
        %693 = vst [vmem:[%s396 + $0x10] sm:$0xf] %v687
        %694 = vst [vmem:[%s396 + $0x14] sm:$0xf] %v688
        %s695 = smul.u32 %s24, 48
        %v696 = vlaneseq
        %v697 = vshrl.u32 %v696, 7
        %v698 = vadd.s32 %v697, 8
        %v699 = vadd.s32 %v697, 16
        %v700 = vadd.s32 %v697, 24
        %v701 = vadd.s32 %v697, 32
        %v702 = vadd.s32 %v697, 40
        %v703 = vstv %s695
        %v704 = vadd.s32 %v697, %v703
        %v705 = vadd.s32 %v698, %v703
        %v706 = vadd.s32 %v699, %v703
        %v707 = vadd.s32 %v700, %v703
        %v708 = vadd.s32 %v701, %v703
        %v709 = vadd.s32 %v702, %v703
        %vm710 = vcmp.lt.s32.totalorder %v704, 160
        %vm711 = vcmp.lt.s32.totalorder %v705, 160
        %vm712 = vcmp.lt.s32.totalorder %v706, 160
        %vm713 = vcmp.lt.s32.totalorder %v707, 160
        %vm714 = vcmp.lt.s32.totalorder %v708, 160
        %vm715 = vcmp.lt.s32.totalorder %v709, 160
        %v716 = vsel %vm710, %v669, 0.0
        %v717 = vsel %vm711, %v671, 0.0
        %v718 = vsel %vm712, %v674, 0.0
        %v719 = vsel %vm713, %v676, 0.0
        %v720 = vsel %vm714, %v679, 0.0
        %v721 = vsel %vm715, %v681, 0.0
        %v722 = vadd.f32 %v716, %v717
        %v723 = vadd.f32 %v722, %v718
        %v724 = vadd.f32 %v723, %v719
        %v725 = vadd.f32 %v724, %v720
        %v726 = vadd.f32 %v725, %v721
        %v727 = vrot.slane %v726, 4
        %v728 = vadd.f32 %v726, %v727
        %v729 = vrot.slane %v728, 2
        %v730 = vadd.f32 %v728, %v729
        %v731 = vrot.slane %v730, 1
        %v732 = vadd.f32 %v730, %v731
        %733 = vst [vmem:[%s428] sm:$0x1] %v732
        %v734 = vmul.f32 %v716, %v716
        %v735 = vmul.f32 %v717, %v717
        %v736 = vmul.f32 %v718, %v718
        %v737 = vmul.f32 %v719, %v719
        %v738 = vmul.f32 %v720, %v720
        %v739 = vmul.f32 %v721, %v721
        %v740 = vadd.f32 %v734, %v735
        %v741 = vadd.f32 %v740, %v736
        %v742 = vadd.f32 %v741, %v737
        %v743 = vadd.f32 %v742, %v738
        %v744 = vadd.f32 %v743, %v739
        %v745 = vrot.slane %v744, 4
        %v746 = vadd.f32 %v744, %v745
        %v747 = vrot.slane %v746, 2
        %v748 = vadd.f32 %v746, %v747
        %v749 = vrot.slane %v748, 1
        %v750 = vadd.f32 %v748, %v749
        %751 = vst [vmem:[%s431] sm:$0x1] %v750
        %s752 = sand.u32 %s184, 1
        %s753 = sand.u32 %s184, 1
        %s754 = smul.addr %s753, 24
        %s755 = scalar_lea.vmem [#allocation9], %s754
        %p756 = scmp.lt.s32.totalorder %s24, 3
        %s757 = scalar_select %p756, %s24, 3
        %s758 = scalar_lea.vmem %s8, %s757
        %p759 = scmp.lt.s32.totalorder %s24, 3
        %s760 = scalar_select %p759, %s24, 3
        %s761 = scalar_lea.vmem %s9, %s760
        // Predicated region
        $region65: #{pointnet_encoder.6} parent=47 // pred_check
          %p762 = pneg %p194
        $region66: #{pointnet_encoder.6} parent=47 // pred_check_branch
          %764 = sbr.rel (%p762) target = $region68
        $region67: #{pointnet_encoder.6} parent=47 // pred_region
          %s765 = smul.u32 6, %s24
          %s766 = ssub.s32 20, %s765
          %p767 = scmp.lt.s32.totalorder %s766, 6
          %s768 = scalar_select %p767, %s766, 6
          %s769 = smul.u32 4, %s768
          %p770 = scmp.ne.s32.totalorder 0, %s769
          %s771 = smul.addr %s765, 4
          %s772 = scalar_lea.vmem %s7, %s771
          // Predicated region
          $region69: #{pointnet_encoder.6} parent=67 // pred_check
            %p773 = pneg %p770
          $region70: #{pointnet_encoder.6} parent=67 // pred_check_branch
            %775 = sbr.rel (%p773) target = $region72
          $region71: #{pointnet_encoder.6} parent=67 // pred_region
            // Predicated region
            $region73: #{pointnet_encoder.6} parent=71 // pred_check
              _
            $region74: #{pointnet_encoder.6} parent=71 // pred_check_branch
              %777 = sbr.rel target = $region76
            $region75: #{pointnet_encoder.6} parent=71 // pred_region
              // Predicated region
              $region95: #{pointnet_encoder.6} parent=75 // pred_check
                _
              $region96: #{pointnet_encoder.6} parent=75 // pred_check_branch
                %838 = sbr.rel (0) target = $region98
              $region97: #{pointnet_encoder.6} parent=75 // pred_region
                %s840 = ssub.s32 16, 1
                %s841 = sdiv.u32.pop %s768, 6
                %s842 = srem.u32.pop %s768, 6
                // While loop
                $region99: #{pointnet_encoder.6} parent=97 // loop_pre_header
                  _
                $region100: #{pointnet_encoder.6} parent=97 // loop_header
                  %s844 = sphi 0, %s846
                  %p845 = scmp.ge.s32.totalorder %s844, %s841
                  %s849 = sphi 0, %s866
                  %s850 = sphi %s755, %s869
                  %s851 = sphi %s772, %s870
                $region101: #{pointnet_encoder.6} parent=97 // loop_header_branch
                  %848 = sbr.rel (%p845) target = $region105
                $region102: #{pointnet_encoder.6} parent=97 // loop_body
                  %v852 = vld [vmem:[%s850] sm:%s840]
                  %853 = vst [vmem:[%s851] sm:%s840] %v852
                  %v854 = vld [vmem:[%s850 + $0x4] sm:%s840]
                  %855 = vst [vmem:[%s851 + $0x4] sm:%s840] %v854
                  %v856 = vld [vmem:[%s850 + $0x8] sm:%s840]
                  %857 = vst [vmem:[%s851 + $0x8] sm:%s840] %v856
                  %v858 = vld [vmem:[%s850 + $0xc] sm:%s840]
                  %859 = vst [vmem:[%s851 + $0xc] sm:%s840] %v858
                  %v860 = vld [vmem:[%s850 + $0x10] sm:%s840]
                  %861 = vst [vmem:[%s851 + $0x10] sm:%s840] %v860
                  %v862 = vld [vmem:[%s850 + $0x14] sm:%s840]
                  %863 = vst [vmem:[%s851 + $0x14] sm:%s840] %v862
                  %s864 = sadd.s32 1, %s849
                  %p865 = scmp.ge.s32.totalorder %s864, %s841
                  %s866 = scalar_select %p865, 0, %s864
                  %s867 = smul.u32 %s866, 24
                  %s868 = smul.u32 %s866, 24
                  %s869 = scalar_lea.vmem %s755, %s867 [#allocation9]
                  %s870 = scalar_lea.vmem %s772, %s868
                $region103: #{pointnet_encoder.6} parent=97 // loop_footer
                  %s846 = sadd.s32 %s844, 1
                $region104: #{pointnet_encoder.6} parent=97 // loop_footer_branch
                  %843 = sbr.rel target = $region100
                $region105: #{pointnet_encoder.6} parent=97 // loop_exit
                  _
                %s871 = sdiv.u32.pop %s768, 6
                %s872 = srem.u32.pop %s768, 6
                %s873 = smul.u32 %s871, 6
                %s874 = smul.u32 4, %s873
                %s875 = scalar_lea.vmem %s755, %s874 [#allocation9]
                %s876 = smul.u32 4, %s873
                %s877 = scalar_lea.vmem %s772, %s876
                // While loop
                $region106: #{pointnet_encoder.6} parent=97 // loop_pre_header
                  _
                $region107: #{pointnet_encoder.6} parent=97 // loop_header
                  %s879 = sphi 0, %s881
                  %p880 = scmp.ge.s32.totalorder %s879, %s872
                  %s884 = sphi 0, %s891
                  %s885 = sphi %s875, %s894
                  %s886 = sphi %s877, %s895
                $region108: #{pointnet_encoder.6} parent=97 // loop_header_branch
                  %883 = sbr.rel (%p880) target = $region112
                $region109: #{pointnet_encoder.6} parent=97 // loop_body
                  %v887 = vld [vmem:[%s885] sm:%s840]
                  %888 = vst [vmem:[%s886] sm:%s840] %v887
                  %s889 = sadd.s32 1, %s884
                  %p890 = scmp.ge.s32.totalorder %s889, %s872
                  %s891 = scalar_select %p890, 0, %s889
                  %s892 = smul.u32 %s891, 4
                  %s893 = smul.u32 %s891, 4
                  %s894 = scalar_lea.vmem %s875, %s892 [#allocation9]
                  %s895 = scalar_lea.vmem %s877, %s893
                $region110: #{pointnet_encoder.6} parent=97 // loop_footer
                  %s881 = sadd.s32 %s879, 1
                $region111: #{pointnet_encoder.6} parent=97 // loop_footer_branch
                  %878 = sbr.rel target = $region107
                $region112: #{pointnet_encoder.6} parent=97 // loop_exit
                  _
              $region98: #{pointnet_encoder.6} parent=75 // pred_fallthru
                _
            $region76: #{pointnet_encoder.6} parent=71 // pred_fallthru
              _
            // Predicated region
            $region77: #{pointnet_encoder.6} parent=71 // pred_check
              _
            $region78: #{pointnet_encoder.6} parent=71 // pred_check_branch
              %779 = sbr.rel (0) target = $region80
            $region79: #{pointnet_encoder.6} parent=71 // pred_region
              %s781 = ssub.s32 16, 1
              %s782 = sdiv.u32.pop %s768, 6
              %s783 = srem.u32.pop %s768, 6
              // While loop
              $region81: #{pointnet_encoder.6} parent=79 // loop_pre_header
                _
              $region82: #{pointnet_encoder.6} parent=79 // loop_header
                %s785 = sphi 0, %s787
                %p786 = scmp.ge.s32.totalorder %s785, %s782
                %s790 = sphi 0, %s807
                %s791 = sphi %s755, %s810
                %s792 = sphi %s772, %s811
              $region83: #{pointnet_encoder.6} parent=79 // loop_header_branch
                %789 = sbr.rel (%p786) target = $region87
              $region84: #{pointnet_encoder.6} parent=79 // loop_body
                %v793 = vld [vmem:[%s791] sm:%s781]
                %794 = vst [vmem:[%s792] sm:%s781] %v793
                %v795 = vld [vmem:[%s791 + $0x4] sm:%s781]
                %796 = vst [vmem:[%s792 + $0x4] sm:%s781] %v795
                %v797 = vld [vmem:[%s791 + $0x8] sm:%s781]
                %798 = vst [vmem:[%s792 + $0x8] sm:%s781] %v797
                %v799 = vld [vmem:[%s791 + $0xc] sm:%s781]
                %800 = vst [vmem:[%s792 + $0xc] sm:%s781] %v799
                %v801 = vld [vmem:[%s791 + $0x10] sm:%s781]
                %802 = vst [vmem:[%s792 + $0x10] sm:%s781] %v801
                %v803 = vld [vmem:[%s791 + $0x14] sm:%s781]
                %804 = vst [vmem:[%s792 + $0x14] sm:%s781] %v803
                %s805 = sadd.s32 1, %s790
                %p806 = scmp.ge.s32.totalorder %s805, %s782
                %s807 = scalar_select %p806, 0, %s805
                %s808 = smul.u32 %s807, 24
                %s809 = smul.u32 %s807, 24
                %s810 = scalar_lea.vmem %s755, %s808 [#allocation9]
                %s811 = scalar_lea.vmem %s772, %s809
              $region85: #{pointnet_encoder.6} parent=79 // loop_footer
                %s787 = sadd.s32 %s785, 1
              $region86: #{pointnet_encoder.6} parent=79 // loop_footer_branch
                %784 = sbr.rel target = $region82
              $region87: #{pointnet_encoder.6} parent=79 // loop_exit
                _
              %s812 = sdiv.u32.pop %s768, 6
              %s813 = srem.u32.pop %s768, 6
              %s814 = smul.u32 %s812, 6
              %s815 = smul.u32 4, %s814
              %s816 = scalar_lea.vmem %s755, %s815 [#allocation9]
              %s817 = smul.u32 4, %s814
              %s818 = scalar_lea.vmem %s772, %s817
              // While loop
              $region88: #{pointnet_encoder.6} parent=79 // loop_pre_header
                _
              $region89: #{pointnet_encoder.6} parent=79 // loop_header
                %s820 = sphi 0, %s822
                %p821 = scmp.ge.s32.totalorder %s820, %s813
                %s825 = sphi 0, %s832
                %s826 = sphi %s816, %s835
                %s827 = sphi %s818, %s836
              $region90: #{pointnet_encoder.6} parent=79 // loop_header_branch
                %824 = sbr.rel (%p821) target = $region94
              $region91: #{pointnet_encoder.6} parent=79 // loop_body
                %v828 = vld [vmem:[%s826] sm:%s781]
                %829 = vst [vmem:[%s827] sm:%s781] %v828
                %s830 = sadd.s32 1, %s825
                %p831 = scmp.ge.s32.totalorder %s830, %s813
                %s832 = scalar_select %p831, 0, %s830
                %s833 = smul.u32 %s832, 4
                %s834 = smul.u32 %s832, 4
                %s835 = scalar_lea.vmem %s816, %s833 [#allocation9]
                %s836 = scalar_lea.vmem %s818, %s834
              $region92: #{pointnet_encoder.6} parent=79 // loop_footer
                %s822 = sadd.s32 %s820, 1
              $region93: #{pointnet_encoder.6} parent=79 // loop_footer_branch
                %819 = sbr.rel target = $region89
              $region94: #{pointnet_encoder.6} parent=79 // loop_exit
                _
            $region80: #{pointnet_encoder.6} parent=71 // pred_fallthru
              _
          $region72: #{pointnet_encoder.6} parent=67 // pred_fallthru
            _
          %896 = vnop
        $region68: #{pointnet_encoder.6} parent=47 // pred_fallthru
          _
        // Predicated region
        $region113: #{pointnet_encoder.6} parent=47 // pred_check
          %p897 = pneg %p220
        $region114: #{pointnet_encoder.6} parent=47 // pred_check_branch
          %899 = sbr.rel (%p897) target = $region116
        $region115: #{pointnet_encoder.6} parent=47 // pred_region
          _
        $region116: #{pointnet_encoder.6} parent=47 // pred_fallthru
          _
        // Predicated region
        $region117: #{pointnet_encoder.6} parent=47 // pred_check
          %p900 = pneg %p246
        $region118: #{pointnet_encoder.6} parent=47 // pred_check_branch
          %902 = sbr.rel (%p900) target = $region120
        $region119: #{pointnet_encoder.6} parent=47 // pred_region
          _
        $region120: #{pointnet_encoder.6} parent=47 // pred_fallthru
          _
      $region48: #{pointnet_encoder.6} parent=5 // pred_fallthru
        _
      %p903 = scmp.le.s32.totalorder 2, %s19
      // Predicated region
      $region121: #{pointnet_encoder.6} parent=5 // pred_check
        %p904 = pneg %p903
      $region122: #{pointnet_encoder.6} parent=5 // pred_check_branch
        %906 = sbr.rel (%p904) target = $region124
      $region123: #{pointnet_encoder.6} parent=5 // pred_region
        %s907 = ssub.s32 %s19, 2
        // Predicated region
        $region125: #{pointnet_encoder.6} parent=123 // pred_check
          %p908 = pneg %p200
        $region126: #{pointnet_encoder.6} parent=123 // pred_check_branch
          %910 = sbr.rel (%p908) target = $region128
        $region127: #{pointnet_encoder.6} parent=123 // pred_region
          %s911 = sand.u32 %s185, 1
          %s912 = sand.u32 %s185, 1
          %s913 = smul.addr %s912, 24
          %s914 = scalar_lea.vmem [#allocation9], %s913
        $region128: #{pointnet_encoder.6} parent=123 // pred_fallthru
          _
        // Predicated region
        $region129: #{pointnet_encoder.6} parent=123 // pred_check
          %p915 = pneg %p226
        $region130: #{pointnet_encoder.6} parent=123 // pred_check_branch
          %917 = sbr.rel (%p915) target = $region132
        $region131: #{pointnet_encoder.6} parent=123 // pred_region
          %p918 = scmp.lt.s32.totalorder %s25, 3
          %s919 = scalar_select %p918, %s25, 3
          %s920 = scalar_lea.vmem %s8, %s919
        $region132: #{pointnet_encoder.6} parent=123 // pred_fallthru
          _
        // Predicated region
        $region133: #{pointnet_encoder.6} parent=123 // pred_check
          %p921 = pneg %p252
        $region134: #{pointnet_encoder.6} parent=123 // pred_check_branch
          %923 = sbr.rel (%p921) target = $region136
        $region135: #{pointnet_encoder.6} parent=123 // pred_region
          %p924 = scmp.lt.s32.totalorder %s25, 3
          %s925 = scalar_select %p924, %s25, 3
          %s926 = scalar_lea.vmem %s9, %s925
        $region136: #{pointnet_encoder.6} parent=123 // pred_fallthru
          _
      $region124: #{pointnet_encoder.6} parent=5 // pred_fallthru
        _
    $region6: #{pointnet_encoder.6} parent=1 // loop_footer
      %s23 = sadd.s32 1, %s19
    $region7: #{pointnet_encoder.6} parent=1 // loop_footer_branch
      %18 = sbr.rel target = $region3
    $region8: #{pointnet_encoder.6} parent=1 // loop_exit
      _
    %927 = vsyncpa [#allocation3], 1
    %s928 = scalar_lea.sflag [#allocation3], 1
    %929 = vsyncpa %s928, 1
    %930 = vsyncpa [#allocation5], 1
    %931 = vsyncpa [#allocation8], 1

// kernel: pointnet_encoder.7
$region0: #{pointnet_encoder.7}
  #allocation0 [shape = 'u32[]', space=smem, size = 0x4, offset = 0x4, fixed_abs, tag = 'smem constant byte address 0x4 - core index']
  #allocation1 [shape = 'u32[72,128]{1,0:T(1,128)}', space=vmem, size = 0x9000, scoped, tag = 'internal scratch']
  %s0 = inlined_call_operand.vmem [shape: bf16[160,128], index: 0, kind: input, shape index: {}]
  %s1 = inlined_call_operand.vmem [shape: f32[1,128], index: 1, kind: input, shape index: {}]
  %s2 = inlined_call_operand.vmem [shape: f32[1,128], index: 2, kind: input, shape index: {}]
  %s3 = inlined_call_operand.hbm [shape: bf16[128,256], index: 3, kind: input, shape index: {}]
  %s4 = inlined_call_operand.hbm [shape: f32[1,256], index: 4, kind: input, shape index: {}]
  %s5 = inlined_call_operand.vmem [shape: bf16[160,256], index: 5, kind: output, shape index: {0}]
  %s6 = inlined_call_operand.vmem [shape: f32[4,1,256], index: 6, kind: output, shape index: {1}]
  %s7 = inlined_call_operand.vmem [shape: f32[4,1,256], index: 7, kind: output, shape index: {2}]
  %8 = xla_tuple %s5, %s6, %s7
  %s9 = sld [smem:[#allocation0]]
  $region125: #{pointnet_encoder.7} parent=0
    _
  %s11 = ssub.s32 1, %s9
  %s12 = scalar_select 0, %s11, %s9
  $region1: #{pointnet_encoder.7} parent=0
    #allocation2 [shape = 'u8[65536]{0}', space=vmem, size = 0x10000, scoped, tag = 'input window, operand 3, single buffered']
    #allocation3 [shape = 's32[2]{0}', space=sflag, size = 0x8, scoped, tag = 'scoped memory for pointnet_encoder.7']
    #allocation4 [shape = 'u8[1024]{0}', space=vmem, size = 0x400, scoped, tag = 'input window, operand 4, single buffered']
    #allocation5 [shape = 's32[1]{0}', space=sflag, size = 0x4, scoped, tag = 'scoped memory for pointnet_encoder.7']
    #allocation6 [shape = 'u8[49152]{0}', space=vmem, size = 0xc000, scoped, tag = 'output window, operand 0']
    %13 = vsyncpa [#allocation3], 0
    %14 = vsyncpa [#allocation5], 0
    loop: start=0, step=1, limit=6
    $region2: #{pointnet_encoder.7} parent=1 // loop_pre_header
      _
    $region3: #{pointnet_encoder.7} parent=1 // loop_header
      %s16 = sphi 0, %s20
      %p17 = scmp.ge.s32.totalorder %s16, 6
      %s26 = sphi 0, %s28
      %s29 = sphi 0, %s26
      %s30 = sphi 0, %s29
      %s46 = sphi 0, %s30
      %s50 = sphi 0, %s50
      %s52 = sphi 0, %s50
      %s53 = sphi 0, %s52
      %s67 = sphi 0, %s53
      %s71 = sphi 0, %s71
      %s73 = sphi 0, %s71
      %s74 = sphi 0, %s73
      %s88 = sphi 0, %s74
      %s92 = sphi 0, %s92
      %s94 = sphi 0, %s92
      %s95 = sphi 0, %s94
      %s109 = sphi 0, %s95
      %s113 = sphi 0, %s113
      %s115 = sphi 0, %s113
      %s116 = sphi 0, %s115
      %s130 = sphi 0, %s116
      %s136 = sphi 0, %s138
      %s139 = sphi 0, %s136
      %s140 = sphi 0, %s139
      %s156 = sphi 0, %s140
      %s162 = sphi 0, %s164
      %s165 = sphi 0, %s162
      %s166 = sphi 0, %s165
      %s182 = sphi 0, %s166
      %s188 = sphi 0, %s190
      %s191 = sphi 0, %s188
      %s192 = sphi 0, %s191
      %s208 = sphi 0, %s192
    $region4: #{pointnet_encoder.7} parent=1 // loop_header_branch
      %19 = sbr.rel (%p17) target = $region8
    $region5: #{pointnet_encoder.7} parent=1 // loop_body
      %s21 = ssub.s32 %s16, 1
      %s22 = ssub.s32 %s16, 2
      %s23 = sadd.s32 %s16, 1
      %s24 = ssub.s32 %s16, %s23
      %p25 = scmp.eq.s32.totalorder %s24, 0
      %s27 = sadd.s32 %s26, 1
      %s28 = scalar_select %p25, %s26, %s27
      %p31 = pneg %p25
      %p32 = scmp.eq.s32.totalorder %s16, 3
      %p33 = por %p31, %p32
      %p34 = scmp.ne.s32.totalorder %s26, %s29
      %p35 = scmp.eq.s32.totalorder %s16, 0
      %p36 = por %p34, %p35
      %p37 = scmp.ne.s32.totalorder %s26, %s29
      %p38 = scmp.eq.s32.totalorder %s21, 3
      %p39 = por %p37, %p38
      %p40 = scmp.ne.s32.totalorder %s29, %s30
      %p41 = scmp.eq.s32.totalorder %s21, 0
      %p42 = por %p40, %p41
      %p43 = scmp.ne.s32.totalorder %s29, %s30
      %p44 = scmp.eq.s32.totalorder %s22, 3
      %p45 = por %p43, %p44
      %p47 = scmp.ne.s32.totalorder %s30, %s46
      %p48 = scmp.eq.s32.totalorder %s22, 0
      %p49 = por %p47, %p48
      %s51 = sadd.s32 %s50, 1
      %p54 = scmp.eq.s32.totalorder %s16, 3
      %p55 = scmp.ne.s32.totalorder %s50, %s52
      %p56 = scmp.eq.s32.totalorder %s16, 0
      %p57 = por %p55, %p56
      %p58 = scmp.ne.s32.totalorder %s50, %s52
      %p59 = scmp.eq.s32.totalorder %s21, 3
      %p60 = por %p58, %p59
      %p61 = scmp.ne.s32.totalorder %s52, %s53
      %p62 = scmp.eq.s32.totalorder %s21, 0
      %p63 = por %p61, %p62
      %p64 = scmp.ne.s32.totalorder %s52, %s53
      %p65 = scmp.eq.s32.totalorder %s22, 3
      %p66 = por %p64, %p65
      %p68 = scmp.ne.s32.totalorder %s53, %s67
      %p69 = scmp.eq.s32.totalorder %s22, 0
      %p70 = por %p68, %p69
      %s72 = sadd.s32 %s71, 1
      %p75 = scmp.eq.s32.totalorder %s16, 3
      %p76 = scmp.ne.s32.totalorder %s71, %s73
      %p77 = scmp.eq.s32.totalorder %s16, 0
      %p78 = por %p76, %p77
      %p79 = scmp.ne.s32.totalorder %s71, %s73
      %p80 = scmp.eq.s32.totalorder %s21, 3
      %p81 = por %p79, %p80
      %p82 = scmp.ne.s32.totalorder %s73, %s74
      %p83 = scmp.eq.s32.totalorder %s21, 0
      %p84 = por %p82, %p83
      %p85 = scmp.ne.s32.totalorder %s73, %s74
      %p86 = scmp.eq.s32.totalorder %s22, 3
      %p87 = por %p85, %p86
      %p89 = scmp.ne.s32.totalorder %s74, %s88
      %p90 = scmp.eq.s32.totalorder %s22, 0
      %p91 = por %p89, %p90
      %s93 = sadd.s32 %s92, 1
      %p96 = scmp.eq.s32.totalorder %s16, 3
      %p97 = scmp.ne.s32.totalorder %s92, %s94
      %p98 = scmp.eq.s32.totalorder %s16, 0
      %p99 = por %p97, %p98
      %p100 = scmp.ne.s32.totalorder %s92, %s94
      %p101 = scmp.eq.s32.totalorder %s21, 3
      %p102 = por %p100, %p101
      %p103 = scmp.ne.s32.totalorder %s94, %s95
      %p104 = scmp.eq.s32.totalorder %s21, 0
      %p105 = por %p103, %p104
      %p106 = scmp.ne.s32.totalorder %s94, %s95
      %p107 = scmp.eq.s32.totalorder %s22, 3
      %p108 = por %p106, %p107
      %p110 = scmp.ne.s32.totalorder %s95, %s109
      %p111 = scmp.eq.s32.totalorder %s22, 0
      %p112 = por %p110, %p111
      %s114 = sadd.s32 %s113, 1
      %p117 = scmp.eq.s32.totalorder %s16, 3
      %p118 = scmp.ne.s32.totalorder %s113, %s115
      %p119 = scmp.eq.s32.totalorder %s16, 0
      %p120 = por %p118, %p119
      %p121 = scmp.ne.s32.totalorder %s113, %s115
      %p122 = scmp.eq.s32.totalorder %s21, 3
      %p123 = por %p121, %p122
      %p124 = scmp.ne.s32.totalorder %s115, %s116
      %p125 = scmp.eq.s32.totalorder %s21, 0
      %p126 = por %p124, %p125
      %p127 = scmp.ne.s32.totalorder %s115, %s116
      %p128 = scmp.eq.s32.totalorder %s22, 3
      %p129 = por %p127, %p128
      %p131 = scmp.ne.s32.totalorder %s116, %s130
      %p132 = scmp.eq.s32.totalorder %s22, 0
      %p133 = por %p131, %p132
      %s134 = ssub.s32 %s16, %s23
      %p135 = scmp.eq.s32.totalorder %s134, 0
      %s137 = sadd.s32 %s136, 1
      %s138 = scalar_select %p135, %s136, %s137
      %p141 = pneg %p135
      %p142 = scmp.eq.s32.totalorder %s16, 3
      %p143 = por %p141, %p142
      %p144 = scmp.ne.s32.totalorder %s136, %s139
      %p145 = scmp.eq.s32.totalorder %s16, 0
      %p146 = por %p144, %p145
      %p147 = scmp.ne.s32.totalorder %s136, %s139
      %p148 = scmp.eq.s32.totalorder %s21, 3
      %p149 = por %p147, %p148
      %p150 = scmp.ne.s32.totalorder %s139, %s140
      %p151 = scmp.eq.s32.totalorder %s21, 0
      %p152 = por %p150, %p151
      %p153 = scmp.ne.s32.totalorder %s139, %s140
      %p154 = scmp.eq.s32.totalorder %s22, 3
      %p155 = por %p153, %p154
      %p157 = scmp.ne.s32.totalorder %s140, %s156
      %p158 = scmp.eq.s32.totalorder %s22, 0
      %p159 = por %p157, %p158
      %s160 = ssub.s32 %s16, %s23
      %p161 = scmp.eq.s32.totalorder %s160, 0
      %s163 = sadd.s32 %s162, 1
      %s164 = scalar_select %p161, %s162, %s163
      %p167 = pneg %p161
      %p168 = scmp.eq.s32.totalorder %s16, 3
      %p169 = por %p167, %p168
      %p170 = scmp.ne.s32.totalorder %s162, %s165
      %p171 = scmp.eq.s32.totalorder %s16, 0
      %p172 = por %p170, %p171
      %p173 = scmp.ne.s32.totalorder %s162, %s165
      %p174 = scmp.eq.s32.totalorder %s21, 3
      %p175 = por %p173, %p174
      %p176 = scmp.ne.s32.totalorder %s165, %s166
      %p177 = scmp.eq.s32.totalorder %s21, 0
      %p178 = por %p176, %p177
      %p179 = scmp.ne.s32.totalorder %s165, %s166
      %p180 = scmp.eq.s32.totalorder %s22, 3
      %p181 = por %p179, %p180
      %p183 = scmp.ne.s32.totalorder %s166, %s182
      %p184 = scmp.eq.s32.totalorder %s22, 0
      %p185 = por %p183, %p184
      %s186 = ssub.s32 %s16, %s23
      %p187 = scmp.eq.s32.totalorder %s186, 0
      %s189 = sadd.s32 %s188, 1
      %s190 = scalar_select %p187, %s188, %s189
      %p193 = pneg %p187
      %p194 = scmp.eq.s32.totalorder %s16, 3
      %p195 = por %p193, %p194
      %p196 = scmp.ne.s32.totalorder %s188, %s191
      %p197 = scmp.eq.s32.totalorder %s16, 0
      %p198 = por %p196, %p197
      %p199 = scmp.ne.s32.totalorder %s188, %s191
      %p200 = scmp.eq.s32.totalorder %s21, 3
      %p201 = por %p199, %p200
      %p202 = scmp.ne.s32.totalorder %s191, %s192
      %p203 = scmp.eq.s32.totalorder %s21, 0
      %p204 = por %p202, %p203
      %p205 = scmp.ne.s32.totalorder %s191, %s192
      %p206 = scmp.eq.s32.totalorder %s22, 3
      %p207 = por %p205, %p206
      %p209 = scmp.ne.s32.totalorder %s192, %s208
      %p210 = scmp.eq.s32.totalorder %s22, 0
      %p211 = por %p209, %p210
      %p212 = scmp.le.s32.totalorder 1, %s16
      %p213 = scmp.lt.s32.totalorder %s16, 5
      %p214 = pnand %p212, %p213
      %p215 = pneg %p214
      // Predicated region
      $region9: #{pointnet_encoder.7} parent=5 // pred_check
        _
      $region10: #{pointnet_encoder.7} parent=5 // pred_check_branch
        %217 = sbr.rel (%p214) target = $region12
      $region11: #{pointnet_encoder.7} parent=5 // pred_region
        %s218 = ssub.s32 %s16, 1
        // Predicated region
        $region13: #{pointnet_encoder.7} parent=11 // pred_check
          %p219 = pneg %p63
        $region14: #{pointnet_encoder.7} parent=11 // pred_check_branch
          %221 = sbr.rel (%p219) target = $region16
        $region15: #{pointnet_encoder.7} parent=11 // pred_region
          _
        $region16: #{pointnet_encoder.7} parent=11 // pred_fallthru
          _
        // Predicated region
        $region17: #{pointnet_encoder.7} parent=11 // pred_check
          %p222 = pneg %p84
        $region18: #{pointnet_encoder.7} parent=11 // pred_check_branch
          %224 = sbr.rel (%p222) target = $region20
        $region19: #{pointnet_encoder.7} parent=11 // pred_region
          _
        $region20: #{pointnet_encoder.7} parent=11 // pred_fallthru
          _
        // Predicated region
        $region21: #{pointnet_encoder.7} parent=11 // pred_check
          %p225 = pneg %p105
        $region22: #{pointnet_encoder.7} parent=11 // pred_check_branch
          %227 = sbr.rel (%p225) target = $region24
        $region23: #{pointnet_encoder.7} parent=11 // pred_region
          %229 = vsyncadd [#allocation3], 0
          %s230 = sshll.u32 %s3, 4
          %s231 = int_to_ptr.hbm [resolvable:$true] %s230
          %s232 = sshll.u32 [#allocation2], 4
          %s233 = int_to_ptr.vmem [resolvable:$true] %s232
          %238 = dma.hbm_to_vmem [thread:$0]  %s231, 2048, %s233, [#allocation3], 128, 128, 8
        $region24: #{pointnet_encoder.7} parent=11 // pred_fallthru
          _
        // Predicated region
        $region25: #{pointnet_encoder.7} parent=11 // pred_check
          %p239 = pneg %p126
        $region26: #{pointnet_encoder.7} parent=11 // pred_check_branch
          %241 = sbr.rel (%p239) target = $region28
        $region27: #{pointnet_encoder.7} parent=11 // pred_region
          %243 = vsyncadd [#allocation5], 0
          %s245 = sshll.u32 %s4, 4
          %s246 = int_to_ptr.hbm [resolvable:$true] %s245
          %s247 = sshll.u32 [#allocation4], 4
          %s248 = int_to_ptr.vmem [resolvable:$true] %s247
          %250 = dma.hbm_to_vmem [thread:$0]  %s246, 32, %s248, [#allocation5]
        $region28: #{pointnet_encoder.7} parent=11 // pred_fallthru
          _
      $region12: #{pointnet_encoder.7} parent=5 // pred_fallthru
        _
      %p251 = scmp.lt.s32.totalorder %s16, 4
      // Predicated region
      $region29: #{pointnet_encoder.7} parent=5 // pred_check
        %p252 = pneg %p251
      $region30: #{pointnet_encoder.7} parent=5 // pred_check_branch
        %254 = sbr.rel (%p252) target = $region32
      $region31: #{pointnet_encoder.7} parent=5 // pred_region
        // Predicated region
        $region33: #{pointnet_encoder.7} parent=31 // pred_check
          %p255 = pneg %p36
        $region34: #{pointnet_encoder.7} parent=31 // pred_check_branch
          %257 = sbr.rel (%p255) target = $region36
        $region35: #{pointnet_encoder.7} parent=31 // pred_region
          %s258 = smul.u32 6, %s16
          %s259 = ssub.s32 20, %s258
          %p260 = scmp.lt.s32.totalorder %s259, 6
          %s261 = scalar_select %p260, %s259, 6
          %s262 = smul.u32 4, %s261
          %p263 = scmp.lt.s32.totalorder %s258, 19
          %s264 = scalar_select %p263, %s258, 19
          %s265 = smul.addr %s264, 4
          %s266 = scalar_lea.vmem %s0, %s265
          %s267 = smul.u32 6, %s16
          %s268 = ssub.s32 20, %s267
          %p269 = scmp.lt.s32.totalorder %s268, 6
          %s270 = scalar_select %p269, %s268, 6
          %s271 = smul.u32 4, %s270
        $region36: #{pointnet_encoder.7} parent=31 // pred_fallthru
          _
      $region32: #{pointnet_encoder.7} parent=5 // pred_fallthru
        _
      %p272 = scmp.le.s32.totalorder 1, %s16
      %p273 = scmp.lt.s32.totalorder %s16, 5
      %p274 = pnand %p272, %p273
      %p275 = pneg %p274
      // Predicated region
      $region37: #{pointnet_encoder.7} parent=5 // pred_check
        _
      $region38: #{pointnet_encoder.7} parent=5 // pred_check_branch
        %277 = sbr.rel (%p274) target = $region40
      $region39: #{pointnet_encoder.7} parent=5 // pred_region
        %s278 = ssub.s32 %s16, 1
        // Predicated region
        $region41: #{pointnet_encoder.7} parent=39 // pred_check
          %p279 = pneg %p105
        $region42: #{pointnet_encoder.7} parent=39 // pred_check_branch
          %281 = sbr.rel (%p279) target = $region44
        $region43: #{pointnet_encoder.7} parent=39 // pred_region
          %283 = dma.done [#allocation3], 2048
        $region44: #{pointnet_encoder.7} parent=39 // pred_fallthru
          _
        // Predicated region
        $region45: #{pointnet_encoder.7} parent=39 // pred_check
          %p284 = pneg %p126
        $region46: #{pointnet_encoder.7} parent=39 // pred_check_branch
          %286 = sbr.rel (%p284) target = $region48
        $region47: #{pointnet_encoder.7} parent=39 // pred_region
          %288 = dma.done [#allocation5], 32
        $region48: #{pointnet_encoder.7} parent=39 // pred_fallthru
          _
        %s289 = smul.u32 6, %s21
        %s290 = ssub.s32 20, %s289
        %p291 = scmp.lt.s32.totalorder %s290, 6
        %s292 = scalar_select %p291, %s290, 6
        %s293 = smul.u32 4, %s292
        %p294 = scmp.lt.s32.totalorder %s289, 19
        %s295 = scalar_select %p294, %s289, 19
        %s296 = smul.addr %s295, 4
        %s297 = scalar_lea.vmem %s0, %s296
        %p298 = pneg %p42
        %p299 = pneg %p39
        %p300 = pneg %p63
        %p301 = pneg %p60
        %p302 = pneg %p84
        %p303 = pneg %p81
        %p304 = pneg %p105
        %p305 = pneg %p102
        %p306 = pneg %p126
        %p307 = pneg %p123
        %p308 = pneg %p152
        %p309 = pneg %p149
        %s310 = sand.u32 %s139, 1
        %s311 = sand.u32 %s139, 1
        %s312 = smul.addr %s311, 48
        %s313 = scalar_lea.vmem [#allocation6], %s312
        %p314 = pneg %p178
        %p315 = pneg %p175
        %p316 = scmp.lt.s32.totalorder %s21, 3
        %s317 = scalar_select %p316, %s21, 3
        %s318 = smul.addr %s317, 2
        %s319 = scalar_lea.vmem %s6, %s318
        %p320 = pneg %p204
        %p321 = pneg %p201
        %p322 = scmp.lt.s32.totalorder %s21, 3
        %s323 = scalar_select %p322, %s21, 3
        %s324 = smul.addr %s323, 2
        %s325 = scalar_lea.vmem %s7, %s324
        %s326 = smul.u32 6, %s21
        %s327 = ssub.s32 20, %s326
        %p328 = scmp.lt.s32.totalorder %s327, 6
        %s329 = scalar_select %p328, %s327, 6
        %s330 = smul.u32 4, %s329
        %p331 = scmp.lt.s32.totalorder %s326, 19
        %s332 = scalar_select %p331, %s326, 19
        %s333 = smul.addr %s332, 4
        %s334 = scalar_lea.vmem %s0, %s333
        %s335 = smul.u32 6, %s21
        %s336 = ssub.s32 20, %s335
        %p337 = scmp.lt.s32.totalorder %s336, 6
        %s338 = scalar_select %p337, %s336, 6
        %s339 = smul.u32 4, %s338
        %s340 = smul.u32 6, %s21
        %s341 = ssub.s32 20, %s340
        %p342 = scmp.lt.s32.totalorder %s341, 6
        %s343 = scalar_select %p342, %s341, 6
        %s344 = smul.u32 4, %s343
        %s345 = smul.u32 %s344, 2
        %p346 = scmp.lt.s32.totalorder %s21, 3
        %s347 = scalar_select %p346, %s21, 3
        %s348 = smul.addr %s347, 2
        %s349 = scalar_lea.vmem %s6, %s348
        %p350 = scmp.lt.s32.totalorder %s21, 3
        %s351 = scalar_select %p350, %s21, 3
        %s352 = smul.addr %s351, 2
        %s353 = scalar_lea.vmem %s7, %s352
        %v354 = vld [vmem:[%s334] sm:$0xf]
        %v355 = vld [vmem:[%s334 + $0x4] sm:$0xf]
        %v356 = vld [vmem:[%s334 + $0x8] sm:$0xf]
        %v357 = vld [vmem:[%s334 + $0xc] sm:$0xf]
        %v358 = vld [vmem:[%s334 + $0x10] sm:$0xf]
        %v359 = vld [vmem:[%s334 + $0x14] sm:$0xf]
        %v360 = vunpack.c.l.bf16 %v354
        %v361 = vunpack.c.l.bf16 %v355
        %v362 = vunpack.c.l.bf16 %v356
        %v363 = vunpack.c.l.bf16 %v357
        %v364 = vunpack.c.l.bf16 %v358
        %v365 = vunpack.c.l.bf16 %v359
        %v366 = vld [vmem:[%s1] sm:$0x1]
        %v368 = vperm.slane %v366, 0
        %v370 = vmul.f32 %v360, %v368
        %v371 = vmul.f32 %v361, %v368
        %v372 = vmul.f32 %v362, %v368
        %v373 = vmul.f32 %v363, %v368
        %v374 = vmul.f32 %v364, %v368
        %v375 = vmul.f32 %v365, %v368
        %v376 = vld [vmem:[%s2] sm:$0x1]
        %v378 = vperm.slane %v376, 0
        %v380 = vadd.f32 %v370, %v378
        %v381 = vadd.f32 %v371, %v378
        %v382 = vadd.f32 %v372, %v378
        %v383 = vadd.f32 %v373, %v378
        %v384 = vadd.f32 %v374, %v378
        %v385 = vadd.f32 %v375, %v378
        %v386 = vmax.f32 %v380, 0.0
        %v387 = vmax.f32 %v381, 0.0
        %v388 = vmax.f32 %v382, 0.0
        %v389 = vmax.f32 %v383, 0.0
        %v390 = vmax.f32 %v384, 0.0
        %v391 = vmax.f32 %v385, 0.0
        %v392 = vpack.c.bf16 %v387, %v386
        %v393 = vpack.c.bf16 %v389, %v388
        %v394 = vpack.c.bf16 %v391, %v390
        %v395 = vld [vmem:[#allocation2] sm:$0xff]
        %v396 = vld [vmem:[#allocation2 + $0x8] sm:$0xff]
        %v397 = vld [vmem:[#allocation2 + $0x10] sm:$0xff]
        %v398 = vld [vmem:[#allocation2 + $0x18] sm:$0xff]
        %v399 = vld [vmem:[#allocation2 + $0x20] sm:$0xff]
        %v400 = vld [vmem:[#allocation2 + $0x28] sm:$0xff]
        %v401 = vld [vmem:[#allocation2 + $0x30] sm:$0xff]
        %v402 = vld [vmem:[#allocation2 + $0x38] sm:$0xff]
        %v403 = vld [vmem:[#allocation2 + $0x40] sm:$0xff]
        %v404 = vld [vmem:[#allocation2 + $0x48] sm:$0xff]
        %v405 = vld [vmem:[#allocation2 + $0x50] sm:$0xff]
        %v406 = vld [vmem:[#allocation2 + $0x58] sm:$0xff]
        %v407 = vld [vmem:[#allocation2 + $0x60] sm:$0xff]
        %v408 = vld [vmem:[#allocation2 + $0x68] sm:$0xff]
        %v409 = vld [vmem:[#allocation2 + $0x70] sm:$0xff]
        %v410 = vld [vmem:[#allocation2 + $0x78] sm:$0xff]
        %v411 = vld [vmem:[#allocation4] sm:$0x3]
        %v413 = vperm.slane %v411, 0
        %v414 = vperm.slane %v411, 1
        %v433 = vunpack.c.l.b16 %v395
        %v434 = vunpack.c.h.b16 %v395
        %v435 = vunpack.c.l.b16 %v396
        %v436 = vunpack.c.h.b16 %v396
        %v437 = vunpack.c.l.b16 %v397
        %v438 = vunpack.c.h.b16 %v397
        %v439 = vunpack.c.l.b16 %v398
        %v440 = vunpack.c.h.b16 %v398
        %v441 = vunpack.c.l.b16 %v399
        %v442 = vunpack.c.h.b16 %v399
        %v443 = vunpack.c.l.b16 %v400
        %v444 = vunpack.c.h.b16 %v400
        %v445 = vunpack.c.l.b16 %v401
        %v446 = vunpack.c.h.b16 %v401
        %v447 = vunpack.c.l.b16 %v402
        %v448 = vunpack.c.h.b16 %v402
        %v449 = vunpack.c.l.b16 %v403
        %v450 = vunpack.c.h.b16 %v403
        %v451 = vunpack.c.l.b16 %v404
        %v452 = vunpack.c.h.b16 %v404
        %v453 = vunpack.c.l.b16 %v405
        %v454 = vunpack.c.h.b16 %v405
        %v455 = vunpack.c.l.b16 %v406
        %v456 = vunpack.c.h.b16 %v406
        %v457 = vunpack.c.l.b16 %v407
        %v458 = vunpack.c.h.b16 %v407
        %v459 = vunpack.c.l.b16 %v408
        %v460 = vunpack.c.h.b16 %v408
        %v461 = vunpack.c.l.b16 %v409
        %v462 = vunpack.c.h.b16 %v409
        %v463 = vunpack.c.l.b16 %v410
        %v464 = vunpack.c.h.b16 %v410
        %v465 = vpack.c.b16 %v435, %v433
        %v466 = vpack.c.b16 %v436, %v434
        %v467 = vpack.c.b16 %v439, %v437
        %v468 = vpack.c.b16 %v440, %v438
        %v469 = vpack.c.b16 %v443, %v441
        %v470 = vpack.c.b16 %v444, %v442
        %v471 = vpack.c.b16 %v447, %v445
        %v472 = vpack.c.b16 %v448, %v446
        %v473 = vpack.c.b16 %v451, %v449
        %v474 = vpack.c.b16 %v452, %v450
        %v475 = vpack.c.b16 %v455, %v453
        %v476 = vpack.c.b16 %v456, %v454
        %v477 = vpack.c.b16 %v459, %v457
        %v478 = vpack.c.b16 %v460, %v458
        %v479 = vpack.c.b16 %v463, %v461
        %v480 = vpack.c.b16 %v464, %v462
        %497 = vmatpush.bf16.msra.mxu0 %v479
        %498 = vmatpush.bf16.msra.mxu0 %v477
        %499 = vmatpush.bf16.msra.mxu0 %v475
        %500 = vmatpush.bf16.msra.mxu0 %v473
        %501 = vmatpush.bf16.msra.mxu0 %v471
        %502 = vmatpush.bf16.msra.mxu0 %v469
        %503 = vmatpush.bf16.msra.mxu0 %v467
        %504 = vmatpush.bf16.msra.mxu0 %v465
        %505 = vmatmul.bf16.gmra.mxu0 %v392
        %v506 = vpop.f32.mrf.mxu0
        %v507 = vadd.f32 %v413, %v506
        %v508 = vpop.f32.mrf.mxu0
        %v509 = vadd.f32 %v413, %v508
        %510 = vmatmul.bf16.gmra.mxu0 %v393
        %v511 = vpop.f32.mrf.mxu0
        %v512 = vadd.f32 %v413, %v511
        %v513 = vpop.f32.mrf.mxu0
        %v514 = vadd.f32 %v413, %v513
        %515 = vmatmul.bf16.gmra.mxu0 %v394
        %v516 = vpop.f32.mrf.mxu0
        %v517 = vadd.f32 %v413, %v516
        %v518 = vpop.f32.mrf.mxu0
        %v519 = vadd.f32 %v413, %v518
        %520 = vdwg.mxu0
        %521 = vmatpush.bf16.msra.mxu0 %v480
        %522 = vmatpush.bf16.msra.mxu0 %v478
        %523 = vmatpush.bf16.msra.mxu0 %v476
        %524 = vmatpush.bf16.msra.mxu0 %v474
        %525 = vmatpush.bf16.msra.mxu0 %v472
        %526 = vmatpush.bf16.msra.mxu0 %v470
        %527 = vmatpush.bf16.msra.mxu0 %v468
        %528 = vmatpush.bf16.msra.mxu0 %v466
        %529 = vmatmul.bf16.gmra.mxu0 %v392
        %v530 = vpop.f32.mrf.mxu0
        %v531 = vadd.f32 %v414, %v530
        %v532 = vpop.f32.mrf.mxu0
        %v533 = vadd.f32 %v414, %v532
        %534 = vmatmul.bf16.gmra.mxu0 %v393
        %v535 = vpop.f32.mrf.mxu0
        %v536 = vadd.f32 %v414, %v535
        %v537 = vpop.f32.mrf.mxu0
        %v538 = vadd.f32 %v414, %v537
        %539 = vmatmul.bf16.gmra.mxu0 %v394
        %v540 = vpop.f32.mrf.mxu0
        %v541 = vadd.f32 %v414, %v540
        %v542 = vpop.f32.mrf.mxu0
        %v543 = vadd.f32 %v414, %v542
        %544 = vdwg.mxu0
        %v545 = vpack.c.bf16 %v531, %v507
        %v546 = vpack.c.bf16 %v533, %v509
        %v547 = vpack.c.bf16 %v536, %v512
        %v548 = vpack.c.bf16 %v538, %v514
        %v549 = vpack.c.bf16 %v541, %v517
        %v550 = vpack.c.bf16 %v543, %v519
        %551 = vst [vmem:[%s313] sm:$0xff] %v545
        %552 = vst [vmem:[%s313 + $0x8] sm:$0xff] %v546
        %553 = vst [vmem:[%s313 + $0x10] sm:$0xff] %v547
        %554 = vst [vmem:[%s313 + $0x18] sm:$0xff] %v548
        %555 = vst [vmem:[%s313 + $0x20] sm:$0xff] %v549
        %556 = vst [vmem:[%s313 + $0x28] sm:$0xff] %v550
        %s557 = smul.u32 %s21, 48
        %v558 = vlaneseq
        %v559 = vshrl.u32 %v558, 7
        %v560 = vadd.s32 %v559, 8
        %v561 = vadd.s32 %v559, 16
        %v562 = vadd.s32 %v559, 24
        %v563 = vadd.s32 %v559, 32
        %v564 = vadd.s32 %v559, 40
        %v565 = vstv %s557
        %v566 = vadd.s32 %v559, %v565
        %v567 = vadd.s32 %v560, %v565
        %v568 = vadd.s32 %v561, %v565
        %v569 = vadd.s32 %v562, %v565
        %v570 = vadd.s32 %v563, %v565
        %v571 = vadd.s32 %v564, %v565
        %vm572 = vcmp.lt.s32.totalorder %v566, 160
        %vm573 = vcmp.lt.s32.totalorder %v567, 160
        %vm574 = vcmp.lt.s32.totalorder %v568, 160
        %vm575 = vcmp.lt.s32.totalorder %v569, 160
        %vm576 = vcmp.lt.s32.totalorder %v570, 160
        %vm577 = vcmp.lt.s32.totalorder %v571, 160
        %v578 = vsel %vm572, %v507, 0.0
        %v579 = vsel %vm572, %v531, 0.0
        %v580 = vsel %vm573, %v509, 0.0
        %v581 = vsel %vm573, %v533, 0.0
        %v582 = vsel %vm574, %v512, 0.0
        %v583 = vsel %vm574, %v536, 0.0
        %v584 = vsel %vm575, %v514, 0.0
        %v585 = vsel %vm575, %v538, 0.0
        %v586 = vsel %vm576, %v517, 0.0
        %v587 = vsel %vm576, %v541, 0.0
        %v588 = vsel %vm577, %v519, 0.0
        %v589 = vsel %vm577, %v543, 0.0
        %v590 = vadd.f32 %v578, %v580
        %v591 = vadd.f32 %v590, %v582
        %v592 = vadd.f32 %v591, %v584
        %v593 = vadd.f32 %v592, %v586
        %v594 = vadd.f32 %v593, %v588
        %v595 = vrot.slane %v594, 4
        %v596 = vadd.f32 %v594, %v595
        %v597 = vrot.slane %v596, 2
        %v598 = vadd.f32 %v596, %v597
        %v599 = vrot.slane %v598, 1
        %v600 = vadd.f32 %v598, %v599
        %v601 = vadd.f32 %v579, %v581
        %v602 = vadd.f32 %v601, %v583
        %v603 = vadd.f32 %v602, %v585
        %v604 = vadd.f32 %v603, %v587
        %v605 = vadd.f32 %v604, %v589
        %v606 = vrot.slane %v605, 4
        %v607 = vadd.f32 %v605, %v606
        %v608 = vrot.slane %v607, 2
        %v609 = vadd.f32 %v607, %v608
        %v610 = vrot.slane %v609, 1
        %v611 = vadd.f32 %v609, %v610
        %v614 = vrot.slane %v611, 7
        %vm615 = vcmask 1040384
        %v616 = vsel %vm615, %v600, %v614
        %v618 = vlaneseq
        %vm619 = vcmp.ge.s32.totalorder %v618, 0
        %vm620 = vcmp.lt.s32.totalorder %v618, 256
        %vm621 = vmand %vm619, %vm620
        %622 = vst.msk [vmem:[%s349] sm:$0x3] %vm621, %v616
        %v623 = vmul.f32 %v578, %v578
        %v624 = vmul.f32 %v579, %v579
        %v625 = vmul.f32 %v580, %v580
        %v626 = vmul.f32 %v581, %v581
        %v627 = vmul.f32 %v582, %v582
        %v628 = vmul.f32 %v583, %v583
        %v629 = vmul.f32 %v584, %v584
        %v630 = vmul.f32 %v585, %v585
        %v631 = vmul.f32 %v586, %v586
        %v632 = vmul.f32 %v587, %v587
        %v633 = vmul.f32 %v588, %v588
        %v634 = vmul.f32 %v589, %v589
        %v635 = vadd.f32 %v623, %v625
        %v636 = vadd.f32 %v635, %v627
        %v637 = vadd.f32 %v636, %v629
        %v638 = vadd.f32 %v637, %v631
        %v639 = vadd.f32 %v638, %v633
        %v640 = vrot.slane %v639, 4
        %v641 = vadd.f32 %v639, %v640
        %v642 = vrot.slane %v641, 2
        %v643 = vadd.f32 %v641, %v642
        %v644 = vrot.slane %v643, 1
        %v645 = vadd.f32 %v643, %v644
        %v646 = vadd.f32 %v624, %v626
        %v647 = vadd.f32 %v646, %v628
        %v648 = vadd.f32 %v647, %v630
        %v649 = vadd.f32 %v648, %v632
        %v650 = vadd.f32 %v649, %v634
        %v651 = vrot.slane %v650, 4
        %v652 = vadd.f32 %v650, %v651
        %v653 = vrot.slane %v652, 2
        %v654 = vadd.f32 %v652, %v653
        %v655 = vrot.slane %v654, 1
        %v656 = vadd.f32 %v654, %v655
        %v659 = vrot.slane %v656, 7
        %v660 = vsel %vm615, %v645, %v659
        %662 = vst.msk [vmem:[%s353] sm:$0x3] %vm621, %v660
        %s663 = sand.u32 %s139, 1
        %s664 = sand.u32 %s139, 1
        %s665 = smul.addr %s664, 48
        %s666 = scalar_lea.vmem [#allocation6], %s665
        %p667 = scmp.lt.s32.totalorder %s21, 3
        %s668 = scalar_select %p667, %s21, 3
        %s669 = smul.addr %s668, 2
        %s670 = scalar_lea.vmem %s6, %s669
        %p671 = scmp.lt.s32.totalorder %s21, 3
        %s672 = scalar_select %p671, %s21, 3
        %s673 = smul.addr %s672, 2
        %s674 = scalar_lea.vmem %s7, %s673
        // Predicated region
        $region49: #{pointnet_encoder.7} parent=39 // pred_check
          %p675 = pneg %p149
        $region50: #{pointnet_encoder.7} parent=39 // pred_check_branch
          %677 = sbr.rel (%p675) target = $region52
        $region51: #{pointnet_encoder.7} parent=39 // pred_region
          %s678 = smul.u32 6, %s21
          %s679 = ssub.s32 20, %s678
          %p680 = scmp.lt.s32.totalorder %s679, 6
          %s681 = scalar_select %p680, %s679, 6
          %s682 = smul.u32 4, %s681
          %s683 = smul.u32 %s682, 2
          %p684 = scmp.ne.s32.totalorder 0, %s683
          %s685 = smul.addr %s678, 2
          %s686 = smul.addr %s685, 4
          %s687 = scalar_lea.vmem %s5, %s686
          // Predicated region
          $region53: #{pointnet_encoder.7} parent=51 // pred_check
            %p688 = pneg %p684
          $region54: #{pointnet_encoder.7} parent=51 // pred_check_branch
            %690 = sbr.rel (%p688) target = $region56
          $region55: #{pointnet_encoder.7} parent=51 // pred_region
            // Predicated region
            $region57: #{pointnet_encoder.7} parent=55 // pred_check
              _
            $region58: #{pointnet_encoder.7} parent=55 // pred_check_branch
              %692 = sbr.rel (0) target = $region60
            $region59: #{pointnet_encoder.7} parent=55 // pred_region
              // Predicated region
              $region79: #{pointnet_encoder.7} parent=59 // pred_check
                _
              $region80: #{pointnet_encoder.7} parent=59 // pred_check_branch
                %753 = sbr.rel (0) target = $region82
              $region81: #{pointnet_encoder.7} parent=59 // pred_region
                %s754 = sdiv.u32.pop %s681, 6
                %s755 = srem.u32.pop %s681, 6
                // While loop
                $region83: #{pointnet_encoder.7} parent=81 // loop_pre_header
                  _
                $region84: #{pointnet_encoder.7} parent=81 // loop_header
                  %s757 = sphi 0, %s759
                  %p758 = scmp.ge.s32.totalorder %s757, %s754
                  %s762 = sphi 0, %s779
                  %s763 = sphi %s666, %s782
                  %s764 = sphi %s687, %s783
                $region85: #{pointnet_encoder.7} parent=81 // loop_header_branch
                  %761 = sbr.rel (%p758) target = $region89
                $region86: #{pointnet_encoder.7} parent=81 // loop_body
                  %v765 = vld [vmem:[%s763] sm:$0xff]
                  %766 = vst [vmem:[%s764] sm:$0xff] %v765
                  %v767 = vld [vmem:[%s763 + $0x8] sm:$0xff]
                  %768 = vst [vmem:[%s764 + $0x8] sm:$0xff] %v767
                  %v769 = vld [vmem:[%s763 + $0x10] sm:$0xff]
                  %770 = vst [vmem:[%s764 + $0x10] sm:$0xff] %v769
                  %v771 = vld [vmem:[%s763 + $0x18] sm:$0xff]
                  %772 = vst [vmem:[%s764 + $0x18] sm:$0xff] %v771
                  %v773 = vld [vmem:[%s763 + $0x20] sm:$0xff]
                  %774 = vst [vmem:[%s764 + $0x20] sm:$0xff] %v773
                  %v775 = vld [vmem:[%s763 + $0x28] sm:$0xff]
                  %776 = vst [vmem:[%s764 + $0x28] sm:$0xff] %v775
                  %s777 = sadd.s32 1, %s762
                  %p778 = scmp.ge.s32.totalorder %s777, %s754
                  %s779 = scalar_select %p778, 0, %s777
                  %s780 = smul.u32 %s779, 48
                  %s781 = smul.u32 %s779, 48
                  %s782 = scalar_lea.vmem %s666, %s780 [#allocation6]
                  %s783 = scalar_lea.vmem %s687, %s781
                $region87: #{pointnet_encoder.7} parent=81 // loop_footer
                  %s759 = sadd.s32 %s757, 1
                $region88: #{pointnet_encoder.7} parent=81 // loop_footer_branch
                  %756 = sbr.rel target = $region84
                $region89: #{pointnet_encoder.7} parent=81 // loop_exit
                  _
                %s784 = sdiv.u32.pop %s681, 6
                %s785 = srem.u32.pop %s681, 6
                %s786 = smul.u32 %s784, 6
                %s787 = smul.u32 8, %s786
                %s788 = scalar_lea.vmem %s666, %s787 [#allocation6]
                %s789 = smul.u32 8, %s786
                %s790 = scalar_lea.vmem %s687, %s789
                // While loop
                $region90: #{pointnet_encoder.7} parent=81 // loop_pre_header
                  _
                $region91: #{pointnet_encoder.7} parent=81 // loop_header
                  %s792 = sphi 0, %s794
                  %p793 = scmp.ge.s32.totalorder %s792, %s785
                  %s797 = sphi 0, %s804
                  %s798 = sphi %s788, %s807
                  %s799 = sphi %s790, %s808
                $region92: #{pointnet_encoder.7} parent=81 // loop_header_branch
                  %796 = sbr.rel (%p793) target = $region96
                $region93: #{pointnet_encoder.7} parent=81 // loop_body
                  %v800 = vld [vmem:[%s798] sm:$0xff]
                  %801 = vst [vmem:[%s799] sm:$0xff] %v800
                  %s802 = sadd.s32 1, %s797
                  %p803 = scmp.ge.s32.totalorder %s802, %s785
                  %s804 = scalar_select %p803, 0, %s802
                  %s805 = smul.u32 %s804, 8
                  %s806 = smul.u32 %s804, 8
                  %s807 = scalar_lea.vmem %s788, %s805 [#allocation6]
                  %s808 = scalar_lea.vmem %s790, %s806
                $region94: #{pointnet_encoder.7} parent=81 // loop_footer
                  %s794 = sadd.s32 %s792, 1
                $region95: #{pointnet_encoder.7} parent=81 // loop_footer_branch
                  %791 = sbr.rel target = $region91
                $region96: #{pointnet_encoder.7} parent=81 // loop_exit
                  _
              $region82: #{pointnet_encoder.7} parent=59 // pred_fallthru
                _
              // Predicated region
              $region97: #{pointnet_encoder.7} parent=59 // pred_check
                _
              $region98: #{pointnet_encoder.7} parent=59 // pred_check_branch
                %810 = sbr.rel target = $region100
              $region99: #{pointnet_encoder.7} parent=59 // pred_region
                _
              $region100: #{pointnet_encoder.7} parent=59 // pred_fallthru
                _
            $region60: #{pointnet_encoder.7} parent=55 // pred_fallthru
              _
            // Predicated region
            $region61: #{pointnet_encoder.7} parent=55 // pred_check
              _
            $region62: #{pointnet_encoder.7} parent=55 // pred_check_branch
              %694 = sbr.rel target = $region64
            $region63: #{pointnet_encoder.7} parent=55 // pred_region
              %s696 = ssub.s32 256, 1
              %s697 = sdiv.u32.pop %s681, 6
              %s698 = srem.u32.pop %s681, 6
              // While loop
              $region65: #{pointnet_encoder.7} parent=63 // loop_pre_header
                _
              $region66: #{pointnet_encoder.7} parent=63 // loop_header
                %s700 = sphi 0, %s702
                %p701 = scmp.ge.s32.totalorder %s700, %s697
                %s705 = sphi 0, %s722
                %s706 = sphi %s666, %s725
                %s707 = sphi %s687, %s726
              $region67: #{pointnet_encoder.7} parent=63 // loop_header_branch
                %704 = sbr.rel (%p701) target = $region71
              $region68: #{pointnet_encoder.7} parent=63 // loop_body
                %v708 = vld [vmem:[%s706] sm:%s696]
                %709 = vst [vmem:[%s707] sm:%s696] %v708
                %v710 = vld [vmem:[%s706 + $0x8] sm:%s696]
                %711 = vst [vmem:[%s707 + $0x8] sm:%s696] %v710
                %v712 = vld [vmem:[%s706 + $0x10] sm:%s696]
                %713 = vst [vmem:[%s707 + $0x10] sm:%s696] %v712
                %v714 = vld [vmem:[%s706 + $0x18] sm:%s696]
                %715 = vst [vmem:[%s707 + $0x18] sm:%s696] %v714
                %v716 = vld [vmem:[%s706 + $0x20] sm:%s696]
                %717 = vst [vmem:[%s707 + $0x20] sm:%s696] %v716
                %v718 = vld [vmem:[%s706 + $0x28] sm:%s696]
                %719 = vst [vmem:[%s707 + $0x28] sm:%s696] %v718
                %s720 = sadd.s32 1, %s705
                %p721 = scmp.ge.s32.totalorder %s720, %s697
                %s722 = scalar_select %p721, 0, %s720
                %s723 = smul.u32 %s722, 48
                %s724 = smul.u32 %s722, 48
                %s725 = scalar_lea.vmem %s666, %s723 [#allocation6]
                %s726 = scalar_lea.vmem %s687, %s724
              $region69: #{pointnet_encoder.7} parent=63 // loop_footer
                %s702 = sadd.s32 %s700, 1
              $region70: #{pointnet_encoder.7} parent=63 // loop_footer_branch
                %699 = sbr.rel target = $region66
              $region71: #{pointnet_encoder.7} parent=63 // loop_exit
                _
              %s727 = sdiv.u32.pop %s681, 6
              %s728 = srem.u32.pop %s681, 6
              %s729 = smul.u32 %s727, 6
              %s730 = smul.u32 8, %s729
              %s731 = scalar_lea.vmem %s666, %s730 [#allocation6]
              %s732 = smul.u32 8, %s729
              %s733 = scalar_lea.vmem %s687, %s732
              // While loop
              $region72: #{pointnet_encoder.7} parent=63 // loop_pre_header
                _
              $region73: #{pointnet_encoder.7} parent=63 // loop_header
                %s735 = sphi 0, %s737
                %p736 = scmp.ge.s32.totalorder %s735, %s728
                %s740 = sphi 0, %s747
                %s741 = sphi %s731, %s750
                %s742 = sphi %s733, %s751
              $region74: #{pointnet_encoder.7} parent=63 // loop_header_branch
                %739 = sbr.rel (%p736) target = $region78
              $region75: #{pointnet_encoder.7} parent=63 // loop_body
                %v743 = vld [vmem:[%s741] sm:%s696]
                %744 = vst [vmem:[%s742] sm:%s696] %v743
                %s745 = sadd.s32 1, %s740
                %p746 = scmp.ge.s32.totalorder %s745, %s728
                %s747 = scalar_select %p746, 0, %s745
                %s748 = smul.u32 %s747, 8
                %s749 = smul.u32 %s747, 8
                %s750 = scalar_lea.vmem %s731, %s748 [#allocation6]
                %s751 = scalar_lea.vmem %s733, %s749
              $region76: #{pointnet_encoder.7} parent=63 // loop_footer
                %s737 = sadd.s32 %s735, 1
              $region77: #{pointnet_encoder.7} parent=63 // loop_footer_branch
                %734 = sbr.rel target = $region73
              $region78: #{pointnet_encoder.7} parent=63 // loop_exit
                _
            $region64: #{pointnet_encoder.7} parent=55 // pred_fallthru
              _
          $region56: #{pointnet_encoder.7} parent=51 // pred_fallthru
            _
          %811 = vnop
        $region52: #{pointnet_encoder.7} parent=39 // pred_fallthru
          _
        // Predicated region
        $region101: #{pointnet_encoder.7} parent=39 // pred_check
          %p812 = pneg %p175
        $region102: #{pointnet_encoder.7} parent=39 // pred_check_branch
          %814 = sbr.rel (%p812) target = $region104
        $region103: #{pointnet_encoder.7} parent=39 // pred_region
          _
        $region104: #{pointnet_encoder.7} parent=39 // pred_fallthru
          _
        // Predicated region
        $region105: #{pointnet_encoder.7} parent=39 // pred_check
          %p815 = pneg %p201
        $region106: #{pointnet_encoder.7} parent=39 // pred_check_branch
          %817 = sbr.rel (%p815) target = $region108
        $region107: #{pointnet_encoder.7} parent=39 // pred_region
          _
        $region108: #{pointnet_encoder.7} parent=39 // pred_fallthru
          _
      $region40: #{pointnet_encoder.7} parent=5 // pred_fallthru
        _
      %p818 = scmp.le.s32.totalorder 2, %s16
      // Predicated region
      $region109: #{pointnet_encoder.7} parent=5 // pred_check
        %p819 = pneg %p818
      $region110: #{pointnet_encoder.7} parent=5 // pred_check_branch
        %821 = sbr.rel (%p819) target = $region112
      $region111: #{pointnet_encoder.7} parent=5 // pred_region
        %s822 = ssub.s32 %s16, 2
        // Predicated region
        $region113: #{pointnet_encoder.7} parent=111 // pred_check
          %p823 = pneg %p155
        $region114: #{pointnet_encoder.7} parent=111 // pred_check_branch
          %825 = sbr.rel (%p823) target = $region116
        $region115: #{pointnet_encoder.7} parent=111 // pred_region
          %s826 = sand.u32 %s140, 1
          %s827 = sand.u32 %s140, 1
          %s828 = smul.addr %s827, 48
          %s829 = scalar_lea.vmem [#allocation6], %s828
        $region116: #{pointnet_encoder.7} parent=111 // pred_fallthru
          _
        // Predicated region
        $region117: #{pointnet_encoder.7} parent=111 // pred_check
          %p830 = pneg %p181
        $region118: #{pointnet_encoder.7} parent=111 // pred_check_branch
          %832 = sbr.rel (%p830) target = $region120
        $region119: #{pointnet_encoder.7} parent=111 // pred_region
          %p833 = scmp.lt.s32.totalorder %s22, 3
          %s834 = scalar_select %p833, %s22, 3
          %s835 = smul.addr %s834, 2
          %s836 = scalar_lea.vmem %s6, %s835
        $region120: #{pointnet_encoder.7} parent=111 // pred_fallthru
          _
        // Predicated region
        $region121: #{pointnet_encoder.7} parent=111 // pred_check
          %p837 = pneg %p207
        $region122: #{pointnet_encoder.7} parent=111 // pred_check_branch
          %839 = sbr.rel (%p837) target = $region124
        $region123: #{pointnet_encoder.7} parent=111 // pred_region
          %p840 = scmp.lt.s32.totalorder %s22, 3
          %s841 = scalar_select %p840, %s22, 3
          %s842 = smul.addr %s841, 2
          %s843 = scalar_lea.vmem %s7, %s842
        $region124: #{pointnet_encoder.7} parent=111 // pred_fallthru
          _
      $region112: #{pointnet_encoder.7} parent=5 // pred_fallthru
        _
    $region6: #{pointnet_encoder.7} parent=1 // loop_footer
      %s20 = sadd.s32 1, %s16
    $region7: #{pointnet_encoder.7} parent=1 // loop_footer_branch
      %15 = sbr.rel target = $region3
    $region8: #{pointnet_encoder.7} parent=1 // loop_exit
      _
    %844 = vsyncpa [#allocation3], 1
    %s845 = scalar_lea.sflag [#allocation3], 1
    %846 = vsyncpa %s845, 1
    %847 = vsyncpa [#allocation5], 1

// kernel: pointnet_encoder.8
$region0: #{pointnet_encoder.8}
  #allocation0 [shape = 'u32[]', space=smem, size = 0x4, offset = 0x4, fixed_abs, tag = 'smem constant byte address 0x4 - core index']
  #allocation1 [shape = 'u32[72,128]{1,0:T(1,128)}', space=vmem, size = 0x9000, scoped, tag = 'internal scratch']
  %s0 = inlined_call_operand.vmem [shape: bf16[4,40,256], index: 0, kind: input, shape index: {}]
  %s1 = inlined_call_operand.vmem [shape: f32[1,256], index: 1, kind: input, shape index: {}]
  %s2 = inlined_call_operand.vmem [shape: f32[1,256], index: 2, kind: input, shape index: {}]
  %s3 = inlined_call_operand.vmem [shape: bf16[256,512], index: 3, kind: input, shape index: {}]
  %s4 = inlined_call_operand.vmem [shape: f32[1,512], index: 4, kind: input, shape index: {}]
  %s5 = inlined_call_operand.vmem [shape: f32[4,1,512], index: 5, kind: output, shape index: {0}]
  %s6 = inlined_call_operand.vmem [shape: f32[4,1,512], index: 6, kind: output, shape index: {1}]
  %s7 = inlined_call_operand.vmem [shape: f32[4,1,512], index: 7, kind: output, shape index: {2}]
  %s8 = inlined_call_operand.vmem [shape: f32[4,1,512], index: 8, kind: output, shape index: {3}]
  %9 = xla_tuple %s5, %s6, %s7, %s8
  %s10 = sld [smem:[#allocation0]]
  $region81: #{pointnet_encoder.8} parent=0
    _
  %s12 = ssub.s32 1, %s10
  %s13 = scalar_select 0, %s12, %s10
  loop: start=0, step=1, limit=14
  $region2: #{pointnet_encoder.8} parent=0 // loop_pre_header
    _
  $region3: #{pointnet_encoder.8} parent=0 // loop_header
    %s15 = sphi 0, %s19
    %p16 = scmp.ge.s32.totalorder %s15, 14
    %s22 = sphi 0, %s34
    %s23 = sphi 0, %s30
    %s24 = sphi 0, %s22
    %s25 = sphi 0, %s23
    %s26 = sphi 0, %s24
    %s27 = sphi 0, %s25
    %s39 = sphi 0, %s41
    %s42 = sphi 0, %s39
    %s43 = sphi 0, %s42
    %s59 = sphi 0, %s43
    %s63 = sphi 0, %s63
    %s65 = sphi 0, %s63
    %s66 = sphi 0, %s65
    %s80 = sphi 0, %s66
    %s84 = sphi 0, %s84
    %s86 = sphi 0, %s84
    %s87 = sphi 0, %s86
    %s101 = sphi 0, %s87
    %s105 = sphi 0, %s105
    %s107 = sphi 0, %s105
    %s108 = sphi 0, %s107
    %s122 = sphi 0, %s108
    %s126 = sphi 0, %s126
    %s128 = sphi 0, %s126
    %s129 = sphi 0, %s128
    %s143 = sphi 0, %s129
    %s149 = sphi 0, %s151
    %s152 = sphi 0, %s149
    %s153 = sphi 0, %s152
    %s169 = sphi 0, %s153
    %s175 = sphi 0, %s177
    %s178 = sphi 0, %s175
    %s179 = sphi 0, %s178
    %s195 = sphi 0, %s179
    %s201 = sphi 0, %s203
    %s204 = sphi 0, %s201
    %s205 = sphi 0, %s204
    %s221 = sphi 0, %s205
    %s227 = sphi 0, %s229
    %s230 = sphi 0, %s227
    %s231 = sphi 0, %s230
    %s247 = sphi 0, %s231
  $region4: #{pointnet_encoder.8} parent=0 // loop_header_branch
    %18 = sbr.rel (%p16) target = $region8
  $region5: #{pointnet_encoder.8} parent=0 // loop_body
    %s20 = ssub.s32 %s15, 1
    %s21 = ssub.s32 %s15, 2
    %s28 = sadd.s32 1, %s23
    %p29 = scmp.ge.s32.totalorder %s28, 3
    %s30 = scalar_select %p29, 0, %s28
    %s31 = sadd.s32 1, %s22
    %s32 = scalar_select %p29, %s31, %s22
    %p33 = scmp.ge.s32.totalorder %s32, 4
    %s34 = scalar_select %p33, 0, %s32
    %s35 = ssub.s32 %s22, %s34
    %s36 = ssub.s32 %s23, %s30
    %s37 = sor.u32 %s35, %s36
    %p38 = scmp.eq.s32.totalorder %s37, 0
    %s40 = sadd.s32 %s39, 1
    %s41 = scalar_select %p38, %s39, %s40
    %p44 = pneg %p38
    %p45 = scmp.eq.s32.totalorder %s15, 11
    %p46 = por %p44, %p45
    %p47 = scmp.ne.s32.totalorder %s39, %s42
    %p48 = scmp.eq.s32.totalorder %s15, 0
    %p49 = por %p47, %p48
    %p50 = scmp.ne.s32.totalorder %s39, %s42
    %p51 = scmp.eq.s32.totalorder %s20, 11
    %p52 = por %p50, %p51
    %p53 = scmp.ne.s32.totalorder %s42, %s43
    %p54 = scmp.eq.s32.totalorder %s20, 0
    %p55 = por %p53, %p54
    %p56 = scmp.ne.s32.totalorder %s42, %s43
    %p57 = scmp.eq.s32.totalorder %s21, 11
    %p58 = por %p56, %p57
    %p60 = scmp.ne.s32.totalorder %s43, %s59
    %p61 = scmp.eq.s32.totalorder %s21, 0
    %p62 = por %p60, %p61
    %s64 = sadd.s32 %s63, 1
    %p67 = scmp.eq.s32.totalorder %s15, 11
    %p68 = scmp.ne.s32.totalorder %s63, %s65
    %p69 = scmp.eq.s32.totalorder %s15, 0
    %p70 = por %p68, %p69
    %p71 = scmp.ne.s32.totalorder %s63, %s65
    %p72 = scmp.eq.s32.totalorder %s20, 11
    %p73 = por %p71, %p72
    %p74 = scmp.ne.s32.totalorder %s65, %s66
    %p75 = scmp.eq.s32.totalorder %s20, 0
    %p76 = por %p74, %p75
    %p77 = scmp.ne.s32.totalorder %s65, %s66
    %p78 = scmp.eq.s32.totalorder %s21, 11
    %p79 = por %p77, %p78
    %p81 = scmp.ne.s32.totalorder %s66, %s80
    %p82 = scmp.eq.s32.totalorder %s21, 0
    %p83 = por %p81, %p82
    %s85 = sadd.s32 %s84, 1
    %p88 = scmp.eq.s32.totalorder %s15, 11
    %p89 = scmp.ne.s32.totalorder %s84, %s86
    %p90 = scmp.eq.s32.totalorder %s15, 0
    %p91 = por %p89, %p90
    %p92 = scmp.ne.s32.totalorder %s84, %s86
    %p93 = scmp.eq.s32.totalorder %s20, 11
    %p94 = por %p92, %p93
    %p95 = scmp.ne.s32.totalorder %s86, %s87
    %p96 = scmp.eq.s32.totalorder %s20, 0
    %p97 = por %p95, %p96
    %p98 = scmp.ne.s32.totalorder %s86, %s87
    %p99 = scmp.eq.s32.totalorder %s21, 11
    %p100 = por %p98, %p99
    %p102 = scmp.ne.s32.totalorder %s87, %s101
    %p103 = scmp.eq.s32.totalorder %s21, 0
    %p104 = por %p102, %p103
    %s106 = sadd.s32 %s105, 1
    %p109 = scmp.eq.s32.totalorder %s15, 11
    %p110 = scmp.ne.s32.totalorder %s105, %s107
    %p111 = scmp.eq.s32.totalorder %s15, 0
    %p112 = por %p110, %p111
    %p113 = scmp.ne.s32.totalorder %s105, %s107
    %p114 = scmp.eq.s32.totalorder %s20, 11
    %p115 = por %p113, %p114
    %p116 = scmp.ne.s32.totalorder %s107, %s108
    %p117 = scmp.eq.s32.totalorder %s20, 0
    %p118 = por %p116, %p117
    %p119 = scmp.ne.s32.totalorder %s107, %s108
    %p120 = scmp.eq.s32.totalorder %s21, 11
    %p121 = por %p119, %p120
    %p123 = scmp.ne.s32.totalorder %s108, %s122
    %p124 = scmp.eq.s32.totalorder %s21, 0
    %p125 = por %p123, %p124
    %s127 = sadd.s32 %s126, 1
    %p130 = scmp.eq.s32.totalorder %s15, 11
    %p131 = scmp.ne.s32.totalorder %s126, %s128
    %p132 = scmp.eq.s32.totalorder %s15, 0
    %p133 = por %p131, %p132
    %p134 = scmp.ne.s32.totalorder %s126, %s128
    %p135 = scmp.eq.s32.totalorder %s20, 11
    %p136 = por %p134, %p135
    %p137 = scmp.ne.s32.totalorder %s128, %s129
    %p138 = scmp.eq.s32.totalorder %s20, 0
    %p139 = por %p137, %p138
    %p140 = scmp.ne.s32.totalorder %s128, %s129
    %p141 = scmp.eq.s32.totalorder %s21, 11
    %p142 = por %p140, %p141
    %p144 = scmp.ne.s32.totalorder %s129, %s143
    %p145 = scmp.eq.s32.totalorder %s21, 0
    %p146 = por %p144, %p145
    %s147 = ssub.s32 %s22, %s34
    %p148 = scmp.eq.s32.totalorder %s147, 0
    %s150 = sadd.s32 %s149, 1
    %s151 = scalar_select %p148, %s149, %s150
    %p154 = pneg %p148
    %p155 = scmp.eq.s32.totalorder %s15, 11
    %p156 = por %p154, %p155
    %p157 = scmp.ne.s32.totalorder %s149, %s152
    %p158 = scmp.eq.s32.totalorder %s15, 0
    %p159 = por %p157, %p158
    %p160 = scmp.ne.s32.totalorder %s149, %s152
    %p161 = scmp.eq.s32.totalorder %s20, 11
    %p162 = por %p160, %p161
    %p163 = scmp.ne.s32.totalorder %s152, %s153
    %p164 = scmp.eq.s32.totalorder %s20, 0
    %p165 = por %p163, %p164
    %p166 = scmp.ne.s32.totalorder %s152, %s153
    %p167 = scmp.eq.s32.totalorder %s21, 11
    %p168 = por %p166, %p167
    %p170 = scmp.ne.s32.totalorder %s153, %s169
    %p171 = scmp.eq.s32.totalorder %s21, 0
    %p172 = por %p170, %p171
    %s173 = ssub.s32 %s22, %s34
    %p174 = scmp.eq.s32.totalorder %s173, 0
    %s176 = sadd.s32 %s175, 1
    %s177 = scalar_select %p174, %s175, %s176
    %p180 = pneg %p174
    %p181 = scmp.eq.s32.totalorder %s15, 11
    %p182 = por %p180, %p181
    %p183 = scmp.ne.s32.totalorder %s175, %s178
    %p184 = scmp.eq.s32.totalorder %s15, 0
    %p185 = por %p183, %p184
    %p186 = scmp.ne.s32.totalorder %s175, %s178
    %p187 = scmp.eq.s32.totalorder %s20, 11
    %p188 = por %p186, %p187
    %p189 = scmp.ne.s32.totalorder %s178, %s179
    %p190 = scmp.eq.s32.totalorder %s20, 0
    %p191 = por %p189, %p190
    %p192 = scmp.ne.s32.totalorder %s178, %s179
    %p193 = scmp.eq.s32.totalorder %s21, 11
    %p194 = por %p192, %p193
    %p196 = scmp.ne.s32.totalorder %s179, %s195
    %p197 = scmp.eq.s32.totalorder %s21, 0
    %p198 = por %p196, %p197
    %s199 = ssub.s32 %s22, %s34
    %p200 = scmp.eq.s32.totalorder %s199, 0
    %s202 = sadd.s32 %s201, 1
    %s203 = scalar_select %p200, %s201, %s202
    %p206 = pneg %p200
    %p207 = scmp.eq.s32.totalorder %s15, 11
    %p208 = por %p206, %p207
    %p209 = scmp.ne.s32.totalorder %s201, %s204
    %p210 = scmp.eq.s32.totalorder %s15, 0
    %p211 = por %p209, %p210
    %p212 = scmp.ne.s32.totalorder %s201, %s204
    %p213 = scmp.eq.s32.totalorder %s20, 11
    %p214 = por %p212, %p213
    %p215 = scmp.ne.s32.totalorder %s204, %s205
    %p216 = scmp.eq.s32.totalorder %s20, 0
    %p217 = por %p215, %p216
    %p218 = scmp.ne.s32.totalorder %s204, %s205
    %p219 = scmp.eq.s32.totalorder %s21, 11
    %p220 = por %p218, %p219
    %p222 = scmp.ne.s32.totalorder %s205, %s221
    %p223 = scmp.eq.s32.totalorder %s21, 0
    %p224 = por %p222, %p223
    %s225 = ssub.s32 %s22, %s34
    %p226 = scmp.eq.s32.totalorder %s225, 0
    %s228 = sadd.s32 %s227, 1
    %s229 = scalar_select %p226, %s227, %s228
    %p232 = pneg %p226
    %p233 = scmp.eq.s32.totalorder %s15, 11
    %p234 = por %p232, %p233
    %p235 = scmp.ne.s32.totalorder %s227, %s230
    %p236 = scmp.eq.s32.totalorder %s15, 0
    %p237 = por %p235, %p236
    %p238 = scmp.ne.s32.totalorder %s227, %s230
    %p239 = scmp.eq.s32.totalorder %s20, 11
    %p240 = por %p238, %p239
    %p241 = scmp.ne.s32.totalorder %s230, %s231
    %p242 = scmp.eq.s32.totalorder %s20, 0
    %p243 = por %p241, %p242
    %p244 = scmp.ne.s32.totalorder %s230, %s231
    %p245 = scmp.eq.s32.totalorder %s21, 11
    %p246 = por %p244, %p245
    %p248 = scmp.ne.s32.totalorder %s231, %s247
    %p249 = scmp.eq.s32.totalorder %s21, 0
    %p250 = por %p248, %p249
    %p251 = scmp.le.s32.totalorder 1, %s15
    %p252 = scmp.lt.s32.totalorder %s15, 13
    %p253 = pnand %p251, %p252
    %p254 = pneg %p253
    // Predicated region
    $region9: #{pointnet_encoder.8} parent=5 // pred_check
      _
    $region10: #{pointnet_encoder.8} parent=5 // pred_check_branch
      %256 = sbr.rel (%p253) target = $region12
    $region11: #{pointnet_encoder.8} parent=5 // pred_region
      %s257 = ssub.s32 %s15, 1
      // Predicated region
      $region13: #{pointnet_encoder.8} parent=11 // pred_check
        %p258 = pneg %p76
      $region14: #{pointnet_encoder.8} parent=11 // pred_check_branch
        %260 = sbr.rel (%p258) target = $region16
      $region15: #{pointnet_encoder.8} parent=11 // pred_region
        _
      $region16: #{pointnet_encoder.8} parent=11 // pred_fallthru
        _
      // Predicated region
      $region17: #{pointnet_encoder.8} parent=11 // pred_check
        %p261 = pneg %p97
      $region18: #{pointnet_encoder.8} parent=11 // pred_check_branch
        %263 = sbr.rel (%p261) target = $region20
      $region19: #{pointnet_encoder.8} parent=11 // pred_region
        _
      $region20: #{pointnet_encoder.8} parent=11 // pred_fallthru
        _
      // Predicated region
      $region21: #{pointnet_encoder.8} parent=11 // pred_check
        %p264 = pneg %p118
      $region22: #{pointnet_encoder.8} parent=11 // pred_check_branch
        %266 = sbr.rel (%p264) target = $region24
      $region23: #{pointnet_encoder.8} parent=11 // pred_region
        _
      $region24: #{pointnet_encoder.8} parent=11 // pred_fallthru
        _
      // Predicated region
      $region25: #{pointnet_encoder.8} parent=11 // pred_check
        %p267 = pneg %p139
      $region26: #{pointnet_encoder.8} parent=11 // pred_check_branch
        %269 = sbr.rel (%p267) target = $region28
      $region27: #{pointnet_encoder.8} parent=11 // pred_region
        _
      $region28: #{pointnet_encoder.8} parent=11 // pred_fallthru
        _
    $region12: #{pointnet_encoder.8} parent=5 // pred_fallthru
      _
    %p270 = scmp.lt.s32.totalorder %s15, 12
    // Predicated region
    $region29: #{pointnet_encoder.8} parent=5 // pred_check
      %p271 = pneg %p270
    $region30: #{pointnet_encoder.8} parent=5 // pred_check_branch
      %273 = sbr.rel (%p271) target = $region32
    $region31: #{pointnet_encoder.8} parent=5 // pred_region
      // Predicated region
      $region33: #{pointnet_encoder.8} parent=31 // pred_check
        %p274 = pneg %p49
      $region34: #{pointnet_encoder.8} parent=31 // pred_check_branch
        %276 = sbr.rel (%p274) target = $region36
      $region35: #{pointnet_encoder.8} parent=31 // pred_region
        %s277 = smul.u32 2, %s23
        %s278 = ssub.s32 5, %s277
        %p279 = scmp.lt.s32.totalorder %s278, 2
        %s280 = scalar_select %p279, %s278, 2
        %s281 = smul.u32 4, %s280
        %s282 = smul.u32 %s281, 2
        %p283 = scmp.lt.s32.totalorder %s22, 3
        %s284 = scalar_select %p283, %s22, 3
        %p285 = scmp.lt.s32.totalorder %s277, 4
        %s286 = scalar_select %p285, %s277, 4
        %s287 = smul.addr %s286, 2
        %s288 = smul.addr %s284, 10
        %s289 = sadd.s32 %s287, %s288
        %s290 = smul.addr %s289, 4
        %s291 = scalar_lea.vmem %s0, %s290
        %s292 = smul.u32 2, %s23
        %s293 = ssub.s32 5, %s292
        %p294 = scmp.lt.s32.totalorder %s293, 2
        %s295 = scalar_select %p294, %s293, 2
        %s296 = smul.u32 4, %s295
        %s297 = smul.u32 %s296, 2
      $region36: #{pointnet_encoder.8} parent=31 // pred_fallthru
        _
    $region32: #{pointnet_encoder.8} parent=5 // pred_fallthru
      _
    %p298 = scmp.le.s32.totalorder 1, %s15
    %p299 = scmp.lt.s32.totalorder %s15, 13
    %p300 = pnand %p298, %p299
    %p301 = pneg %p300
    // Predicated region
    $region37: #{pointnet_encoder.8} parent=5 // pred_check
      _
    $region38: #{pointnet_encoder.8} parent=5 // pred_check_branch
      %303 = sbr.rel (%p300) target = $region40
    $region39: #{pointnet_encoder.8} parent=5 // pred_region
      %s304 = ssub.s32 %s15, 1
      %s305 = smul.u32 2, %s25
      %s306 = ssub.s32 5, %s305
      %p307 = scmp.lt.s32.totalorder %s306, 2
      %s308 = scalar_select %p307, %s306, 2
      %s309 = smul.u32 4, %s308
      %s310 = smul.u32 %s309, 2
      %p311 = scmp.lt.s32.totalorder %s24, 3
      %s312 = scalar_select %p311, %s24, 3
      %p313 = scmp.lt.s32.totalorder %s305, 4
      %s314 = scalar_select %p313, %s305, 4
      %s315 = smul.addr %s314, 2
      %s316 = smul.addr %s312, 10
      %s317 = sadd.s32 %s315, %s316
      %s318 = smul.addr %s317, 4
      %s319 = scalar_lea.vmem %s0, %s318
      %p320 = pneg %p55
      %p321 = pneg %p52
      %p322 = pneg %p76
      %p323 = pneg %p73
      %p324 = pneg %p97
      %p325 = pneg %p94
      %p326 = pneg %p118
      %p327 = pneg %p115
      %p328 = pneg %p139
      %p329 = pneg %p136
      %p330 = pneg %p165
      %p331 = pneg %p162
      %p332 = scmp.lt.s32.totalorder %s24, 3
      %s333 = scalar_select %p332, %s24, 3
      %s334 = smul.addr %s333, 4
      %s335 = scalar_lea.vmem %s5, %s334
      %p336 = pneg %p191
      %p337 = pneg %p188
      %p338 = scmp.lt.s32.totalorder %s24, 3
      %s339 = scalar_select %p338, %s24, 3
      %s340 = smul.addr %s339, 4
      %s341 = scalar_lea.vmem %s6, %s340
      %p342 = pneg %p217
      %p343 = pneg %p214
      %p344 = scmp.lt.s32.totalorder %s24, 3
      %s345 = scalar_select %p344, %s24, 3
      %s346 = smul.addr %s345, 4
      %s347 = scalar_lea.vmem %s7, %s346
      %p348 = pneg %p243
      %p349 = pneg %p240
      %p350 = scmp.lt.s32.totalorder %s24, 3
      %s351 = scalar_select %p350, %s24, 3
      %s352 = smul.addr %s351, 4
      %s353 = scalar_lea.vmem %s8, %s352
      %s354 = smul.u32 2, %s25
      %s355 = ssub.s32 5, %s354
      %p356 = scmp.lt.s32.totalorder %s355, 2
      %s357 = scalar_select %p356, %s355, 2
      %s358 = smul.u32 4, %s357
      %s359 = smul.u32 %s358, 2
      %p360 = scmp.lt.s32.totalorder %s24, 3
      %s361 = scalar_select %p360, %s24, 3
      %p362 = scmp.lt.s32.totalorder %s354, 4
      %s363 = scalar_select %p362, %s354, 4
      %s364 = smul.addr %s363, 2
      %s365 = smul.addr %s361, 10
      %s366 = sadd.s32 %s364, %s365
      %s367 = smul.addr %s366, 4
      %s368 = scalar_lea.vmem %s0, %s367
      %s369 = smul.u32 2, %s25
      %s370 = ssub.s32 5, %s369
      %p371 = scmp.lt.s32.totalorder %s370, 2
      %s372 = scalar_select %p371, %s370, 2
      %s373 = smul.u32 4, %s372
      %s374 = smul.u32 %s373, 2
      %p375 = scmp.lt.s32.totalorder %s24, 3
      %s376 = scalar_select %p375, %s24, 3
      %s377 = smul.addr %s376, 4
      %s378 = scalar_lea.vmem %s5, %s377
      %p379 = scmp.lt.s32.totalorder %s24, 3
      %s380 = scalar_select %p379, %s24, 3
      %s381 = smul.addr %s380, 4
      %s382 = scalar_lea.vmem %s6, %s381
      %p383 = scmp.lt.s32.totalorder %s24, 3
      %s384 = scalar_select %p383, %s24, 3
      %s385 = smul.addr %s384, 4
      %s386 = scalar_lea.vmem %s7, %s385
      %p387 = scmp.lt.s32.totalorder %s24, 3
      %s388 = scalar_select %p387, %s24, 3
      %s389 = smul.addr %s388, 4
      %s390 = scalar_lea.vmem %s8, %s389
      %p391 = scmp.eq.s32.totalorder %s25, 0
      // Predicated region
      $region41: #{pointnet_encoder.8} parent=39 // pred_check
        %p392 = pneg %p391
      $region42: #{pointnet_encoder.8} parent=39 // pred_check_branch
        %394 = sbr.rel (%p392) target = $region44
      $region43: #{pointnet_encoder.8} parent=39 // pred_region
        %v395 = vlaneseq
        %vm396 = vcmp.ge.s32.totalorder %v395, 0
        %vm397 = vcmp.lt.s32.totalorder %v395, 512
        %vm398 = vmand %vm396, %vm397
        %399 = vst.msk [vmem:[%s378] sm:$0xf] %vm398, -inf
        %400 = vst.msk [vmem:[%s382] sm:$0xf] %vm398, inf
        %401 = vst.msk [vmem:[%s386] sm:$0xf] %vm398, 0.0
        %402 = vst.msk [vmem:[%s390] sm:$0xf] %vm398, 0.0
      $region44: #{pointnet_encoder.8} parent=39 // pred_fallthru
        _
      %v403 = vld [vmem:[%s368] sm:$0xff]
      %v404 = vld [vmem:[%s368 + $0x8] sm:$0xff]
      %v405 = vunpack.c.l.bf16 %v403
      %v406 = vunpack.c.h.bf16 %v403
      %v407 = vunpack.c.l.bf16 %v404
      %v408 = vunpack.c.h.bf16 %v404
      %v409 = vld [vmem:[%s1] sm:$0x3]
      %v411 = vperm.slane %v409, 0
      %v412 = vperm.slane %v409, 1
      %v415 = vmul.f32 %v405, %v411
      %v416 = vmul.f32 %v406, %v412
      %v417 = vmul.f32 %v407, %v411
      %v418 = vmul.f32 %v408, %v412
      %v419 = vld [vmem:[%s2] sm:$0x3]
      %v421 = vperm.slane %v419, 0
      %v422 = vperm.slane %v419, 1
      %v425 = vadd.f32 %v415, %v421
      %v426 = vadd.f32 %v416, %v422
      %v427 = vadd.f32 %v417, %v421
      %v428 = vadd.f32 %v418, %v422
      %v429 = vmax.f32 %v425, 0.0
      %v430 = vmax.f32 %v426, 0.0
      %v431 = vmax.f32 %v427, 0.0
      %v432 = vmax.f32 %v428, 0.0
      %v433 = vpack.c.bf16 %v431, %v429
      %v434 = vpack.c.bf16 %v432, %v430
      %v435 = vld [vmem:[%s3] sm:$0xff]
      %v436 = vld [vmem:[%s3 + $0x8] sm:$0xff]
      %v437 = vld [vmem:[%s3 + $0x10] sm:$0xff]
      %v438 = vld [vmem:[%s3 + $0x18] sm:$0xff]
      %v439 = vld [vmem:[%s3 + $0x20] sm:$0xff]
      %v440 = vld [vmem:[%s3 + $0x28] sm:$0xff]
      %v441 = vld [vmem:[%s3 + $0x30] sm:$0xff]
      %v442 = vld [vmem:[%s3 + $0x38] sm:$0xff]
      %v443 = vld [vmem:[%s3 + $0x40] sm:$0xff]
      %v444 = vld [vmem:[%s3 + $0x48] sm:$0xff]
      %v445 = vld [vmem:[%s3 + $0x50] sm:$0xff]
      %v446 = vld [vmem:[%s3 + $0x58] sm:$0xff]
      %v447 = vld [vmem:[%s3 + $0x60] sm:$0xff]
      %v448 = vld [vmem:[%s3 + $0x68] sm:$0xff]
      %v449 = vld [vmem:[%s3 + $0x70] sm:$0xff]
      %v450 = vld [vmem:[%s3 + $0x78] sm:$0xff]
      %v451 = vld [vmem:[%s3 + $0x80] sm:$0xff]
      %v452 = vld [vmem:[%s3 + $0x88] sm:$0xff]
      %v453 = vld [vmem:[%s3 + $0x90] sm:$0xff]
      %v454 = vld [vmem:[%s3 + $0x98] sm:$0xff]
      %v455 = vld [vmem:[%s3 + $0xa0] sm:$0xff]
      %v456 = vld [vmem:[%s3 + $0xa8] sm:$0xff]
      %v457 = vld [vmem:[%s3 + $0xb0] sm:$0xff]
      %v458 = vld [vmem:[%s3 + $0xb8] sm:$0xff]
      %v459 = vld [vmem:[%s3 + $0xc0] sm:$0xff]
      %v460 = vld [vmem:[%s3 + $0xc8] sm:$0xff]
      %v461 = vld [vmem:[%s3 + $0xd0] sm:$0xff]
      %v462 = vld [vmem:[%s3 + $0xd8] sm:$0xff]
      %v463 = vld [vmem:[%s3 + $0xe0] sm:$0xff]
      %v464 = vld [vmem:[%s3 + $0xe8] sm:$0xff]
      %v465 = vld [vmem:[%s3 + $0xf0] sm:$0xff]
      %v466 = vld [vmem:[%s3 + $0xf8] sm:$0xff]
      %v467 = vld [vmem:[%s3 + $0x100] sm:$0xff]
      %v468 = vld [vmem:[%s3 + $0x108] sm:$0xff]
      %v469 = vld [vmem:[%s3 + $0x110] sm:$0xff]
      %v470 = vld [vmem:[%s3 + $0x118] sm:$0xff]
      %v471 = vld [vmem:[%s3 + $0x120] sm:$0xff]
      %v472 = vld [vmem:[%s3 + $0x128] sm:$0xff]
      %v473 = vld [vmem:[%s3 + $0x130] sm:$0xff]
      %v474 = vld [vmem:[%s3 + $0x138] sm:$0xff]
      %v475 = vld [vmem:[%s3 + $0x140] sm:$0xff]
      %v476 = vld [vmem:[%s3 + $0x148] sm:$0xff]
      %v477 = vld [vmem:[%s3 + $0x150] sm:$0xff]
      %v478 = vld [vmem:[%s3 + $0x158] sm:$0xff]
      %v479 = vld [vmem:[%s3 + $0x160] sm:$0xff]
      %v480 = vld [vmem:[%s3 + $0x168] sm:$0xff]
      %v481 = vld [vmem:[%s3 + $0x170] sm:$0xff]
      %v482 = vld [vmem:[%s3 + $0x178] sm:$0xff]
      %v483 = vld [vmem:[%s3 + $0x180] sm:$0xff]
      %v484 = vld [vmem:[%s3 + $0x188] sm:$0xff]
      %v485 = vld [vmem:[%s3 + $0x190] sm:$0xff]
      %v486 = vld [vmem:[%s3 + $0x198] sm:$0xff]
      %v487 = vld [vmem:[%s3 + $0x1a0] sm:$0xff]
      %v488 = vld [vmem:[%s3 + $0x1a8] sm:$0xff]
      %v489 = vld [vmem:[%s3 + $0x1b0] sm:$0xff]
      %v490 = vld [vmem:[%s3 + $0x1b8] sm:$0xff]
      %v491 = vld [vmem:[%s3 + $0x1c0] sm:$0xff]
      %v492 = vld [vmem:[%s3 + $0x1c8] sm:$0xff]
      %v493 = vld [vmem:[%s3 + $0x1d0] sm:$0xff]
      %v494 = vld [vmem:[%s3 + $0x1d8] sm:$0xff]
      %v495 = vld [vmem:[%s3 + $0x1e0] sm:$0xff]
      %v496 = vld [vmem:[%s3 + $0x1e8] sm:$0xff]
      %v497 = vld [vmem:[%s3 + $0x1f0] sm:$0xff]
      %v498 = vld [vmem:[%s3 + $0x1f8] sm:$0xff]
      %v499 = vld [vmem:[%s4] sm:$0xf]
      %v501 = vperm.slane %v499, 0
      %v502 = vperm.slane %v499, 1
      %v503 = vperm.slane %v499, 2
      %v504 = vperm.slane %v499, 3
      %v573 = vunpack.c.l.b16 %v435
      %v574 = vunpack.c.h.b16 %v435
      %v575 = vunpack.c.l.b16 %v436
      %v576 = vunpack.c.h.b16 %v436
      %v577 = vunpack.c.l.b16 %v437
      %v578 = vunpack.c.h.b16 %v437
      %v579 = vunpack.c.l.b16 %v438
      %v580 = vunpack.c.h.b16 %v438
      %v581 = vunpack.c.l.b16 %v439
      %v582 = vunpack.c.h.b16 %v439
      %v583 = vunpack.c.l.b16 %v440
      %v584 = vunpack.c.h.b16 %v440
      %v585 = vunpack.c.l.b16 %v441
      %v586 = vunpack.c.h.b16 %v441
      %v587 = vunpack.c.l.b16 %v442
      %v588 = vunpack.c.h.b16 %v442
      %v589 = vunpack.c.l.b16 %v443
      %v590 = vunpack.c.h.b16 %v443
      %v591 = vunpack.c.l.b16 %v444
      %v592 = vunpack.c.h.b16 %v444
      %v593 = vunpack.c.l.b16 %v445
      %v594 = vunpack.c.h.b16 %v445
      %v595 = vunpack.c.l.b16 %v446
      %v596 = vunpack.c.h.b16 %v446
      %v597 = vunpack.c.l.b16 %v447
      %v598 = vunpack.c.h.b16 %v447
      %v599 = vunpack.c.l.b16 %v448
      %v600 = vunpack.c.h.b16 %v448
      %v601 = vunpack.c.l.b16 %v449
      %v602 = vunpack.c.h.b16 %v449
      %v603 = vunpack.c.l.b16 %v450
      %v604 = vunpack.c.h.b16 %v450
      %v605 = vunpack.c.l.b16 %v451
      %v606 = vunpack.c.h.b16 %v451
      %v607 = vunpack.c.l.b16 %v452
      %v608 = vunpack.c.h.b16 %v452
      %v609 = vunpack.c.l.b16 %v453
      %v610 = vunpack.c.h.b16 %v453
      %v611 = vunpack.c.l.b16 %v454
      %v612 = vunpack.c.h.b16 %v454
      %v613 = vunpack.c.l.b16 %v455
      %v614 = vunpack.c.h.b16 %v455
      %v615 = vunpack.c.l.b16 %v456
      %v616 = vunpack.c.h.b16 %v456
      %v617 = vunpack.c.l.b16 %v457
      %v618 = vunpack.c.h.b16 %v457
      %v619 = vunpack.c.l.b16 %v458
      %v620 = vunpack.c.h.b16 %v458
      %v621 = vunpack.c.l.b16 %v459
      %v622 = vunpack.c.h.b16 %v459
      %v623 = vunpack.c.l.b16 %v460
      %v624 = vunpack.c.h.b16 %v460
      %v625 = vunpack.c.l.b16 %v461
      %v626 = vunpack.c.h.b16 %v461
      %v627 = vunpack.c.l.b16 %v462
      %v628 = vunpack.c.h.b16 %v462
      %v629 = vunpack.c.l.b16 %v463
      %v630 = vunpack.c.h.b16 %v463
      %v631 = vunpack.c.l.b16 %v464
      %v632 = vunpack.c.h.b16 %v464
      %v633 = vunpack.c.l.b16 %v465
      %v634 = vunpack.c.h.b16 %v465
      %v635 = vunpack.c.l.b16 %v466
      %v636 = vunpack.c.h.b16 %v466
      %v637 = vunpack.c.l.b16 %v467
      %v638 = vunpack.c.h.b16 %v467
      %v639 = vunpack.c.l.b16 %v468
      %v640 = vunpack.c.h.b16 %v468
      %v641 = vunpack.c.l.b16 %v469
      %v642 = vunpack.c.h.b16 %v469
      %v643 = vunpack.c.l.b16 %v470
      %v644 = vunpack.c.h.b16 %v470
      %v645 = vunpack.c.l.b16 %v471
      %v646 = vunpack.c.h.b16 %v471
      %v647 = vunpack.c.l.b16 %v472
      %v648 = vunpack.c.h.b16 %v472
      %v649 = vunpack.c.l.b16 %v473
      %v650 = vunpack.c.h.b16 %v473
      %v651 = vunpack.c.l.b16 %v474
      %v652 = vunpack.c.h.b16 %v474
      %v653 = vunpack.c.l.b16 %v475
      %v654 = vunpack.c.h.b16 %v475
      %v655 = vunpack.c.l.b16 %v476
      %v656 = vunpack.c.h.b16 %v476
      %v657 = vunpack.c.l.b16 %v477
      %v658 = vunpack.c.h.b16 %v477
      %v659 = vunpack.c.l.b16 %v478
      %v660 = vunpack.c.h.b16 %v478
      %v661 = vunpack.c.l.b16 %v479
      %v662 = vunpack.c.h.b16 %v479
      %v663 = vunpack.c.l.b16 %v480
      %v664 = vunpack.c.h.b16 %v480
      %v665 = vunpack.c.l.b16 %v481
      %v666 = vunpack.c.h.b16 %v481
      %v667 = vunpack.c.l.b16 %v482
      %v668 = vunpack.c.h.b16 %v482
      %v669 = vunpack.c.l.b16 %v483
      %v670 = vunpack.c.h.b16 %v483
      %v671 = vunpack.c.l.b16 %v484
      %v672 = vunpack.c.h.b16 %v484
      %v673 = vunpack.c.l.b16 %v485
      %v674 = vunpack.c.h.b16 %v485
      %v675 = vunpack.c.l.b16 %v486
      %v676 = vunpack.c.h.b16 %v486
      %v677 = vunpack.c.l.b16 %v487
      %v678 = vunpack.c.h.b16 %v487
      %v679 = vunpack.c.l.b16 %v488
      %v680 = vunpack.c.h.b16 %v488
      %v681 = vunpack.c.l.b16 %v489
      %v682 = vunpack.c.h.b16 %v489
      %v683 = vunpack.c.l.b16 %v490
      %v684 = vunpack.c.h.b16 %v490
      %v685 = vunpack.c.l.b16 %v491
      %v686 = vunpack.c.h.b16 %v491
      %v687 = vunpack.c.l.b16 %v492
      %v688 = vunpack.c.h.b16 %v492
      %v689 = vunpack.c.l.b16 %v493
      %v690 = vunpack.c.h.b16 %v493
      %v691 = vunpack.c.l.b16 %v494
      %v692 = vunpack.c.h.b16 %v494
      %v693 = vunpack.c.l.b16 %v495
      %v694 = vunpack.c.h.b16 %v495
      %v695 = vunpack.c.l.b16 %v496
      %v696 = vunpack.c.h.b16 %v496
      %v697 = vunpack.c.l.b16 %v497
      %v698 = vunpack.c.h.b16 %v497
      %v699 = vunpack.c.l.b16 %v498
      %v700 = vunpack.c.h.b16 %v498
      %v701 = vpack.c.b16 %v577, %v573
      %v702 = vpack.c.b16 %v578, %v574
      %v703 = vpack.c.b16 %v579, %v575
      %v704 = vpack.c.b16 %v580, %v576
      %v705 = vpack.c.b16 %v585, %v581
      %v706 = vpack.c.b16 %v586, %v582
      %v707 = vpack.c.b16 %v587, %v583
      %v708 = vpack.c.b16 %v588, %v584
      %v709 = vpack.c.b16 %v593, %v589
      %v710 = vpack.c.b16 %v594, %v590
      %v711 = vpack.c.b16 %v595, %v591
      %v712 = vpack.c.b16 %v596, %v592
      %v713 = vpack.c.b16 %v601, %v597
      %v714 = vpack.c.b16 %v602, %v598
      %v715 = vpack.c.b16 %v603, %v599
      %v716 = vpack.c.b16 %v604, %v600
      %v717 = vpack.c.b16 %v609, %v605
      %v718 = vpack.c.b16 %v610, %v606
      %v719 = vpack.c.b16 %v611, %v607
      %v720 = vpack.c.b16 %v612, %v608
      %v721 = vpack.c.b16 %v617, %v613
      %v722 = vpack.c.b16 %v618, %v614
      %v723 = vpack.c.b16 %v619, %v615
      %v724 = vpack.c.b16 %v620, %v616
      %v725 = vpack.c.b16 %v625, %v621
      %v726 = vpack.c.b16 %v626, %v622
      %v727 = vpack.c.b16 %v627, %v623
      %v728 = vpack.c.b16 %v628, %v624
      %v729 = vpack.c.b16 %v633, %v629
      %v730 = vpack.c.b16 %v634, %v630
      %v731 = vpack.c.b16 %v635, %v631
      %v732 = vpack.c.b16 %v636, %v632
      %v733 = vpack.c.b16 %v641, %v637
      %v734 = vpack.c.b16 %v642, %v638
      %v735 = vpack.c.b16 %v643, %v639
      %v736 = vpack.c.b16 %v644, %v640
      %v737 = vpack.c.b16 %v649, %v645
      %v738 = vpack.c.b16 %v650, %v646
      %v739 = vpack.c.b16 %v651, %v647
      %v740 = vpack.c.b16 %v652, %v648
      %v741 = vpack.c.b16 %v657, %v653
      %v742 = vpack.c.b16 %v658, %v654
      %v743 = vpack.c.b16 %v659, %v655
      %v744 = vpack.c.b16 %v660, %v656
      %v745 = vpack.c.b16 %v665, %v661
      %v746 = vpack.c.b16 %v666, %v662
      %v747 = vpack.c.b16 %v667, %v663
      %v748 = vpack.c.b16 %v668, %v664
      %v749 = vpack.c.b16 %v673, %v669
      %v750 = vpack.c.b16 %v674, %v670
      %v751 = vpack.c.b16 %v675, %v671
      %v752 = vpack.c.b16 %v676, %v672
      %v753 = vpack.c.b16 %v681, %v677
      %v754 = vpack.c.b16 %v682, %v678
      %v755 = vpack.c.b16 %v683, %v679
      %v756 = vpack.c.b16 %v684, %v680
      %v757 = vpack.c.b16 %v689, %v685
      %v758 = vpack.c.b16 %v690, %v686
      %v759 = vpack.c.b16 %v691, %v687
      %v760 = vpack.c.b16 %v692, %v688
      %v761 = vpack.c.b16 %v697, %v693
      %v762 = vpack.c.b16 %v698, %v694
      %v763 = vpack.c.b16 %v699, %v695
      %v764 = vpack.c.b16 %v700, %v696
      %829 = vmatpush.bf16.msra.mxu0 %v729
      %830 = vmatpush.bf16.msra.mxu0 %v725
      %831 = vmatpush.bf16.msra.mxu0 %v721
      %832 = vmatpush.bf16.msra.mxu0 %v717
      %833 = vmatpush.bf16.msra.mxu0 %v713
      %834 = vmatpush.bf16.msra.mxu0 %v709
      %835 = vmatpush.bf16.msra.mxu0 %v705
      %836 = vmatpush.bf16.msra.mxu0 %v701
      %837 = vmatmul.bf16.gmra.mxu0 %v433
      %v838 = vpop.f32.mrf.mxu0
      %v839 = vadd.f32 %v501, %v838
      %v840 = vpop.f32.mrf.mxu0
      %v841 = vadd.f32 %v501, %v840
      %842 = vdwg.mxu0
      %843 = vmatpush.bf16.msra.mxu0 %v761
      %844 = vmatpush.bf16.msra.mxu0 %v757
      %845 = vmatpush.bf16.msra.mxu0 %v753
      %846 = vmatpush.bf16.msra.mxu0 %v749
      %847 = vmatpush.bf16.msra.mxu0 %v745
      %848 = vmatpush.bf16.msra.mxu0 %v741
      %849 = vmatpush.bf16.msra.mxu0 %v737
      %850 = vmatpush.bf16.msra.mxu0 %v733
      %851 = vmatmul.bf16.gmra.mxu0 %v434
      %v852 = vpop.f32.mrf.mxu0
      %v853 = vadd.f32 %v839, %v852
      %v854 = vpop.f32.mrf.mxu0
      %v855 = vadd.f32 %v841, %v854
      %856 = vdwg.mxu0
      %857 = vmatpush.bf16.msra.mxu0 %v730
      %858 = vmatpush.bf16.msra.mxu0 %v726
      %859 = vmatpush.bf16.msra.mxu0 %v722
      %860 = vmatpush.bf16.msra.mxu0 %v718
      %861 = vmatpush.bf16.msra.mxu0 %v714
      %862 = vmatpush.bf16.msra.mxu0 %v710
      %863 = vmatpush.bf16.msra.mxu0 %v706
      %864 = vmatpush.bf16.msra.mxu0 %v702
      %865 = vmatmul.bf16.gmra.mxu0 %v433
      %v866 = vpop.f32.mrf.mxu0
      %v867 = vadd.f32 %v502, %v866
      %v868 = vpop.f32.mrf.mxu0
      %v869 = vadd.f32 %v502, %v868
      %870 = vdwg.mxu0
      %871 = vmatpush.bf16.msra.mxu0 %v762
      %872 = vmatpush.bf16.msra.mxu0 %v758
      %873 = vmatpush.bf16.msra.mxu0 %v754
      %874 = vmatpush.bf16.msra.mxu0 %v750
      %875 = vmatpush.bf16.msra.mxu0 %v746
      %876 = vmatpush.bf16.msra.mxu0 %v742
      %877 = vmatpush.bf16.msra.mxu0 %v738
      %878 = vmatpush.bf16.msra.mxu0 %v734
      %879 = vmatmul.bf16.gmra.mxu0 %v434
      %v880 = vpop.f32.mrf.mxu0
      %v881 = vadd.f32 %v867, %v880
      %v882 = vpop.f32.mrf.mxu0
      %v883 = vadd.f32 %v869, %v882
      %884 = vdwg.mxu0
      %885 = vmatpush.bf16.msra.mxu0 %v731
      %886 = vmatpush.bf16.msra.mxu0 %v727
      %887 = vmatpush.bf16.msra.mxu0 %v723
      %888 = vmatpush.bf16.msra.mxu0 %v719
      %889 = vmatpush.bf16.msra.mxu0 %v715
      %890 = vmatpush.bf16.msra.mxu0 %v711
      %891 = vmatpush.bf16.msra.mxu0 %v707
      %892 = vmatpush.bf16.msra.mxu0 %v703
      %893 = vmatmul.bf16.gmra.mxu0 %v433
      %v894 = vpop.f32.mrf.mxu0
      %v895 = vadd.f32 %v503, %v894
      %v896 = vpop.f32.mrf.mxu0
      %v897 = vadd.f32 %v503, %v896
      %898 = vdwg.mxu0
      %899 = vmatpush.bf16.msra.mxu0 %v763
      %900 = vmatpush.bf16.msra.mxu0 %v759
      %901 = vmatpush.bf16.msra.mxu0 %v755
      %902 = vmatpush.bf16.msra.mxu0 %v751
      %903 = vmatpush.bf16.msra.mxu0 %v747
      %904 = vmatpush.bf16.msra.mxu0 %v743
      %905 = vmatpush.bf16.msra.mxu0 %v739
      %906 = vmatpush.bf16.msra.mxu0 %v735
      %907 = vmatmul.bf16.gmra.mxu0 %v434
      %v908 = vpop.f32.mrf.mxu0
      %v909 = vadd.f32 %v895, %v908
      %v910 = vpop.f32.mrf.mxu0
      %v911 = vadd.f32 %v897, %v910
      %912 = vdwg.mxu0
      %913 = vmatpush.bf16.msra.mxu0 %v732
      %914 = vmatpush.bf16.msra.mxu0 %v728
      %915 = vmatpush.bf16.msra.mxu0 %v724
      %916 = vmatpush.bf16.msra.mxu0 %v720
      %917 = vmatpush.bf16.msra.mxu0 %v716
      %918 = vmatpush.bf16.msra.mxu0 %v712
      %919 = vmatpush.bf16.msra.mxu0 %v708
      %920 = vmatpush.bf16.msra.mxu0 %v704
      %921 = vmatmul.bf16.gmra.mxu0 %v433
      %v922 = vpop.f32.mrf.mxu0
      %v923 = vadd.f32 %v504, %v922
      %v924 = vpop.f32.mrf.mxu0
      %v925 = vadd.f32 %v504, %v924
      %926 = vdwg.mxu0
      %927 = vmatpush.bf16.msra.mxu0 %v764
      %928 = vmatpush.bf16.msra.mxu0 %v760
      %929 = vmatpush.bf16.msra.mxu0 %v756
      %930 = vmatpush.bf16.msra.mxu0 %v752
      %931 = vmatpush.bf16.msra.mxu0 %v748
      %932 = vmatpush.bf16.msra.mxu0 %v744
      %933 = vmatpush.bf16.msra.mxu0 %v740
      %934 = vmatpush.bf16.msra.mxu0 %v736
      %935 = vmatmul.bf16.gmra.mxu0 %v434
      %v936 = vpop.f32.mrf.mxu0
      %v937 = vadd.f32 %v923, %v936
      %v938 = vpop.f32.mrf.mxu0
      %v939 = vadd.f32 %v925, %v938
      %940 = vdwg.mxu0
      %s941 = smul.u32 %s25, 16
      %v942 = vlaneseq
      %v943 = vshrl.u32 %v942, 7
      %v944 = vadd.s32 %v943, 8
      %v945 = vstv %s941
      %v946 = vadd.s32 %v943, %v945
      %v947 = vadd.s32 %v944, %v945
      %vm948 = vcmp.lt.s32.totalorder %v946, 40
      %vm949 = vcmp.lt.s32.totalorder %v947, 40
      %v950 = vsel %vm948, %v853, 0.0
      %v951 = vsel %vm948, %v881, 0.0
      %v952 = vsel %vm948, %v909, 0.0
      %v953 = vsel %vm948, %v937, 0.0
      %v954 = vsel %vm949, %v855, 0.0
      %v955 = vsel %vm949, %v883, 0.0
      %v956 = vsel %vm949, %v911, 0.0
      %v957 = vsel %vm949, %v939, 0.0
      %v958 = vsel %vm948, %v853, -inf
      %v959 = vsel %vm948, %v881, -inf
      %v960 = vsel %vm948, %v909, -inf
      %v961 = vsel %vm948, %v937, -inf
      %v962 = vsel %vm949, %v855, -inf
      %v963 = vsel %vm949, %v883, -inf
      %v964 = vsel %vm949, %v911, -inf
      %v965 = vsel %vm949, %v939, -inf
      %v966 = vsel %vm948, %v853, inf
      %v967 = vsel %vm948, %v881, inf
      %v968 = vsel %vm948, %v909, inf
      %v969 = vsel %vm948, %v937, inf
      %v970 = vsel %vm949, %v855, inf
      %v971 = vsel %vm949, %v883, inf
      %v972 = vsel %vm949, %v911, inf
      %v973 = vsel %vm949, %v939, inf
      %v974 = vld [vmem:[%s386] sm:$0xf]
      %v975 = vadd.f32 %v950, %v954
      %v976 = vrot.slane %v975, 4
      %v977 = vadd.f32 %v975, %v976
      %v978 = vrot.slane %v977, 2
      %v979 = vadd.f32 %v977, %v978
      %v980 = vrot.slane %v979, 1
      %v981 = vadd.f32 %v979, %v980
      %v982 = vadd.f32 %v951, %v955
      %v983 = vrot.slane %v982, 4
      %v984 = vadd.f32 %v982, %v983
      %v985 = vrot.slane %v984, 2
      %v986 = vadd.f32 %v984, %v985
      %v987 = vrot.slane %v986, 1
      %v988 = vadd.f32 %v986, %v987
      %v989 = vadd.f32 %v952, %v956
      %v990 = vrot.slane %v989, 4
      %v991 = vadd.f32 %v989, %v990
      %v992 = vrot.slane %v991, 2
      %v993 = vadd.f32 %v991, %v992
      %v994 = vrot.slane %v993, 1
      %v995 = vadd.f32 %v993, %v994
      %v996 = vadd.f32 %v953, %v957
      %v997 = vrot.slane %v996, 4
      %v998 = vadd.f32 %v996, %v997
      %v999 = vrot.slane %v998, 2
      %v1000 = vadd.f32 %v998, %v999
      %v1001 = vrot.slane %v1000, 1
      %v1002 = vadd.f32 %v1000, %v1001
      %v1007 = vrot.slane %v988, 7
      %v1008 = vrot.slane %v995, 6
      %v1009 = vrot.slane %v1002, 5
      %vm1010 = vcmask 1040384
      %v1011 = vsel %vm1010, %v981, %v1007
      %vm1012 = vcmask 1042434
      %v1013 = vsel %vm1012, %v1008, %v1009
      %vm1014 = vcmask 1041408
      %v1015 = vsel %vm1014, %v1011, %v1013
      %v1017 = vadd.f32 %v974, %v1015
      %v1018 = vlaneseq
      %vm1019 = vcmp.ge.s32.totalorder %v1018, 0
      %vm1020 = vcmp.lt.s32.totalorder %v1018, 512
      %vm1021 = vmand %vm1019, %vm1020
      %1022 = vst.msk [vmem:[%s386] sm:$0xf] %vm1021, %v1017
      %v1023 = vld [vmem:[%s390] sm:$0xf]
      %v1024 = vmul.f32 %v950, %v950
      %v1025 = vmul.f32 %v951, %v951
      %v1026 = vmul.f32 %v952, %v952
      %v1027 = vmul.f32 %v953, %v953
      %v1028 = vmul.f32 %v954, %v954
      %v1029 = vmul.f32 %v955, %v955
      %v1030 = vmul.f32 %v956, %v956
      %v1031 = vmul.f32 %v957, %v957
      %v1032 = vadd.f32 %v1024, %v1028
      %v1033 = vrot.slane %v1032, 4
      %v1034 = vadd.f32 %v1032, %v1033
      %v1035 = vrot.slane %v1034, 2
      %v1036 = vadd.f32 %v1034, %v1035
      %v1037 = vrot.slane %v1036, 1
      %v1038 = vadd.f32 %v1036, %v1037
      %v1039 = vadd.f32 %v1025, %v1029
      %v1040 = vrot.slane %v1039, 4
      %v1041 = vadd.f32 %v1039, %v1040
      %v1042 = vrot.slane %v1041, 2
      %v1043 = vadd.f32 %v1041, %v1042
      %v1044 = vrot.slane %v1043, 1
      %v1045 = vadd.f32 %v1043, %v1044
      %v1046 = vadd.f32 %v1026, %v1030
      %v1047 = vrot.slane %v1046, 4
      %v1048 = vadd.f32 %v1046, %v1047
      %v1049 = vrot.slane %v1048, 2
      %v1050 = vadd.f32 %v1048, %v1049
      %v1051 = vrot.slane %v1050, 1
      %v1052 = vadd.f32 %v1050, %v1051
      %v1053 = vadd.f32 %v1027, %v1031
      %v1054 = vrot.slane %v1053, 4
      %v1055 = vadd.f32 %v1053, %v1054
      %v1056 = vrot.slane %v1055, 2
      %v1057 = vadd.f32 %v1055, %v1056
      %v1058 = vrot.slane %v1057, 1
      %v1059 = vadd.f32 %v1057, %v1058
      %v1064 = vrot.slane %v1045, 7
      %v1065 = vrot.slane %v1052, 6
      %v1066 = vrot.slane %v1059, 5
      %v1067 = vsel %vm1010, %v1038, %v1064
      %v1068 = vsel %vm1012, %v1065, %v1066
      %v1069 = vsel %vm1014, %v1067, %v1068
      %v1071 = vadd.f32 %v1023, %v1069
      %1072 = vst.msk [vmem:[%s390] sm:$0xf] %vm1021, %v1071
      %v1073 = vld [vmem:[%s378] sm:$0xf]
      %v1074 = vmax.f32 %v958, %v962
      %v1075 = vrot.slane %v1074, 4
      %v1076 = vmax.f32 %v1074, %v1075
      %v1077 = vrot.slane %v1076, 2
      %v1078 = vmax.f32 %v1076, %v1077
      %v1079 = vrot.slane %v1078, 1
      %v1080 = vmax.f32 %v1078, %v1079
      %v1081 = vmax.f32 %v959, %v963
      %v1082 = vrot.slane %v1081, 4
      %v1083 = vmax.f32 %v1081, %v1082
      %v1084 = vrot.slane %v1083, 2
      %v1085 = vmax.f32 %v1083, %v1084
      %v1086 = vrot.slane %v1085, 1
      %v1087 = vmax.f32 %v1085, %v1086
      %v1088 = vmax.f32 %v960, %v964
      %v1089 = vrot.slane %v1088, 4
      %v1090 = vmax.f32 %v1088, %v1089
      %v1091 = vrot.slane %v1090, 2
      %v1092 = vmax.f32 %v1090, %v1091
      %v1093 = vrot.slane %v1092, 1
      %v1094 = vmax.f32 %v1092, %v1093
      %v1095 = vmax.f32 %v961, %v965
      %v1096 = vrot.slane %v1095, 4
      %v1097 = vmax.f32 %v1095, %v1096
      %v1098 = vrot.slane %v1097, 2
      %v1099 = vmax.f32 %v1097, %v1098
      %v1100 = vrot.slane %v1099, 1
      %v1101 = vmax.f32 %v1099, %v1100
      %v1106 = vrot.slane %v1087, 7
      %v1107 = vrot.slane %v1094, 6
      %v1108 = vrot.slane %v1101, 5
      %v1109 = vsel %vm1010, %v1080, %v1106
      %v1110 = vsel %vm1012, %v1107, %v1108
      %v1111 = vsel %vm1014, %v1109, %v1110
      %v1113 = vmax.f32 %v1073, %v1111
      %1114 = vst.msk [vmem:[%s378] sm:$0xf] %vm1021, %v1113
      %v1115 = vld [vmem:[%s382] sm:$0xf]
      %v1116 = vmin.f32 %v966, %v970
      %v1117 = vrot.slane %v1116, 4
      %v1118 = vmin.f32 %v1116, %v1117
      %v1119 = vrot.slane %v1118, 2
      %v1120 = vmin.f32 %v1118, %v1119
      %v1121 = vrot.slane %v1120, 1
      %v1122 = vmin.f32 %v1120, %v1121
      %v1123 = vmin.f32 %v967, %v971
      %v1124 = vrot.slane %v1123, 4
      %v1125 = vmin.f32 %v1123, %v1124
      %v1126 = vrot.slane %v1125, 2
      %v1127 = vmin.f32 %v1125, %v1126
      %v1128 = vrot.slane %v1127, 1
      %v1129 = vmin.f32 %v1127, %v1128
      %v1130 = vmin.f32 %v968, %v972
      %v1131 = vrot.slane %v1130, 4
      %v1132 = vmin.f32 %v1130, %v1131
      %v1133 = vrot.slane %v1132, 2
      %v1134 = vmin.f32 %v1132, %v1133
      %v1135 = vrot.slane %v1134, 1
      %v1136 = vmin.f32 %v1134, %v1135
      %v1137 = vmin.f32 %v969, %v973
      %v1138 = vrot.slane %v1137, 4
      %v1139 = vmin.f32 %v1137, %v1138
      %v1140 = vrot.slane %v1139, 2
      %v1141 = vmin.f32 %v1139, %v1140
      %v1142 = vrot.slane %v1141, 1
      %v1143 = vmin.f32 %v1141, %v1142
      %v1148 = vrot.slane %v1129, 7
      %v1149 = vrot.slane %v1136, 6
      %v1150 = vrot.slane %v1143, 5
      %v1151 = vsel %vm1010, %v1122, %v1148
      %v1152 = vsel %vm1012, %v1149, %v1150
      %v1153 = vsel %vm1014, %v1151, %v1152
      %v1155 = vmin.f32 %v1115, %v1153
      %1156 = vst.msk [vmem:[%s382] sm:$0xf] %vm1021, %v1155
      %p1157 = scmp.lt.s32.totalorder %s24, 3
      %s1158 = scalar_select %p1157, %s24, 3
      %s1159 = smul.addr %s1158, 4
      %s1160 = scalar_lea.vmem %s5, %s1159
      %p1161 = scmp.lt.s32.totalorder %s24, 3
      %s1162 = scalar_select %p1161, %s24, 3
      %s1163 = smul.addr %s1162, 4
      %s1164 = scalar_lea.vmem %s6, %s1163
      %p1165 = scmp.lt.s32.totalorder %s24, 3
      %s1166 = scalar_select %p1165, %s24, 3
      %s1167 = smul.addr %s1166, 4
      %s1168 = scalar_lea.vmem %s7, %s1167
      %p1169 = scmp.lt.s32.totalorder %s24, 3
      %s1170 = scalar_select %p1169, %s24, 3
      %s1171 = smul.addr %s1170, 4
      %s1172 = scalar_lea.vmem %s8, %s1171
      // Predicated region
      $region45: #{pointnet_encoder.8} parent=39 // pred_check
        %p1173 = pneg %p162
      $region46: #{pointnet_encoder.8} parent=39 // pred_check_branch
        %1175 = sbr.rel (%p1173) target = $region48
      $region47: #{pointnet_encoder.8} parent=39 // pred_region
        _
      $region48: #{pointnet_encoder.8} parent=39 // pred_fallthru
        _
      // Predicated region
      $region49: #{pointnet_encoder.8} parent=39 // pred_check
        %p1176 = pneg %p188
      $region50: #{pointnet_encoder.8} parent=39 // pred_check_branch
        %1178 = sbr.rel (%p1176) target = $region52
      $region51: #{pointnet_encoder.8} parent=39 // pred_region
        _
      $region52: #{pointnet_encoder.8} parent=39 // pred_fallthru
        _
      // Predicated region
      $region53: #{pointnet_encoder.8} parent=39 // pred_check
        %p1179 = pneg %p214
      $region54: #{pointnet_encoder.8} parent=39 // pred_check_branch
        %1181 = sbr.rel (%p1179) target = $region56
      $region55: #{pointnet_encoder.8} parent=39 // pred_region
        _
      $region56: #{pointnet_encoder.8} parent=39 // pred_fallthru
        _
      // Predicated region
      $region57: #{pointnet_encoder.8} parent=39 // pred_check
        %p1182 = pneg %p240
      $region58: #{pointnet_encoder.8} parent=39 // pred_check_branch
        %1184 = sbr.rel (%p1182) target = $region60
      $region59: #{pointnet_encoder.8} parent=39 // pred_region
        _
      $region60: #{pointnet_encoder.8} parent=39 // pred_fallthru
        _
    $region40: #{pointnet_encoder.8} parent=5 // pred_fallthru
      _
    %p1185 = scmp.le.s32.totalorder 2, %s15
    // Predicated region
    $region61: #{pointnet_encoder.8} parent=5 // pred_check
      %p1186 = pneg %p1185
    $region62: #{pointnet_encoder.8} parent=5 // pred_check_branch
      %1188 = sbr.rel (%p1186) target = $region64
    $region63: #{pointnet_encoder.8} parent=5 // pred_region
      %s1189 = ssub.s32 %s15, 2
      // Predicated region
      $region65: #{pointnet_encoder.8} parent=63 // pred_check
        %p1190 = pneg %p168
      $region66: #{pointnet_encoder.8} parent=63 // pred_check_branch
        %1192 = sbr.rel (%p1190) target = $region68
      $region67: #{pointnet_encoder.8} parent=63 // pred_region
        %p1193 = scmp.lt.s32.totalorder %s26, 3
        %s1194 = scalar_select %p1193, %s26, 3
        %s1195 = smul.addr %s1194, 4
        %s1196 = scalar_lea.vmem %s5, %s1195
      $region68: #{pointnet_encoder.8} parent=63 // pred_fallthru
        _
      // Predicated region
      $region69: #{pointnet_encoder.8} parent=63 // pred_check
        %p1197 = pneg %p194
      $region70: #{pointnet_encoder.8} parent=63 // pred_check_branch
        %1199 = sbr.rel (%p1197) target = $region72
      $region71: #{pointnet_encoder.8} parent=63 // pred_region
        %p1200 = scmp.lt.s32.totalorder %s26, 3
        %s1201 = scalar_select %p1200, %s26, 3
        %s1202 = smul.addr %s1201, 4
        %s1203 = scalar_lea.vmem %s6, %s1202
      $region72: #{pointnet_encoder.8} parent=63 // pred_fallthru
        _
      // Predicated region
      $region73: #{pointnet_encoder.8} parent=63 // pred_check
        %p1204 = pneg %p220
      $region74: #{pointnet_encoder.8} parent=63 // pred_check_branch
        %1206 = sbr.rel (%p1204) target = $region76
      $region75: #{pointnet_encoder.8} parent=63 // pred_region
        %p1207 = scmp.lt.s32.totalorder %s26, 3
        %s1208 = scalar_select %p1207, %s26, 3
        %s1209 = smul.addr %s1208, 4
        %s1210 = scalar_lea.vmem %s7, %s1209
      $region76: #{pointnet_encoder.8} parent=63 // pred_fallthru
        _
      // Predicated region
      $region77: #{pointnet_encoder.8} parent=63 // pred_check
        %p1211 = pneg %p246
      $region78: #{pointnet_encoder.8} parent=63 // pred_check_branch
        %1213 = sbr.rel (%p1211) target = $region80
      $region79: #{pointnet_encoder.8} parent=63 // pred_region
        %p1214 = scmp.lt.s32.totalorder %s26, 3
        %s1215 = scalar_select %p1214, %s26, 3
        %s1216 = smul.addr %s1215, 4
        %s1217 = scalar_lea.vmem %s8, %s1216
      $region80: #{pointnet_encoder.8} parent=63 // pred_fallthru
        _
    $region64: #{pointnet_encoder.8} parent=5 // pred_fallthru
      _
  $region6: #{pointnet_encoder.8} parent=0 // loop_footer
    %s19 = sadd.s32 1, %s15
  $region7: #{pointnet_encoder.8} parent=0 // loop_footer_branch
    %14 = sbr.rel target = $region3
  $region8: #{pointnet_encoder.8} parent=0 // loop_exit
    _

// kernel: pointnet_encoder.9
$region0: #{pointnet_encoder.9}
  #allocation0 [shape = 'u32[]', space=smem, size = 0x4, offset = 0x4, fixed_abs, tag = 'smem constant byte address 0x4 - core index']
  #allocation1 [shape = 'u32[72,128]{1,0:T(1,128)}', space=vmem, size = 0x9000, scoped, tag = 'internal scratch']
  %s0 = inlined_call_operand.vmem [shape: f32[4,1,512], index: 0, kind: input, shape index: {}]
  %s1 = inlined_call_operand.vmem [shape: f32[4,1,512], index: 1, kind: input, shape index: {}]
  %s2 = inlined_call_operand.vmem [shape: f32[1,512], index: 2, kind: input, shape index: {}]
  %s3 = inlined_call_operand.vmem [shape: f32[1,512], index: 3, kind: input, shape index: {}]
  %s4 = inlined_call_operand.hbm [shape: bf16[512,512], index: 4, kind: input, shape index: {}]
  %s5 = inlined_call_operand.vmem [shape: f32[1,512], index: 5, kind: input, shape index: {}]
  %s6 = inlined_call_operand.vmem [shape: f32[1,512], index: 6, kind: input, shape index: {}]
  %s7 = inlined_call_operand.vmem [shape: f32[1,512], index: 7, kind: input, shape index: {}]
  %s8 = inlined_call_operand.vmem [shape: bf16[512,256], index: 8, kind: input, shape index: {}]
  %s9 = inlined_call_operand.vmem [shape: f32[1,256], index: 9, kind: input, shape index: {}]
  %s10 = inlined_call_operand.vmem [shape: f32[1,256], index: 10, kind: input, shape index: {}]
  %s11 = inlined_call_operand.vmem [shape: f32[1,256], index: 11, kind: input, shape index: {}]
  %s12 = inlined_call_operand.vmem [shape: bf16[256,128], index: 12, kind: input, shape index: {}]
  %s13 = inlined_call_operand.vmem [shape: f32[1,128], index: 13, kind: input, shape index: {}]
  %s14 = inlined_call_operand.vmem [shape: f32[4,128], index: 14, kind: output, shape index: {}]
  %s15 = sld [smem:[#allocation0]]
  $region70: #{pointnet_encoder.9} parent=0
    _
  %s17 = ssub.s32 1, %s15
  %s18 = scalar_select 0, %s17, %s15
  $region1: #{pointnet_encoder.9} parent=0
    #allocation2 [shape = 'u8[524288]{0}', space=vmem, size = 0x80000, scoped, tag = 'input window, operand 4, single buffered']
    #allocation3 [shape = 's32[1]{0}', space=sflag, size = 0x4, scoped, tag = 'scoped memory for pointnet_encoder.9']
    %19 = vsyncpa [#allocation3], 0
    // Predicated region
    $region2: #{pointnet_encoder.9} parent=1 // pred_check
      _
    $region3: #{pointnet_encoder.9} parent=1 // pred_check_branch
      %21 = sbr.rel (0) target = $region5
    $region4: #{pointnet_encoder.9} parent=1 // pred_region
      _
    $region5: #{pointnet_encoder.9} parent=1 // pred_fallthru
      _
    // Predicated region
    $region6: #{pointnet_encoder.9} parent=1 // pred_check
      _
    $region7: #{pointnet_encoder.9} parent=1 // pred_check_branch
      %23 = sbr.rel (0) target = $region9
    $region8: #{pointnet_encoder.9} parent=1 // pred_region
      _
    $region9: #{pointnet_encoder.9} parent=1 // pred_fallthru
      _
    // Predicated region
    $region10: #{pointnet_encoder.9} parent=1 // pred_check
      _
    $region11: #{pointnet_encoder.9} parent=1 // pred_check_branch
      %25 = sbr.rel (0) target = $region13
    $region12: #{pointnet_encoder.9} parent=1 // pred_region
      _
    $region13: #{pointnet_encoder.9} parent=1 // pred_fallthru
      _
    // Predicated region
    $region14: #{pointnet_encoder.9} parent=1 // pred_check
      _
    $region15: #{pointnet_encoder.9} parent=1 // pred_check_branch
      %27 = sbr.rel (0) target = $region17
    $region16: #{pointnet_encoder.9} parent=1 // pred_region
      _
    $region17: #{pointnet_encoder.9} parent=1 // pred_fallthru
      _
    // Predicated region
    $region18: #{pointnet_encoder.9} parent=1 // pred_check
      _
    $region19: #{pointnet_encoder.9} parent=1 // pred_check_branch
      %29 = sbr.rel (0) target = $region21
    $region20: #{pointnet_encoder.9} parent=1 // pred_region
      %31 = vsyncadd [#allocation3], 0
      %s32 = sshll.u32 %s4, 4
      %s33 = int_to_ptr.hbm [resolvable:$true] %s32
      %s34 = sshll.u32 [#allocation2], 4
      %s35 = int_to_ptr.vmem [resolvable:$true] %s34
      %40 = dma.hbm_to_vmem [thread:$0]  %s33, 16384, %s35, [#allocation3], 256, 256, 16
    $region21: #{pointnet_encoder.9} parent=1 // pred_fallthru
      _
    // Predicated region
    $region22: #{pointnet_encoder.9} parent=1 // pred_check
      _
    $region23: #{pointnet_encoder.9} parent=1 // pred_check_branch
      %42 = sbr.rel (0) target = $region25
    $region24: #{pointnet_encoder.9} parent=1 // pred_region
      _
    $region25: #{pointnet_encoder.9} parent=1 // pred_fallthru
      _
    // Predicated region
    $region26: #{pointnet_encoder.9} parent=1 // pred_check
      _
    $region27: #{pointnet_encoder.9} parent=1 // pred_check_branch
      %44 = sbr.rel (0) target = $region29
    $region28: #{pointnet_encoder.9} parent=1 // pred_region
      _
    $region29: #{pointnet_encoder.9} parent=1 // pred_fallthru
      _
    // Predicated region
    $region30: #{pointnet_encoder.9} parent=1 // pred_check
      _
    $region31: #{pointnet_encoder.9} parent=1 // pred_check_branch
      %46 = sbr.rel (0) target = $region33
    $region32: #{pointnet_encoder.9} parent=1 // pred_region
      _
    $region33: #{pointnet_encoder.9} parent=1 // pred_fallthru
      _
    // Predicated region
    $region34: #{pointnet_encoder.9} parent=1 // pred_check
      _
    $region35: #{pointnet_encoder.9} parent=1 // pred_check_branch
      %48 = sbr.rel (0) target = $region37
    $region36: #{pointnet_encoder.9} parent=1 // pred_region
      _
    $region37: #{pointnet_encoder.9} parent=1 // pred_fallthru
      _
    // Predicated region
    $region38: #{pointnet_encoder.9} parent=1 // pred_check
      _
    $region39: #{pointnet_encoder.9} parent=1 // pred_check_branch
      %50 = sbr.rel (0) target = $region41
    $region40: #{pointnet_encoder.9} parent=1 // pred_region
      _
    $region41: #{pointnet_encoder.9} parent=1 // pred_fallthru
      _
    // Predicated region
    $region42: #{pointnet_encoder.9} parent=1 // pred_check
      _
    $region43: #{pointnet_encoder.9} parent=1 // pred_check_branch
      %52 = sbr.rel (0) target = $region45
    $region44: #{pointnet_encoder.9} parent=1 // pred_region
      _
    $region45: #{pointnet_encoder.9} parent=1 // pred_fallthru
      _
    // Predicated region
    $region46: #{pointnet_encoder.9} parent=1 // pred_check
      _
    $region47: #{pointnet_encoder.9} parent=1 // pred_check_branch
      %54 = sbr.rel (0) target = $region49
    $region48: #{pointnet_encoder.9} parent=1 // pred_region
      _
    $region49: #{pointnet_encoder.9} parent=1 // pred_fallthru
      _
    // Predicated region
    $region50: #{pointnet_encoder.9} parent=1 // pred_check
      _
    $region51: #{pointnet_encoder.9} parent=1 // pred_check_branch
      %56 = sbr.rel (0) target = $region53
    $region52: #{pointnet_encoder.9} parent=1 // pred_region
      _
    $region53: #{pointnet_encoder.9} parent=1 // pred_fallthru
      _
    // Predicated region
    $region54: #{pointnet_encoder.9} parent=1 // pred_check
      _
    $region55: #{pointnet_encoder.9} parent=1 // pred_check_branch
      %58 = sbr.rel (0) target = $region57
    $region56: #{pointnet_encoder.9} parent=1 // pred_region
      _
    $region57: #{pointnet_encoder.9} parent=1 // pred_fallthru
      _
    // Predicated region
    $region58: #{pointnet_encoder.9} parent=1 // pred_check
      _
    $region59: #{pointnet_encoder.9} parent=1 // pred_check_branch
      %60 = sbr.rel (0) target = $region61
    $region60: #{pointnet_encoder.9} parent=1 // pred_region
      %62 = dma.done [#allocation3], 16384
    $region61: #{pointnet_encoder.9} parent=1 // pred_fallthru
      _
    %v63 = vld [vmem:[%s0] sm:$0xf]
    %v64 = vld [vmem:[%s0 + $0x4] sm:$0xf]
    %v65 = vld [vmem:[%s0 + $0x8] sm:$0xf]
    %v66 = vld [vmem:[%s0 + $0xc] sm:$0xf]
    %v67 = vld [vmem:[%s1] sm:$0xf]
    %v68 = vld [vmem:[%s1 + $0x4] sm:$0xf]
    %v69 = vld [vmem:[%s1 + $0x8] sm:$0xf]
    %v70 = vld [vmem:[%s1 + $0xc] sm:$0xf]
    %v71 = vld [vmem:[%s2] sm:$0xf]
    %v73 = vperm.slane %v71, 0
    %v74 = vperm.slane %v71, 1
    %v75 = vperm.slane %v71, 2
    %v76 = vperm.slane %v71, 3
    %85 = vst [vmem:[#allocation1] ss:$9 sm:$0xff] %v63
    %s86 = scalar_lea.vmem [#allocation1], 1
    %87 = vst [vmem:[%s86] ss:$9 sm:$0xff] %v64
    %s88 = scalar_lea.vmem [#allocation1], 2
    %89 = vst [vmem:[%s88] ss:$9 sm:$0xff] %v65
    %s90 = scalar_lea.vmem [#allocation1], 3
    %91 = vst [vmem:[%s90] ss:$9 sm:$0xff] %v66
    %v92 = vld [vmem:[#allocation1] sm:$0xff]
    %v93 = vld [vmem:[#allocation1 + $0x9] sm:$0xff]
    %v94 = vld [vmem:[#allocation1 + $0x12] sm:$0xff]
    %v95 = vld [vmem:[#allocation1 + $0x1b] sm:$0xff]
    %v100 = vmul.f32 %v73, %v92
    %v101 = vmul.f32 %v74, %v93
    %v102 = vmul.f32 %v75, %v94
    %v103 = vmul.f32 %v76, %v95
    %108 = vst [vmem:[#allocation1] ss:$9 sm:$0xff] %v67
    %s109 = scalar_lea.vmem [#allocation1], 1
    %110 = vst [vmem:[%s109] ss:$9 sm:$0xff] %v68
    %s111 = scalar_lea.vmem [#allocation1], 2
    %112 = vst [vmem:[%s111] ss:$9 sm:$0xff] %v69
    %s113 = scalar_lea.vmem [#allocation1], 3
    %114 = vst [vmem:[%s113] ss:$9 sm:$0xff] %v70
    %v115 = vld [vmem:[#allocation1] sm:$0xff]
    %v116 = vld [vmem:[#allocation1 + $0x9] sm:$0xff]
    %v117 = vld [vmem:[#allocation1 + $0x12] sm:$0xff]
    %v118 = vld [vmem:[#allocation1 + $0x1b] sm:$0xff]
    %v123 = vmul.f32 %v73, %v115
    %v124 = vmul.f32 %v74, %v116
    %v125 = vmul.f32 %v75, %v117
    %v126 = vmul.f32 %v76, %v118
    %v127 = vmax.f32 %v100, %v123
    %v128 = vmax.f32 %v101, %v124
    %v129 = vmax.f32 %v102, %v125
    %v130 = vmax.f32 %v103, %v126
    %v131 = vld [vmem:[%s3] sm:$0xf]
    %v133 = vperm.slane %v131, 0
    %v134 = vperm.slane %v131, 1
    %v135 = vperm.slane %v131, 2
    %v136 = vperm.slane %v131, 3
    %v141 = vadd.f32 %v127, %v133
    %v142 = vadd.f32 %v128, %v134
    %v143 = vadd.f32 %v129, %v135
    %v144 = vadd.f32 %v130, %v136
    %v145 = vpack.c.bf16 %v141, %v141
    %v146 = vpack.c.bf16 %v142, %v142
    %v147 = vpack.c.bf16 %v143, %v143
    %v148 = vpack.c.bf16 %v144, %v144
    %v149 = vld [vmem:[#allocation2] sm:$0xff]
    %v150 = vld [vmem:[#allocation2 + $0x8] sm:$0xff]
    %v151 = vld [vmem:[#allocation2 + $0x10] sm:$0xff]
    %v152 = vld [vmem:[#allocation2 + $0x18] sm:$0xff]
    %v153 = vld [vmem:[#allocation2 + $0x20] sm:$0xff]
    %v154 = vld [vmem:[#allocation2 + $0x28] sm:$0xff]
    %v155 = vld [vmem:[#allocation2 + $0x30] sm:$0xff]
    %v156 = vld [vmem:[#allocation2 + $0x38] sm:$0xff]
    %v157 = vld [vmem:[#allocation2 + $0x40] sm:$0xff]
    %v158 = vld [vmem:[#allocation2 + $0x48] sm:$0xff]
    %v159 = vld [vmem:[#allocation2 + $0x50] sm:$0xff]
    %v160 = vld [vmem:[#allocation2 + $0x58] sm:$0xff]
    %v161 = vld [vmem:[#allocation2 + $0x60] sm:$0xff]
    %v162 = vld [vmem:[#allocation2 + $0x68] sm:$0xff]
    %v163 = vld [vmem:[#allocation2 + $0x70] sm:$0xff]
    %v164 = vld [vmem:[#allocation2 + $0x78] sm:$0xff]
    %v165 = vld [vmem:[#allocation2 + $0x80] sm:$0xff]
    %v166 = vld [vmem:[#allocation2 + $0x88] sm:$0xff]
    %v167 = vld [vmem:[#allocation2 + $0x90] sm:$0xff]
    %v168 = vld [vmem:[#allocation2 + $0x98] sm:$0xff]
    %v169 = vld [vmem:[#allocation2 + $0xa0] sm:$0xff]
    %v170 = vld [vmem:[#allocation2 + $0xa8] sm:$0xff]
    %v171 = vld [vmem:[#allocation2 + $0xb0] sm:$0xff]
    %v172 = vld [vmem:[#allocation2 + $0xb8] sm:$0xff]
    %v173 = vld [vmem:[#allocation2 + $0xc0] sm:$0xff]
    %v174 = vld [vmem:[#allocation2 + $0xc8] sm:$0xff]
    %v175 = vld [vmem:[#allocation2 + $0xd0] sm:$0xff]
    %v176 = vld [vmem:[#allocation2 + $0xd8] sm:$0xff]
    %v177 = vld [vmem:[#allocation2 + $0xe0] sm:$0xff]
    %v178 = vld [vmem:[#allocation2 + $0xe8] sm:$0xff]
    %v179 = vld [vmem:[#allocation2 + $0xf0] sm:$0xff]
    %v180 = vld [vmem:[#allocation2 + $0xf8] sm:$0xff]
    %v181 = vld [vmem:[#allocation2 + $0x100] sm:$0xff]
    %v182 = vld [vmem:[#allocation2 + $0x108] sm:$0xff]
    %v183 = vld [vmem:[#allocation2 + $0x110] sm:$0xff]
    %v184 = vld [vmem:[#allocation2 + $0x118] sm:$0xff]
    %v185 = vld [vmem:[#allocation2 + $0x120] sm:$0xff]
    %v186 = vld [vmem:[#allocation2 + $0x128] sm:$0xff]
    %v187 = vld [vmem:[#allocation2 + $0x130] sm:$0xff]
    %v188 = vld [vmem:[#allocation2 + $0x138] sm:$0xff]
    %v189 = vld [vmem:[#allocation2 + $0x140] sm:$0xff]
    %v190 = vld [vmem:[#allocation2 + $0x148] sm:$0xff]
    %v191 = vld [vmem:[#allocation2 + $0x150] sm:$0xff]
    %v192 = vld [vmem:[#allocation2 + $0x158] sm:$0xff]
    %v193 = vld [vmem:[#allocation2 + $0x160] sm:$0xff]
    %v194 = vld [vmem:[#allocation2 + $0x168] sm:$0xff]
    %v195 = vld [vmem:[#allocation2 + $0x170] sm:$0xff]
    %v196 = vld [vmem:[#allocation2 + $0x178] sm:$0xff]
    %v197 = vld [vmem:[#allocation2 + $0x180] sm:$0xff]
    %v198 = vld [vmem:[#allocation2 + $0x188] sm:$0xff]
    %v199 = vld [vmem:[#allocation2 + $0x190] sm:$0xff]
    %v200 = vld [vmem:[#allocation2 + $0x198] sm:$0xff]
    %v201 = vld [vmem:[#allocation2 + $0x1a0] sm:$0xff]
    %v202 = vld [vmem:[#allocation2 + $0x1a8] sm:$0xff]
    %v203 = vld [vmem:[#allocation2 + $0x1b0] sm:$0xff]
    %v204 = vld [vmem:[#allocation2 + $0x1b8] sm:$0xff]
    %v205 = vld [vmem:[#allocation2 + $0x1c0] sm:$0xff]
    %v206 = vld [vmem:[#allocation2 + $0x1c8] sm:$0xff]
    %v207 = vld [vmem:[#allocation2 + $0x1d0] sm:$0xff]
    %v208 = vld [vmem:[#allocation2 + $0x1d8] sm:$0xff]
    %v209 = vld [vmem:[#allocation2 + $0x1e0] sm:$0xff]
    %v210 = vld [vmem:[#allocation2 + $0x1e8] sm:$0xff]
    %v211 = vld [vmem:[#allocation2 + $0x1f0] sm:$0xff]
    %v212 = vld [vmem:[#allocation2 + $0x1f8] sm:$0xff]
    %v213 = vld [vmem:[#allocation2 + $0x200] sm:$0xff]
    %v214 = vld [vmem:[#allocation2 + $0x208] sm:$0xff]
    %v215 = vld [vmem:[#allocation2 + $0x210] sm:$0xff]
    %v216 = vld [vmem:[#allocation2 + $0x218] sm:$0xff]
    %v217 = vld [vmem:[#allocation2 + $0x220] sm:$0xff]
    %v218 = vld [vmem:[#allocation2 + $0x228] sm:$0xff]
    %v219 = vld [vmem:[#allocation2 + $0x230] sm:$0xff]
    %v220 = vld [vmem:[#allocation2 + $0x238] sm:$0xff]
    %v221 = vld [vmem:[#allocation2 + $0x240] sm:$0xff]
    %v222 = vld [vmem:[#allocation2 + $0x248] sm:$0xff]
    %v223 = vld [vmem:[#allocation2 + $0x250] sm:$0xff]
    %v224 = vld [vmem:[#allocation2 + $0x258] sm:$0xff]
    %v225 = vld [vmem:[#allocation2 + $0x260] sm:$0xff]
    %v226 = vld [vmem:[#allocation2 + $0x268] sm:$0xff]
    %v227 = vld [vmem:[#allocation2 + $0x270] sm:$0xff]
    %v228 = vld [vmem:[#allocation2 + $0x278] sm:$0xff]
    %v229 = vld [vmem:[#allocation2 + $0x280] sm:$0xff]
    %v230 = vld [vmem:[#allocation2 + $0x288] sm:$0xff]
    %v231 = vld [vmem:[#allocation2 + $0x290] sm:$0xff]
    %v232 = vld [vmem:[#allocation2 + $0x298] sm:$0xff]
    %v233 = vld [vmem:[#allocation2 + $0x2a0] sm:$0xff]
    %v234 = vld [vmem:[#allocation2 + $0x2a8] sm:$0xff]
    %v235 = vld [vmem:[#allocation2 + $0x2b0] sm:$0xff]
    %v236 = vld [vmem:[#allocation2 + $0x2b8] sm:$0xff]
    %v237 = vld [vmem:[#allocation2 + $0x2c0] sm:$0xff]
    %v238 = vld [vmem:[#allocation2 + $0x2c8] sm:$0xff]
    %v239 = vld [vmem:[#allocation2 + $0x2d0] sm:$0xff]
    %v240 = vld [vmem:[#allocation2 + $0x2d8] sm:$0xff]
    %v241 = vld [vmem:[#allocation2 + $0x2e0] sm:$0xff]
    %v242 = vld [vmem:[#allocation2 + $0x2e8] sm:$0xff]
    %v243 = vld [vmem:[#allocation2 + $0x2f0] sm:$0xff]
    %v244 = vld [vmem:[#allocation2 + $0x2f8] sm:$0xff]
    %v245 = vld [vmem:[#allocation2 + $0x300] sm:$0xff]
    %v246 = vld [vmem:[#allocation2 + $0x308] sm:$0xff]
    %v247 = vld [vmem:[#allocation2 + $0x310] sm:$0xff]
    %v248 = vld [vmem:[#allocation2 + $0x318] sm:$0xff]
    %v249 = vld [vmem:[#allocation2 + $0x320] sm:$0xff]
    %v250 = vld [vmem:[#allocation2 + $0x328] sm:$0xff]
    %v251 = vld [vmem:[#allocation2 + $0x330] sm:$0xff]
    %v252 = vld [vmem:[#allocation2 + $0x338] sm:$0xff]
    %v253 = vld [vmem:[#allocation2 + $0x340] sm:$0xff]
    %v254 = vld [vmem:[#allocation2 + $0x348] sm:$0xff]
    %v255 = vld [vmem:[#allocation2 + $0x350] sm:$0xff]
    %v256 = vld [vmem:[#allocation2 + $0x358] sm:$0xff]
    %v257 = vld [vmem:[#allocation2 + $0x360] sm:$0xff]
    %v258 = vld [vmem:[#allocation2 + $0x368] sm:$0xff]
    %v259 = vld [vmem:[#allocation2 + $0x370] sm:$0xff]
    %v260 = vld [vmem:[#allocation2 + $0x378] sm:$0xff]
    %v261 = vld [vmem:[#allocation2 + $0x380] sm:$0xff]
    %v262 = vld [vmem:[#allocation2 + $0x388] sm:$0xff]
    %v263 = vld [vmem:[#allocation2 + $0x390] sm:$0xff]
    %v264 = vld [vmem:[#allocation2 + $0x398] sm:$0xff]
    %v265 = vld [vmem:[#allocation2 + $0x3a0] sm:$0xff]
    %v266 = vld [vmem:[#allocation2 + $0x3a8] sm:$0xff]
    %v267 = vld [vmem:[#allocation2 + $0x3b0] sm:$0xff]
    %v268 = vld [vmem:[#allocation2 + $0x3b8] sm:$0xff]
    %v269 = vld [vmem:[#allocation2 + $0x3c0] sm:$0xff]
    %v270 = vld [vmem:[#allocation2 + $0x3c8] sm:$0xff]
    %v271 = vld [vmem:[#allocation2 + $0x3d0] sm:$0xff]
    %v272 = vld [vmem:[#allocation2 + $0x3d8] sm:$0xff]
    %v273 = vld [vmem:[#allocation2 + $0x3e0] sm:$0xff]
    %v274 = vld [vmem:[#allocation2 + $0x3e8] sm:$0xff]
    %v275 = vld [vmem:[#allocation2 + $0x3f0] sm:$0xff]
    %v276 = vld [vmem:[#allocation2 + $0x3f8] sm:$0xff]
    %v277 = vld [vmem:[%s5] sm:$0xf]
    %v279 = vperm.slane %v277, 0
    %v280 = vperm.slane %v277, 1
    %v281 = vperm.slane %v277, 2
    %v282 = vperm.slane %v277, 3
    %v415 = vunpack.c.l.b16 %v149
    %v416 = vunpack.c.h.b16 %v149
    %v417 = vunpack.c.l.b16 %v150
    %v418 = vunpack.c.h.b16 %v150
    %v419 = vunpack.c.l.b16 %v151
    %v420 = vunpack.c.h.b16 %v151
    %v421 = vunpack.c.l.b16 %v152
    %v422 = vunpack.c.h.b16 %v152
    %v423 = vunpack.c.l.b16 %v153
    %v424 = vunpack.c.h.b16 %v153
    %v425 = vunpack.c.l.b16 %v154
    %v426 = vunpack.c.h.b16 %v154
    %v427 = vunpack.c.l.b16 %v155
    %v428 = vunpack.c.h.b16 %v155
    %v429 = vunpack.c.l.b16 %v156
    %v430 = vunpack.c.h.b16 %v156
    %v431 = vunpack.c.l.b16 %v157
    %v432 = vunpack.c.h.b16 %v157
    %v433 = vunpack.c.l.b16 %v158
    %v434 = vunpack.c.h.b16 %v158
    %v435 = vunpack.c.l.b16 %v159
    %v436 = vunpack.c.h.b16 %v159
    %v437 = vunpack.c.l.b16 %v160
    %v438 = vunpack.c.h.b16 %v160
    %v439 = vunpack.c.l.b16 %v161
    %v440 = vunpack.c.h.b16 %v161
    %v441 = vunpack.c.l.b16 %v162
    %v442 = vunpack.c.h.b16 %v162
    %v443 = vunpack.c.l.b16 %v163
    %v444 = vunpack.c.h.b16 %v163
    %v445 = vunpack.c.l.b16 %v164
    %v446 = vunpack.c.h.b16 %v164
    %v447 = vunpack.c.l.b16 %v165
    %v448 = vunpack.c.h.b16 %v165
    %v449 = vunpack.c.l.b16 %v166
    %v450 = vunpack.c.h.b16 %v166
    %v451 = vunpack.c.l.b16 %v167
    %v452 = vunpack.c.h.b16 %v167
    %v453 = vunpack.c.l.b16 %v168
    %v454 = vunpack.c.h.b16 %v168
    %v455 = vunpack.c.l.b16 %v169
    %v456 = vunpack.c.h.b16 %v169
    %v457 = vunpack.c.l.b16 %v170
    %v458 = vunpack.c.h.b16 %v170
    %v459 = vunpack.c.l.b16 %v171
    %v460 = vunpack.c.h.b16 %v171
    %v461 = vunpack.c.l.b16 %v172
    %v462 = vunpack.c.h.b16 %v172
    %v463 = vunpack.c.l.b16 %v173
    %v464 = vunpack.c.h.b16 %v173
    %v465 = vunpack.c.l.b16 %v174
    %v466 = vunpack.c.h.b16 %v174
    %v467 = vunpack.c.l.b16 %v175
    %v468 = vunpack.c.h.b16 %v175
    %v469 = vunpack.c.l.b16 %v176
    %v470 = vunpack.c.h.b16 %v176
    %v471 = vunpack.c.l.b16 %v177
    %v472 = vunpack.c.h.b16 %v177
    %v473 = vunpack.c.l.b16 %v178
    %v474 = vunpack.c.h.b16 %v178
    %v475 = vunpack.c.l.b16 %v179
    %v476 = vunpack.c.h.b16 %v179
    %v477 = vunpack.c.l.b16 %v180
    %v478 = vunpack.c.h.b16 %v180
    %v479 = vunpack.c.l.b16 %v181
    %v480 = vunpack.c.h.b16 %v181
    %v481 = vunpack.c.l.b16 %v182
    %v482 = vunpack.c.h.b16 %v182
    %v483 = vunpack.c.l.b16 %v183
    %v484 = vunpack.c.h.b16 %v183
    %v485 = vunpack.c.l.b16 %v184
    %v486 = vunpack.c.h.b16 %v184
    %v487 = vunpack.c.l.b16 %v185
    %v488 = vunpack.c.h.b16 %v185
    %v489 = vunpack.c.l.b16 %v186
    %v490 = vunpack.c.h.b16 %v186
    %v491 = vunpack.c.l.b16 %v187
    %v492 = vunpack.c.h.b16 %v187
    %v493 = vunpack.c.l.b16 %v188
    %v494 = vunpack.c.h.b16 %v188
    %v495 = vunpack.c.l.b16 %v189
    %v496 = vunpack.c.h.b16 %v189
    %v497 = vunpack.c.l.b16 %v190
    %v498 = vunpack.c.h.b16 %v190
    %v499 = vunpack.c.l.b16 %v191
    %v500 = vunpack.c.h.b16 %v191
    %v501 = vunpack.c.l.b16 %v192
    %v502 = vunpack.c.h.b16 %v192
    %v503 = vunpack.c.l.b16 %v193
    %v504 = vunpack.c.h.b16 %v193
    %v505 = vunpack.c.l.b16 %v194
    %v506 = vunpack.c.h.b16 %v194
    %v507 = vunpack.c.l.b16 %v195
    %v508 = vunpack.c.h.b16 %v195
    %v509 = vunpack.c.l.b16 %v196
    %v510 = vunpack.c.h.b16 %v196
    %v511 = vunpack.c.l.b16 %v197
    %v512 = vunpack.c.h.b16 %v197
    %v513 = vunpack.c.l.b16 %v198
    %v514 = vunpack.c.h.b16 %v198
    %v515 = vunpack.c.l.b16 %v199
    %v516 = vunpack.c.h.b16 %v199
    %v517 = vunpack.c.l.b16 %v200
    %v518 = vunpack.c.h.b16 %v200
    %v519 = vunpack.c.l.b16 %v201
    %v520 = vunpack.c.h.b16 %v201
    %v521 = vunpack.c.l.b16 %v202
    %v522 = vunpack.c.h.b16 %v202
    %v523 = vunpack.c.l.b16 %v203
    %v524 = vunpack.c.h.b16 %v203
    %v525 = vunpack.c.l.b16 %v204
    %v526 = vunpack.c.h.b16 %v204
    %v527 = vunpack.c.l.b16 %v205
    %v528 = vunpack.c.h.b16 %v205
    %v529 = vunpack.c.l.b16 %v206
    %v530 = vunpack.c.h.b16 %v206
    %v531 = vunpack.c.l.b16 %v207
    %v532 = vunpack.c.h.b16 %v207
    %v533 = vunpack.c.l.b16 %v208
    %v534 = vunpack.c.h.b16 %v208
    %v535 = vunpack.c.l.b16 %v209
    %v536 = vunpack.c.h.b16 %v209
    %v537 = vunpack.c.l.b16 %v210
    %v538 = vunpack.c.h.b16 %v210
    %v539 = vunpack.c.l.b16 %v211
    %v540 = vunpack.c.h.b16 %v211
    %v541 = vunpack.c.l.b16 %v212
    %v542 = vunpack.c.h.b16 %v212
    %v543 = vunpack.c.l.b16 %v213
    %v544 = vunpack.c.h.b16 %v213
    %v545 = vunpack.c.l.b16 %v214
    %v546 = vunpack.c.h.b16 %v214
    %v547 = vunpack.c.l.b16 %v215
    %v548 = vunpack.c.h.b16 %v215
    %v549 = vunpack.c.l.b16 %v216
    %v550 = vunpack.c.h.b16 %v216
    %v551 = vunpack.c.l.b16 %v217
    %v552 = vunpack.c.h.b16 %v217
    %v553 = vunpack.c.l.b16 %v218
    %v554 = vunpack.c.h.b16 %v218
    %v555 = vunpack.c.l.b16 %v219
    %v556 = vunpack.c.h.b16 %v219
    %v557 = vunpack.c.l.b16 %v220
    %v558 = vunpack.c.h.b16 %v220
    %v559 = vunpack.c.l.b16 %v221
    %v560 = vunpack.c.h.b16 %v221
    %v561 = vunpack.c.l.b16 %v222
    %v562 = vunpack.c.h.b16 %v222
    %v563 = vunpack.c.l.b16 %v223
    %v564 = vunpack.c.h.b16 %v223
    %v565 = vunpack.c.l.b16 %v224
    %v566 = vunpack.c.h.b16 %v224
    %v567 = vunpack.c.l.b16 %v225
    %v568 = vunpack.c.h.b16 %v225
    %v569 = vunpack.c.l.b16 %v226
    %v570 = vunpack.c.h.b16 %v226
    %v571 = vunpack.c.l.b16 %v227
    %v572 = vunpack.c.h.b16 %v227
    %v573 = vunpack.c.l.b16 %v228
    %v574 = vunpack.c.h.b16 %v228
    %v575 = vunpack.c.l.b16 %v229
    %v576 = vunpack.c.h.b16 %v229
    %v577 = vunpack.c.l.b16 %v230
    %v578 = vunpack.c.h.b16 %v230
    %v579 = vunpack.c.l.b16 %v231
    %v580 = vunpack.c.h.b16 %v231
    %v581 = vunpack.c.l.b16 %v232
    %v582 = vunpack.c.h.b16 %v232
    %v583 = vunpack.c.l.b16 %v233
    %v584 = vunpack.c.h.b16 %v233
    %v585 = vunpack.c.l.b16 %v234
    %v586 = vunpack.c.h.b16 %v234
    %v587 = vunpack.c.l.b16 %v235
    %v588 = vunpack.c.h.b16 %v235
    %v589 = vunpack.c.l.b16 %v236
    %v590 = vunpack.c.h.b16 %v236
    %v591 = vunpack.c.l.b16 %v237
    %v592 = vunpack.c.h.b16 %v237
    %v593 = vunpack.c.l.b16 %v238
    %v594 = vunpack.c.h.b16 %v238
    %v595 = vunpack.c.l.b16 %v239
    %v596 = vunpack.c.h.b16 %v239
    %v597 = vunpack.c.l.b16 %v240
    %v598 = vunpack.c.h.b16 %v240
    %v599 = vunpack.c.l.b16 %v241
    %v600 = vunpack.c.h.b16 %v241
    %v601 = vunpack.c.l.b16 %v242
    %v602 = vunpack.c.h.b16 %v242
    %v603 = vunpack.c.l.b16 %v243
    %v604 = vunpack.c.h.b16 %v243
    %v605 = vunpack.c.l.b16 %v244
    %v606 = vunpack.c.h.b16 %v244
    %v607 = vunpack.c.l.b16 %v245
    %v608 = vunpack.c.h.b16 %v245
    %v609 = vunpack.c.l.b16 %v246
    %v610 = vunpack.c.h.b16 %v246
    %v611 = vunpack.c.l.b16 %v247
    %v612 = vunpack.c.h.b16 %v247
    %v613 = vunpack.c.l.b16 %v248
    %v614 = vunpack.c.h.b16 %v248
    %v615 = vunpack.c.l.b16 %v249
    %v616 = vunpack.c.h.b16 %v249
    %v617 = vunpack.c.l.b16 %v250
    %v618 = vunpack.c.h.b16 %v250
    %v619 = vunpack.c.l.b16 %v251
    %v620 = vunpack.c.h.b16 %v251
    %v621 = vunpack.c.l.b16 %v252
    %v622 = vunpack.c.h.b16 %v252
    %v623 = vunpack.c.l.b16 %v253
    %v624 = vunpack.c.h.b16 %v253
    %v625 = vunpack.c.l.b16 %v254
    %v626 = vunpack.c.h.b16 %v254
    %v627 = vunpack.c.l.b16 %v255
    %v628 = vunpack.c.h.b16 %v255
    %v629 = vunpack.c.l.b16 %v256
    %v630 = vunpack.c.h.b16 %v256
    %v631 = vunpack.c.l.b16 %v257
    %v632 = vunpack.c.h.b16 %v257
    %v633 = vunpack.c.l.b16 %v258
    %v634 = vunpack.c.h.b16 %v258
    %v635 = vunpack.c.l.b16 %v259
    %v636 = vunpack.c.h.b16 %v259
    %v637 = vunpack.c.l.b16 %v260
    %v638 = vunpack.c.h.b16 %v260
    %v639 = vunpack.c.l.b16 %v261
    %v640 = vunpack.c.h.b16 %v261
    %v641 = vunpack.c.l.b16 %v262
    %v642 = vunpack.c.h.b16 %v262
    %v643 = vunpack.c.l.b16 %v263
    %v644 = vunpack.c.h.b16 %v263
    %v645 = vunpack.c.l.b16 %v264
    %v646 = vunpack.c.h.b16 %v264
    %v647 = vunpack.c.l.b16 %v265
    %v648 = vunpack.c.h.b16 %v265
    %v649 = vunpack.c.l.b16 %v266
    %v650 = vunpack.c.h.b16 %v266
    %v651 = vunpack.c.l.b16 %v267
    %v652 = vunpack.c.h.b16 %v267
    %v653 = vunpack.c.l.b16 %v268
    %v654 = vunpack.c.h.b16 %v268
    %v655 = vunpack.c.l.b16 %v269
    %v656 = vunpack.c.h.b16 %v269
    %v657 = vunpack.c.l.b16 %v270
    %v658 = vunpack.c.h.b16 %v270
    %v659 = vunpack.c.l.b16 %v271
    %v660 = vunpack.c.h.b16 %v271
    %v661 = vunpack.c.l.b16 %v272
    %v662 = vunpack.c.h.b16 %v272
    %v663 = vunpack.c.l.b16 %v273
    %v664 = vunpack.c.h.b16 %v273
    %v665 = vunpack.c.l.b16 %v274
    %v666 = vunpack.c.h.b16 %v274
    %v667 = vunpack.c.l.b16 %v275
    %v668 = vunpack.c.h.b16 %v275
    %v669 = vunpack.c.l.b16 %v276
    %v670 = vunpack.c.h.b16 %v276
    %v671 = vpack.c.b16 %v419, %v415
    %v672 = vpack.c.b16 %v420, %v416
    %v673 = vpack.c.b16 %v421, %v417
    %v674 = vpack.c.b16 %v422, %v418
    %v675 = vpack.c.b16 %v427, %v423
    %v676 = vpack.c.b16 %v428, %v424
    %v677 = vpack.c.b16 %v429, %v425
    %v678 = vpack.c.b16 %v430, %v426
    %v679 = vpack.c.b16 %v435, %v431
    %v680 = vpack.c.b16 %v436, %v432
    %v681 = vpack.c.b16 %v437, %v433
    %v682 = vpack.c.b16 %v438, %v434
    %v683 = vpack.c.b16 %v443, %v439
    %v684 = vpack.c.b16 %v444, %v440
    %v685 = vpack.c.b16 %v445, %v441
    %v686 = vpack.c.b16 %v446, %v442
    %v687 = vpack.c.b16 %v451, %v447
    %v688 = vpack.c.b16 %v452, %v448
    %v689 = vpack.c.b16 %v453, %v449
    %v690 = vpack.c.b16 %v454, %v450
    %v691 = vpack.c.b16 %v459, %v455
    %v692 = vpack.c.b16 %v460, %v456
    %v693 = vpack.c.b16 %v461, %v457
    %v694 = vpack.c.b16 %v462, %v458
    %v695 = vpack.c.b16 %v467, %v463
    %v696 = vpack.c.b16 %v468, %v464
    %v697 = vpack.c.b16 %v469, %v465
    %v698 = vpack.c.b16 %v470, %v466
    %v699 = vpack.c.b16 %v475, %v471
    %v700 = vpack.c.b16 %v476, %v472
    %v701 = vpack.c.b16 %v477, %v473
    %v702 = vpack.c.b16 %v478, %v474
    %v703 = vpack.c.b16 %v483, %v479
    %v704 = vpack.c.b16 %v484, %v480
    %v705 = vpack.c.b16 %v485, %v481
    %v706 = vpack.c.b16 %v486, %v482
    %v707 = vpack.c.b16 %v491, %v487
    %v708 = vpack.c.b16 %v492, %v488
    %v709 = vpack.c.b16 %v493, %v489
    %v710 = vpack.c.b16 %v494, %v490
    %v711 = vpack.c.b16 %v499, %v495
    %v712 = vpack.c.b16 %v500, %v496
    %v713 = vpack.c.b16 %v501, %v497
    %v714 = vpack.c.b16 %v502, %v498
    %v715 = vpack.c.b16 %v507, %v503
    %v716 = vpack.c.b16 %v508, %v504
    %v717 = vpack.c.b16 %v509, %v505
    %v718 = vpack.c.b16 %v510, %v506
    %v719 = vpack.c.b16 %v515, %v511
    %v720 = vpack.c.b16 %v516, %v512
    %v721 = vpack.c.b16 %v517, %v513
    %v722 = vpack.c.b16 %v518, %v514
    %v723 = vpack.c.b16 %v523, %v519
    %v724 = vpack.c.b16 %v524, %v520
    %v725 = vpack.c.b16 %v525, %v521
    %v726 = vpack.c.b16 %v526, %v522
    %v727 = vpack.c.b16 %v531, %v527
    %v728 = vpack.c.b16 %v532, %v528
    %v729 = vpack.c.b16 %v533, %v529
    %v730 = vpack.c.b16 %v534, %v530
    %v731 = vpack.c.b16 %v539, %v535
    %v732 = vpack.c.b16 %v540, %v536
    %v733 = vpack.c.b16 %v541, %v537
    %v734 = vpack.c.b16 %v542, %v538
    %v735 = vpack.c.b16 %v547, %v543
    %v736 = vpack.c.b16 %v548, %v544
    %v737 = vpack.c.b16 %v549, %v545
    %v738 = vpack.c.b16 %v550, %v546
    %v739 = vpack.c.b16 %v555, %v551
    %v740 = vpack.c.b16 %v556, %v552
    %v741 = vpack.c.b16 %v557, %v553
    %v742 = vpack.c.b16 %v558, %v554
    %v743 = vpack.c.b16 %v563, %v559
    %v744 = vpack.c.b16 %v564, %v560
    %v745 = vpack.c.b16 %v565, %v561
    %v746 = vpack.c.b16 %v566, %v562
    %v747 = vpack.c.b16 %v571, %v567
    %v748 = vpack.c.b16 %v572, %v568
    %v749 = vpack.c.b16 %v573, %v569
    %v750 = vpack.c.b16 %v574, %v570
    %v751 = vpack.c.b16 %v579, %v575
    %v752 = vpack.c.b16 %v580, %v576
    %v753 = vpack.c.b16 %v581, %v577
    %v754 = vpack.c.b16 %v582, %v578
    %v755 = vpack.c.b16 %v587, %v583
    %v756 = vpack.c.b16 %v588, %v584
    %v757 = vpack.c.b16 %v589, %v585
    %v758 = vpack.c.b16 %v590, %v586
    %v759 = vpack.c.b16 %v595, %v591
    %v760 = vpack.c.b16 %v596, %v592
    %v761 = vpack.c.b16 %v597, %v593
    %v762 = vpack.c.b16 %v598, %v594
    %v763 = vpack.c.b16 %v603, %v599
    %v764 = vpack.c.b16 %v604, %v600
    %v765 = vpack.c.b16 %v605, %v601
    %v766 = vpack.c.b16 %v606, %v602
    %v767 = vpack.c.b16 %v611, %v607
    %v768 = vpack.c.b16 %v612, %v608
    %v769 = vpack.c.b16 %v613, %v609
    %v770 = vpack.c.b16 %v614, %v610
    %v771 = vpack.c.b16 %v619, %v615
    %v772 = vpack.c.b16 %v620, %v616
    %v773 = vpack.c.b16 %v621, %v617
    %v774 = vpack.c.b16 %v622, %v618
    %v775 = vpack.c.b16 %v627, %v623
    %v776 = vpack.c.b16 %v628, %v624
    %v777 = vpack.c.b16 %v629, %v625
    %v778 = vpack.c.b16 %v630, %v626
    %v779 = vpack.c.b16 %v635, %v631
    %v780 = vpack.c.b16 %v636, %v632
    %v781 = vpack.c.b16 %v637, %v633
    %v782 = vpack.c.b16 %v638, %v634
    %v783 = vpack.c.b16 %v643, %v639
    %v784 = vpack.c.b16 %v644, %v640
    %v785 = vpack.c.b16 %v645, %v641
    %v786 = vpack.c.b16 %v646, %v642
    %v787 = vpack.c.b16 %v651, %v647
    %v788 = vpack.c.b16 %v652, %v648
    %v789 = vpack.c.b16 %v653, %v649
    %v790 = vpack.c.b16 %v654, %v650
    %v791 = vpack.c.b16 %v659, %v655
    %v792 = vpack.c.b16 %v660, %v656
    %v793 = vpack.c.b16 %v661, %v657
    %v794 = vpack.c.b16 %v662, %v658
    %v795 = vpack.c.b16 %v667, %v663
    %v796 = vpack.c.b16 %v668, %v664
    %v797 = vpack.c.b16 %v669, %v665
    %v798 = vpack.c.b16 %v670, %v666
    %927 = vmatpush.bf16.msra.mxu0 %v699
    %928 = vmatpush.bf16.msra.mxu0 %v695
    %929 = vmatpush.bf16.msra.mxu0 %v691
    %930 = vmatpush.bf16.msra.mxu0 %v687
    %931 = vmatpush.bf16.msra.mxu0 %v683
    %932 = vmatpush.bf16.msra.mxu0 %v679
    %933 = vmatpush.bf16.msra.mxu0 %v675
    %934 = vmatpush.bf16.msra.mxu0 %v671
    %935 = vmatmul.bf16.gmra.mxu0 %v145
    %v936 = vpop.f32.mrf.mxu0
    %v937 = vadd.f32 %v279, %v936
    %v938 = vpop.f32.mrf.mxu0
    %939 = vdwg.mxu0
    %940 = vmatpush.bf16.msra.mxu0 %v731
    %941 = vmatpush.bf16.msra.mxu0 %v727
    %942 = vmatpush.bf16.msra.mxu0 %v723
    %943 = vmatpush.bf16.msra.mxu0 %v719
    %944 = vmatpush.bf16.msra.mxu0 %v715
    %945 = vmatpush.bf16.msra.mxu0 %v711
    %946 = vmatpush.bf16.msra.mxu0 %v707
    %947 = vmatpush.bf16.msra.mxu0 %v703
    %948 = vmatmul.bf16.gmra.mxu0 %v146
    %v949 = vpop.f32.mrf.mxu0
    %v950 = vadd.f32 %v937, %v949
    %v951 = vpop.f32.mrf.mxu0
    %952 = vdwg.mxu0
    %953 = vmatpush.bf16.msra.mxu0 %v763
    %954 = vmatpush.bf16.msra.mxu0 %v759
    %955 = vmatpush.bf16.msra.mxu0 %v755
    %956 = vmatpush.bf16.msra.mxu0 %v751
    %957 = vmatpush.bf16.msra.mxu0 %v747
    %958 = vmatpush.bf16.msra.mxu0 %v743
    %959 = vmatpush.bf16.msra.mxu0 %v739
    %960 = vmatpush.bf16.msra.mxu0 %v735
    %961 = vmatmul.bf16.gmra.mxu0 %v147
    %v962 = vpop.f32.mrf.mxu0
    %v963 = vadd.f32 %v950, %v962
    %v964 = vpop.f32.mrf.mxu0
    %965 = vdwg.mxu0
    %966 = vmatpush.bf16.msra.mxu0 %v795
    %967 = vmatpush.bf16.msra.mxu0 %v791
    %968 = vmatpush.bf16.msra.mxu0 %v787
    %969 = vmatpush.bf16.msra.mxu0 %v783
    %970 = vmatpush.bf16.msra.mxu0 %v779
    %971 = vmatpush.bf16.msra.mxu0 %v775
    %972 = vmatpush.bf16.msra.mxu0 %v771
    %973 = vmatpush.bf16.msra.mxu0 %v767
    %974 = vmatmul.bf16.gmra.mxu0 %v148
    %v975 = vpop.f32.mrf.mxu0
    %v976 = vadd.f32 %v963, %v975
    %v977 = vpop.f32.mrf.mxu0
    %978 = vdwg.mxu0
    %979 = vmatpush.bf16.msra.mxu0 %v700
    %980 = vmatpush.bf16.msra.mxu0 %v696
    %981 = vmatpush.bf16.msra.mxu0 %v692
    %982 = vmatpush.bf16.msra.mxu0 %v688
    %983 = vmatpush.bf16.msra.mxu0 %v684
    %984 = vmatpush.bf16.msra.mxu0 %v680
    %985 = vmatpush.bf16.msra.mxu0 %v676
    %986 = vmatpush.bf16.msra.mxu0 %v672
    %987 = vmatmul.bf16.gmra.mxu0 %v145
    %v988 = vpop.f32.mrf.mxu0
    %v989 = vadd.f32 %v280, %v988
    %v990 = vpop.f32.mrf.mxu0
    %991 = vdwg.mxu0
    %992 = vmatpush.bf16.msra.mxu0 %v732
    %993 = vmatpush.bf16.msra.mxu0 %v728
    %994 = vmatpush.bf16.msra.mxu0 %v724
    %995 = vmatpush.bf16.msra.mxu0 %v720
    %996 = vmatpush.bf16.msra.mxu0 %v716
    %997 = vmatpush.bf16.msra.mxu0 %v712
    %998 = vmatpush.bf16.msra.mxu0 %v708
    %999 = vmatpush.bf16.msra.mxu0 %v704
    %1000 = vmatmul.bf16.gmra.mxu0 %v146
    %v1001 = vpop.f32.mrf.mxu0
    %v1002 = vadd.f32 %v989, %v1001
    %v1003 = vpop.f32.mrf.mxu0
    %1004 = vdwg.mxu0
    %1005 = vmatpush.bf16.msra.mxu0 %v764
    %1006 = vmatpush.bf16.msra.mxu0 %v760
    %1007 = vmatpush.bf16.msra.mxu0 %v756
    %1008 = vmatpush.bf16.msra.mxu0 %v752
    %1009 = vmatpush.bf16.msra.mxu0 %v748
    %1010 = vmatpush.bf16.msra.mxu0 %v744
    %1011 = vmatpush.bf16.msra.mxu0 %v740
    %1012 = vmatpush.bf16.msra.mxu0 %v736
    %1013 = vmatmul.bf16.gmra.mxu0 %v147
    %v1014 = vpop.f32.mrf.mxu0
    %v1015 = vadd.f32 %v1002, %v1014
    %v1016 = vpop.f32.mrf.mxu0
    %1017 = vdwg.mxu0
    %1018 = vmatpush.bf16.msra.mxu0 %v796
    %1019 = vmatpush.bf16.msra.mxu0 %v792
    %1020 = vmatpush.bf16.msra.mxu0 %v788
    %1021 = vmatpush.bf16.msra.mxu0 %v784
    %1022 = vmatpush.bf16.msra.mxu0 %v780
    %1023 = vmatpush.bf16.msra.mxu0 %v776
    %1024 = vmatpush.bf16.msra.mxu0 %v772
    %1025 = vmatpush.bf16.msra.mxu0 %v768
    %1026 = vmatmul.bf16.gmra.mxu0 %v148
    %v1027 = vpop.f32.mrf.mxu0
    %v1028 = vadd.f32 %v1015, %v1027
    %v1029 = vpop.f32.mrf.mxu0
    %1030 = vdwg.mxu0
    %1031 = vmatpush.bf16.msra.mxu0 %v701
    %1032 = vmatpush.bf16.msra.mxu0 %v697
    %1033 = vmatpush.bf16.msra.mxu0 %v693
    %1034 = vmatpush.bf16.msra.mxu0 %v689
    %1035 = vmatpush.bf16.msra.mxu0 %v685
    %1036 = vmatpush.bf16.msra.mxu0 %v681
    %1037 = vmatpush.bf16.msra.mxu0 %v677
    %1038 = vmatpush.bf16.msra.mxu0 %v673
    %1039 = vmatmul.bf16.gmra.mxu0 %v145
    %v1040 = vpop.f32.mrf.mxu0
    %v1041 = vadd.f32 %v281, %v1040
    %v1042 = vpop.f32.mrf.mxu0
    %1043 = vdwg.mxu0
    %1044 = vmatpush.bf16.msra.mxu0 %v733
    %1045 = vmatpush.bf16.msra.mxu0 %v729
    %1046 = vmatpush.bf16.msra.mxu0 %v725
    %1047 = vmatpush.bf16.msra.mxu0 %v721
    %1048 = vmatpush.bf16.msra.mxu0 %v717
    %1049 = vmatpush.bf16.msra.mxu0 %v713
    %1050 = vmatpush.bf16.msra.mxu0 %v709
    %1051 = vmatpush.bf16.msra.mxu0 %v705
    %1052 = vmatmul.bf16.gmra.mxu0 %v146
    %v1053 = vpop.f32.mrf.mxu0
    %v1054 = vadd.f32 %v1041, %v1053
    %v1055 = vpop.f32.mrf.mxu0
    %1056 = vdwg.mxu0
    %1057 = vmatpush.bf16.msra.mxu0 %v765
    %1058 = vmatpush.bf16.msra.mxu0 %v761
    %1059 = vmatpush.bf16.msra.mxu0 %v757
    %1060 = vmatpush.bf16.msra.mxu0 %v753
    %1061 = vmatpush.bf16.msra.mxu0 %v749
    %1062 = vmatpush.bf16.msra.mxu0 %v745
    %1063 = vmatpush.bf16.msra.mxu0 %v741
    %1064 = vmatpush.bf16.msra.mxu0 %v737
    %1065 = vmatmul.bf16.gmra.mxu0 %v147
    %v1066 = vpop.f32.mrf.mxu0
    %v1067 = vadd.f32 %v1054, %v1066
    %v1068 = vpop.f32.mrf.mxu0
    %1069 = vdwg.mxu0
    %1070 = vmatpush.bf16.msra.mxu0 %v797
    %1071 = vmatpush.bf16.msra.mxu0 %v793
    %1072 = vmatpush.bf16.msra.mxu0 %v789
    %1073 = vmatpush.bf16.msra.mxu0 %v785
    %1074 = vmatpush.bf16.msra.mxu0 %v781
    %1075 = vmatpush.bf16.msra.mxu0 %v777
    %1076 = vmatpush.bf16.msra.mxu0 %v773
    %1077 = vmatpush.bf16.msra.mxu0 %v769
    %1078 = vmatmul.bf16.gmra.mxu0 %v148
    %v1079 = vpop.f32.mrf.mxu0
    %v1080 = vadd.f32 %v1067, %v1079
    %v1081 = vpop.f32.mrf.mxu0
    %1082 = vdwg.mxu0
    %1083 = vmatpush.bf16.msra.mxu0 %v702
    %1084 = vmatpush.bf16.msra.mxu0 %v698
    %1085 = vmatpush.bf16.msra.mxu0 %v694
    %1086 = vmatpush.bf16.msra.mxu0 %v690
    %1087 = vmatpush.bf16.msra.mxu0 %v686
    %1088 = vmatpush.bf16.msra.mxu0 %v682
    %1089 = vmatpush.bf16.msra.mxu0 %v678
    %1090 = vmatpush.bf16.msra.mxu0 %v674
    %1091 = vmatmul.bf16.gmra.mxu0 %v145
    %v1092 = vpop.f32.mrf.mxu0
    %v1093 = vadd.f32 %v282, %v1092
    %v1094 = vpop.f32.mrf.mxu0
    %1095 = vdwg.mxu0
    %1096 = vmatpush.bf16.msra.mxu0 %v734
    %1097 = vmatpush.bf16.msra.mxu0 %v730
    %1098 = vmatpush.bf16.msra.mxu0 %v726
    %1099 = vmatpush.bf16.msra.mxu0 %v722
    %1100 = vmatpush.bf16.msra.mxu0 %v718
    %1101 = vmatpush.bf16.msra.mxu0 %v714
    %1102 = vmatpush.bf16.msra.mxu0 %v710
    %1103 = vmatpush.bf16.msra.mxu0 %v706
    %1104 = vmatmul.bf16.gmra.mxu0 %v146
    %v1105 = vpop.f32.mrf.mxu0
    %v1106 = vadd.f32 %v1093, %v1105
    %v1107 = vpop.f32.mrf.mxu0
    %1108 = vdwg.mxu0
    %1109 = vmatpush.bf16.msra.mxu0 %v766
    %1110 = vmatpush.bf16.msra.mxu0 %v762
    %1111 = vmatpush.bf16.msra.mxu0 %v758
    %1112 = vmatpush.bf16.msra.mxu0 %v754
    %1113 = vmatpush.bf16.msra.mxu0 %v750
    %1114 = vmatpush.bf16.msra.mxu0 %v746
    %1115 = vmatpush.bf16.msra.mxu0 %v742
    %1116 = vmatpush.bf16.msra.mxu0 %v738
    %1117 = vmatmul.bf16.gmra.mxu0 %v147
    %v1118 = vpop.f32.mrf.mxu0
    %v1119 = vadd.f32 %v1106, %v1118
    %v1120 = vpop.f32.mrf.mxu0
    %1121 = vdwg.mxu0
    %1122 = vmatpush.bf16.msra.mxu0 %v798
    %1123 = vmatpush.bf16.msra.mxu0 %v794
    %1124 = vmatpush.bf16.msra.mxu0 %v790
    %1125 = vmatpush.bf16.msra.mxu0 %v786
    %1126 = vmatpush.bf16.msra.mxu0 %v782
    %1127 = vmatpush.bf16.msra.mxu0 %v778
    %1128 = vmatpush.bf16.msra.mxu0 %v774
    %1129 = vmatpush.bf16.msra.mxu0 %v770
    %1130 = vmatmul.bf16.gmra.mxu0 %v148
    %v1131 = vpop.f32.mrf.mxu0
    %v1132 = vadd.f32 %v1119, %v1131
    %v1133 = vpop.f32.mrf.mxu0
    %1134 = vdwg.mxu0
    %v1135 = vld [vmem:[%s6] sm:$0xf]
    %v1136 = vld [vmem:[%s7] sm:$0xf]
    %vm1137 = vcmask 1043456
    %v1138 = vsel %vm1137, %v976, 0.0
    %v1139 = vrot.slane %v1138, 4
    %v1140 = vadd.f32 %v1138, %v1139
    %v1141 = vrot.slane %v1140, 2
    %v1142 = vadd.f32 %v1140, %v1141
    %v1143 = vrot.slane %v1142, 1
    %v1144 = vadd.f32 %v1142, %v1143
    %v1145 = vsel %vm1137, %v1028, 0.0
    %v1146 = vrot.slane %v1145, 4
    %v1147 = vadd.f32 %v1145, %v1146
    %v1148 = vrot.slane %v1147, 2
    %v1149 = vadd.f32 %v1147, %v1148
    %v1150 = vrot.slane %v1149, 1
    %v1151 = vadd.f32 %v1149, %v1150
    %v1152 = vsel %vm1137, %v1080, 0.0
    %v1153 = vrot.slane %v1152, 4
    %v1154 = vadd.f32 %v1152, %v1153
    %v1155 = vrot.slane %v1154, 2
    %v1156 = vadd.f32 %v1154, %v1155
    %v1157 = vrot.slane %v1156, 1
    %v1158 = vadd.f32 %v1156, %v1157
    %v1159 = vsel %vm1137, %v1132, 0.0
    %v1160 = vrot.slane %v1159, 4
    %v1161 = vadd.f32 %v1159, %v1160
    %v1162 = vrot.slane %v1161, 2
    %v1163 = vadd.f32 %v1161, %v1162
    %v1164 = vrot.slane %v1163, 1
    %v1165 = vadd.f32 %v1163, %v1164
    %v1166 = vrcp.pop 4.0
    %v1167 = vmul.f32 4.0, %v1166
    %v1168 = vsub.f32 1.0, %v1167
    %v1169 = vmul.f32 %v1166, %v1168
    %v1170 = vadd.f32 %v1166, %v1169
    %vm1171 = vweird.f32 %v1166
    %v1172 = vsel %vm1171, %v1166, %v1170
    %v1173 = vmul.f32 %v1144, %v1172
    %v1174 = vmul.f32 %v1151, %v1172
    %v1175 = vmul.f32 %v1158, %v1172
    %v1176 = vmul.f32 %v1165, %v1172
    %v1177 = vsub.f32 %v976, %v1173
    %v1178 = vsub.f32 %v1028, %v1174
    %v1179 = vsub.f32 %v1080, %v1175
    %v1180 = vsub.f32 %v1132, %v1176
    %v1181 = vmul.f32 %v1177, %v1177
    %v1182 = vmul.f32 %v1178, %v1178
    %v1183 = vmul.f32 %v1179, %v1179
    %v1184 = vmul.f32 %v1180, %v1180
    %v1185 = vsel %vm1137, %v1181, 0.0
    %v1186 = vrot.slane %v1185, 4
    %v1187 = vadd.f32 %v1185, %v1186
    %v1188 = vrot.slane %v1187, 2
    %v1189 = vadd.f32 %v1187, %v1188
    %v1190 = vrot.slane %v1189, 1
    %v1191 = vadd.f32 %v1189, %v1190
    %v1192 = vsel %vm1137, %v1182, 0.0
    %v1193 = vrot.slane %v1192, 4
    %v1194 = vadd.f32 %v1192, %v1193
    %v1195 = vrot.slane %v1194, 2
    %v1196 = vadd.f32 %v1194, %v1195
    %v1197 = vrot.slane %v1196, 1
    %v1198 = vadd.f32 %v1196, %v1197
    %v1199 = vsel %vm1137, %v1183, 0.0
    %v1200 = vrot.slane %v1199, 4
    %v1201 = vadd.f32 %v1199, %v1200
    %v1202 = vrot.slane %v1201, 2
    %v1203 = vadd.f32 %v1201, %v1202
    %v1204 = vrot.slane %v1203, 1
    %v1205 = vadd.f32 %v1203, %v1204
    %v1206 = vsel %vm1137, %v1184, 0.0
    %v1207 = vrot.slane %v1206, 4
    %v1208 = vadd.f32 %v1206, %v1207
    %v1209 = vrot.slane %v1208, 2
    %v1210 = vadd.f32 %v1208, %v1209
    %v1211 = vrot.slane %v1210, 1
    %v1212 = vadd.f32 %v1210, %v1211
    %v1213 = vmul.f32 %v1191, %v1172
    %v1214 = vmul.f32 %v1198, %v1172
    %v1215 = vmul.f32 %v1205, %v1172
    %v1216 = vmul.f32 %v1212, %v1172
    %v1217 = vadd.f32 %v1213, 1e-05
    %v1218 = vadd.f32 %v1214, 1e-05
    %v1219 = vadd.f32 %v1215, 1e-05
    %v1220 = vadd.f32 %v1216, 1e-05
    %v1221 = vrsqrt.pop %v1217
    %v1222 = vmul.f32 %v1221, %v1217
    %v1223 = vmul.f32 %v1222, %v1221
    %v1224 = vmul.f32 0.5, %v1223
    %v1225 = vsub.f32 1.5, %v1224
    %v1226 = vmul.f32 %v1221, %v1225
    %vm1227 = vweird.f32 %v1217
    %vm1228 = vweird.f32 %v1221
    %vm1229 = vmor %vm1227, %vm1228
    %v1230 = vsel %vm1229, %v1221, %v1226
    %v1231 = vrsqrt.pop %v1218
    %v1232 = vmul.f32 %v1231, %v1218
    %v1233 = vmul.f32 %v1232, %v1231
    %v1234 = vmul.f32 0.5, %v1233
    %v1235 = vsub.f32 1.5, %v1234
    %v1236 = vmul.f32 %v1231, %v1235
    %vm1237 = vweird.f32 %v1218
    %vm1238 = vweird.f32 %v1231
    %vm1239 = vmor %vm1237, %vm1238
    %v1240 = vsel %vm1239, %v1231, %v1236
    %v1241 = vrsqrt.pop %v1219
    %v1242 = vmul.f32 %v1241, %v1219
    %v1243 = vmul.f32 %v1242, %v1241
    %v1244 = vmul.f32 0.5, %v1243
    %v1245 = vsub.f32 1.5, %v1244
    %v1246 = vmul.f32 %v1241, %v1245
    %vm1247 = vweird.f32 %v1219
    %vm1248 = vweird.f32 %v1241
    %vm1249 = vmor %vm1247, %vm1248
    %v1250 = vsel %vm1249, %v1241, %v1246
    %v1251 = vrsqrt.pop %v1220
    %v1252 = vmul.f32 %v1251, %v1220
    %v1253 = vmul.f32 %v1252, %v1251
    %v1254 = vmul.f32 0.5, %v1253
    %v1255 = vsub.f32 1.5, %v1254
    %v1256 = vmul.f32 %v1251, %v1255
    %vm1257 = vweird.f32 %v1220
    %vm1258 = vweird.f32 %v1251
    %vm1259 = vmor %vm1257, %vm1258
    %v1260 = vsel %vm1259, %v1251, %v1256
    %v1261 = vmul.f32 %v1177, %v1230
    %v1262 = vmul.f32 %v1178, %v1240
    %v1263 = vmul.f32 %v1179, %v1250
    %v1264 = vmul.f32 %v1180, %v1260
    %v1266 = vperm.slane %v1135, 0
    %v1267 = vperm.slane %v1135, 1
    %v1268 = vperm.slane %v1135, 2
    %v1269 = vperm.slane %v1135, 3
    %v1274 = vmul.f32 %v1261, %v1266
    %v1275 = vmul.f32 %v1262, %v1267
    %v1276 = vmul.f32 %v1263, %v1268
    %v1277 = vmul.f32 %v1264, %v1269
    %v1279 = vperm.slane %v1136, 0
    %v1280 = vperm.slane %v1136, 1
    %v1281 = vperm.slane %v1136, 2
    %v1282 = vperm.slane %v1136, 3
    %v1287 = vadd.f32 %v1274, %v1279
    %v1288 = vadd.f32 %v1275, %v1280
    %v1289 = vadd.f32 %v1276, %v1281
    %v1290 = vadd.f32 %v1277, %v1282
    %v1291 = vmax.f32 %v1287, 0.0
    %v1292 = vmax.f32 %v1288, 0.0
    %v1293 = vmax.f32 %v1289, 0.0
    %v1294 = vmax.f32 %v1290, 0.0
    %v1295 = vpack.c.bf16 %v1291, %v1291
    %v1296 = vpack.c.bf16 %v1292, %v1292
    %v1297 = vpack.c.bf16 %v1293, %v1293
    %v1298 = vpack.c.bf16 %v1294, %v1294
    %v1299 = vld [vmem:[%s8] sm:$0xff]
    %v1300 = vld [vmem:[%s8 + $0x8] sm:$0xff]
    %v1301 = vld [vmem:[%s8 + $0x10] sm:$0xff]
    %v1302 = vld [vmem:[%s8 + $0x18] sm:$0xff]
    %v1303 = vld [vmem:[%s8 + $0x20] sm:$0xff]
    %v1304 = vld [vmem:[%s8 + $0x28] sm:$0xff]
    %v1305 = vld [vmem:[%s8 + $0x30] sm:$0xff]
    %v1306 = vld [vmem:[%s8 + $0x38] sm:$0xff]
    %v1307 = vld [vmem:[%s8 + $0x40] sm:$0xff]
    %v1308 = vld [vmem:[%s8 + $0x48] sm:$0xff]
    %v1309 = vld [vmem:[%s8 + $0x50] sm:$0xff]
    %v1310 = vld [vmem:[%s8 + $0x58] sm:$0xff]
    %v1311 = vld [vmem:[%s8 + $0x60] sm:$0xff]
    %v1312 = vld [vmem:[%s8 + $0x68] sm:$0xff]
    %v1313 = vld [vmem:[%s8 + $0x70] sm:$0xff]
    %v1314 = vld [vmem:[%s8 + $0x78] sm:$0xff]
    %v1315 = vld [vmem:[%s8 + $0x80] sm:$0xff]
    %v1316 = vld [vmem:[%s8 + $0x88] sm:$0xff]
    %v1317 = vld [vmem:[%s8 + $0x90] sm:$0xff]
    %v1318 = vld [vmem:[%s8 + $0x98] sm:$0xff]
    %v1319 = vld [vmem:[%s8 + $0xa0] sm:$0xff]
    %v1320 = vld [vmem:[%s8 + $0xa8] sm:$0xff]
    %v1321 = vld [vmem:[%s8 + $0xb0] sm:$0xff]
    %v1322 = vld [vmem:[%s8 + $0xb8] sm:$0xff]
    %v1323 = vld [vmem:[%s8 + $0xc0] sm:$0xff]
    %v1324 = vld [vmem:[%s8 + $0xc8] sm:$0xff]
    %v1325 = vld [vmem:[%s8 + $0xd0] sm:$0xff]
    %v1326 = vld [vmem:[%s8 + $0xd8] sm:$0xff]
    %v1327 = vld [vmem:[%s8 + $0xe0] sm:$0xff]
    %v1328 = vld [vmem:[%s8 + $0xe8] sm:$0xff]
    %v1329 = vld [vmem:[%s8 + $0xf0] sm:$0xff]
    %v1330 = vld [vmem:[%s8 + $0xf8] sm:$0xff]
    %v1331 = vld [vmem:[%s8 + $0x100] sm:$0xff]
    %v1332 = vld [vmem:[%s8 + $0x108] sm:$0xff]
    %v1333 = vld [vmem:[%s8 + $0x110] sm:$0xff]
    %v1334 = vld [vmem:[%s8 + $0x118] sm:$0xff]
    %v1335 = vld [vmem:[%s8 + $0x120] sm:$0xff]
    %v1336 = vld [vmem:[%s8 + $0x128] sm:$0xff]
    %v1337 = vld [vmem:[%s8 + $0x130] sm:$0xff]
    %v1338 = vld [vmem:[%s8 + $0x138] sm:$0xff]
    %v1339 = vld [vmem:[%s8 + $0x140] sm:$0xff]
    %v1340 = vld [vmem:[%s8 + $0x148] sm:$0xff]
    %v1341 = vld [vmem:[%s8 + $0x150] sm:$0xff]
    %v1342 = vld [vmem:[%s8 + $0x158] sm:$0xff]
    %v1343 = vld [vmem:[%s8 + $0x160] sm:$0xff]
    %v1344 = vld [vmem:[%s8 + $0x168] sm:$0xff]
    %v1345 = vld [vmem:[%s8 + $0x170] sm:$0xff]
    %v1346 = vld [vmem:[%s8 + $0x178] sm:$0xff]
    %v1347 = vld [vmem:[%s8 + $0x180] sm:$0xff]
    %v1348 = vld [vmem:[%s8 + $0x188] sm:$0xff]
    %v1349 = vld [vmem:[%s8 + $0x190] sm:$0xff]
    %v1350 = vld [vmem:[%s8 + $0x198] sm:$0xff]
    %v1351 = vld [vmem:[%s8 + $0x1a0] sm:$0xff]
    %v1352 = vld [vmem:[%s8 + $0x1a8] sm:$0xff]
    %v1353 = vld [vmem:[%s8 + $0x1b0] sm:$0xff]
    %v1354 = vld [vmem:[%s8 + $0x1b8] sm:$0xff]
    %v1355 = vld [vmem:[%s8 + $0x1c0] sm:$0xff]
    %v1356 = vld [vmem:[%s8 + $0x1c8] sm:$0xff]
    %v1357 = vld [vmem:[%s8 + $0x1d0] sm:$0xff]
    %v1358 = vld [vmem:[%s8 + $0x1d8] sm:$0xff]
    %v1359 = vld [vmem:[%s8 + $0x1e0] sm:$0xff]
    %v1360 = vld [vmem:[%s8 + $0x1e8] sm:$0xff]
    %v1361 = vld [vmem:[%s8 + $0x1f0] sm:$0xff]
    %v1362 = vld [vmem:[%s8 + $0x1f8] sm:$0xff]
    %v1363 = vld [vmem:[%s9] sm:$0x3]
    %v1365 = vperm.slane %v1363, 0
    %v1366 = vperm.slane %v1363, 1
    %v1433 = vunpack.c.l.b16 %v1299
    %v1434 = vunpack.c.h.b16 %v1299
    %v1435 = vunpack.c.l.b16 %v1300
    %v1436 = vunpack.c.h.b16 %v1300
    %v1437 = vunpack.c.l.b16 %v1301
    %v1438 = vunpack.c.h.b16 %v1301
    %v1439 = vunpack.c.l.b16 %v1302
    %v1440 = vunpack.c.h.b16 %v1302
    %v1441 = vunpack.c.l.b16 %v1303
    %v1442 = vunpack.c.h.b16 %v1303
    %v1443 = vunpack.c.l.b16 %v1304
    %v1444 = vunpack.c.h.b16 %v1304
    %v1445 = vunpack.c.l.b16 %v1305
    %v1446 = vunpack.c.h.b16 %v1305
    %v1447 = vunpack.c.l.b16 %v1306
    %v1448 = vunpack.c.h.b16 %v1306
    %v1449 = vunpack.c.l.b16 %v1307
    %v1450 = vunpack.c.h.b16 %v1307
    %v1451 = vunpack.c.l.b16 %v1308
    %v1452 = vunpack.c.h.b16 %v1308
    %v1453 = vunpack.c.l.b16 %v1309
    %v1454 = vunpack.c.h.b16 %v1309
    %v1455 = vunpack.c.l.b16 %v1310
    %v1456 = vunpack.c.h.b16 %v1310
    %v1457 = vunpack.c.l.b16 %v1311
    %v1458 = vunpack.c.h.b16 %v1311
    %v1459 = vunpack.c.l.b16 %v1312
    %v1460 = vunpack.c.h.b16 %v1312
    %v1461 = vunpack.c.l.b16 %v1313
    %v1462 = vunpack.c.h.b16 %v1313
    %v1463 = vunpack.c.l.b16 %v1314
    %v1464 = vunpack.c.h.b16 %v1314
    %v1465 = vunpack.c.l.b16 %v1315
    %v1466 = vunpack.c.h.b16 %v1315
    %v1467 = vunpack.c.l.b16 %v1316
    %v1468 = vunpack.c.h.b16 %v1316
    %v1469 = vunpack.c.l.b16 %v1317
    %v1470 = vunpack.c.h.b16 %v1317
    %v1471 = vunpack.c.l.b16 %v1318
    %v1472 = vunpack.c.h.b16 %v1318
    %v1473 = vunpack.c.l.b16 %v1319
    %v1474 = vunpack.c.h.b16 %v1319
    %v1475 = vunpack.c.l.b16 %v1320
    %v1476 = vunpack.c.h.b16 %v1320
    %v1477 = vunpack.c.l.b16 %v1321
    %v1478 = vunpack.c.h.b16 %v1321
    %v1479 = vunpack.c.l.b16 %v1322
    %v1480 = vunpack.c.h.b16 %v1322
    %v1481 = vunpack.c.l.b16 %v1323
    %v1482 = vunpack.c.h.b16 %v1323
    %v1483 = vunpack.c.l.b16 %v1324
    %v1484 = vunpack.c.h.b16 %v1324
    %v1485 = vunpack.c.l.b16 %v1325
    %v1486 = vunpack.c.h.b16 %v1325
    %v1487 = vunpack.c.l.b16 %v1326
    %v1488 = vunpack.c.h.b16 %v1326
    %v1489 = vunpack.c.l.b16 %v1327
    %v1490 = vunpack.c.h.b16 %v1327
    %v1491 = vunpack.c.l.b16 %v1328
    %v1492 = vunpack.c.h.b16 %v1328
    %v1493 = vunpack.c.l.b16 %v1329
    %v1494 = vunpack.c.h.b16 %v1329
    %v1495 = vunpack.c.l.b16 %v1330
    %v1496 = vunpack.c.h.b16 %v1330
    %v1497 = vunpack.c.l.b16 %v1331
    %v1498 = vunpack.c.h.b16 %v1331
    %v1499 = vunpack.c.l.b16 %v1332
    %v1500 = vunpack.c.h.b16 %v1332
    %v1501 = vunpack.c.l.b16 %v1333
    %v1502 = vunpack.c.h.b16 %v1333
    %v1503 = vunpack.c.l.b16 %v1334
    %v1504 = vunpack.c.h.b16 %v1334
    %v1505 = vunpack.c.l.b16 %v1335
    %v1506 = vunpack.c.h.b16 %v1335
    %v1507 = vunpack.c.l.b16 %v1336
    %v1508 = vunpack.c.h.b16 %v1336
    %v1509 = vunpack.c.l.b16 %v1337
    %v1510 = vunpack.c.h.b16 %v1337
    %v1511 = vunpack.c.l.b16 %v1338
    %v1512 = vunpack.c.h.b16 %v1338
    %v1513 = vunpack.c.l.b16 %v1339
    %v1514 = vunpack.c.h.b16 %v1339
    %v1515 = vunpack.c.l.b16 %v1340
    %v1516 = vunpack.c.h.b16 %v1340
    %v1517 = vunpack.c.l.b16 %v1341
    %v1518 = vunpack.c.h.b16 %v1341
    %v1519 = vunpack.c.l.b16 %v1342
    %v1520 = vunpack.c.h.b16 %v1342
    %v1521 = vunpack.c.l.b16 %v1343
    %v1522 = vunpack.c.h.b16 %v1343
    %v1523 = vunpack.c.l.b16 %v1344
    %v1524 = vunpack.c.h.b16 %v1344
    %v1525 = vunpack.c.l.b16 %v1345
    %v1526 = vunpack.c.h.b16 %v1345
    %v1527 = vunpack.c.l.b16 %v1346
    %v1528 = vunpack.c.h.b16 %v1346
    %v1529 = vunpack.c.l.b16 %v1347
    %v1530 = vunpack.c.h.b16 %v1347
    %v1531 = vunpack.c.l.b16 %v1348
    %v1532 = vunpack.c.h.b16 %v1348
    %v1533 = vunpack.c.l.b16 %v1349
    %v1534 = vunpack.c.h.b16 %v1349
    %v1535 = vunpack.c.l.b16 %v1350
    %v1536 = vunpack.c.h.b16 %v1350
    %v1537 = vunpack.c.l.b16 %v1351
    %v1538 = vunpack.c.h.b16 %v1351
    %v1539 = vunpack.c.l.b16 %v1352
    %v1540 = vunpack.c.h.b16 %v1352
    %v1541 = vunpack.c.l.b16 %v1353
    %v1542 = vunpack.c.h.b16 %v1353
    %v1543 = vunpack.c.l.b16 %v1354
    %v1544 = vunpack.c.h.b16 %v1354
    %v1545 = vunpack.c.l.b16 %v1355
    %v1546 = vunpack.c.h.b16 %v1355
    %v1547 = vunpack.c.l.b16 %v1356
    %v1548 = vunpack.c.h.b16 %v1356
    %v1549 = vunpack.c.l.b16 %v1357
    %v1550 = vunpack.c.h.b16 %v1357
    %v1551 = vunpack.c.l.b16 %v1358
    %v1552 = vunpack.c.h.b16 %v1358
    %v1553 = vunpack.c.l.b16 %v1359
    %v1554 = vunpack.c.h.b16 %v1359
    %v1555 = vunpack.c.l.b16 %v1360
    %v1556 = vunpack.c.h.b16 %v1360
    %v1557 = vunpack.c.l.b16 %v1361
    %v1558 = vunpack.c.h.b16 %v1361
    %v1559 = vunpack.c.l.b16 %v1362
    %v1560 = vunpack.c.h.b16 %v1362
    %v1561 = vpack.c.b16 %v1435, %v1433
    %v1562 = vpack.c.b16 %v1436, %v1434
    %v1563 = vpack.c.b16 %v1439, %v1437
    %v1564 = vpack.c.b16 %v1440, %v1438
    %v1565 = vpack.c.b16 %v1443, %v1441
    %v1566 = vpack.c.b16 %v1444, %v1442
    %v1567 = vpack.c.b16 %v1447, %v1445
    %v1568 = vpack.c.b16 %v1448, %v1446
    %v1569 = vpack.c.b16 %v1451, %v1449
    %v1570 = vpack.c.b16 %v1452, %v1450
    %v1571 = vpack.c.b16 %v1455, %v1453
    %v1572 = vpack.c.b16 %v1456, %v1454
    %v1573 = vpack.c.b16 %v1459, %v1457
    %v1574 = vpack.c.b16 %v1460, %v1458
    %v1575 = vpack.c.b16 %v1463, %v1461
    %v1576 = vpack.c.b16 %v1464, %v1462
    %v1577 = vpack.c.b16 %v1467, %v1465
    %v1578 = vpack.c.b16 %v1468, %v1466
    %v1579 = vpack.c.b16 %v1471, %v1469
    %v1580 = vpack.c.b16 %v1472, %v1470
    %v1581 = vpack.c.b16 %v1475, %v1473
    %v1582 = vpack.c.b16 %v1476, %v1474
    %v1583 = vpack.c.b16 %v1479, %v1477
    %v1584 = vpack.c.b16 %v1480, %v1478
    %v1585 = vpack.c.b16 %v1483, %v1481
    %v1586 = vpack.c.b16 %v1484, %v1482
    %v1587 = vpack.c.b16 %v1487, %v1485
    %v1588 = vpack.c.b16 %v1488, %v1486
    %v1589 = vpack.c.b16 %v1491, %v1489
    %v1590 = vpack.c.b16 %v1492, %v1490
    %v1591 = vpack.c.b16 %v1495, %v1493
    %v1592 = vpack.c.b16 %v1496, %v1494
    %v1593 = vpack.c.b16 %v1499, %v1497
    %v1594 = vpack.c.b16 %v1500, %v1498
    %v1595 = vpack.c.b16 %v1503, %v1501
    %v1596 = vpack.c.b16 %v1504, %v1502
    %v1597 = vpack.c.b16 %v1507, %v1505
    %v1598 = vpack.c.b16 %v1508, %v1506
    %v1599 = vpack.c.b16 %v1511, %v1509
    %v1600 = vpack.c.b16 %v1512, %v1510
    %v1601 = vpack.c.b16 %v1515, %v1513
    %v1602 = vpack.c.b16 %v1516, %v1514
    %v1603 = vpack.c.b16 %v1519, %v1517
    %v1604 = vpack.c.b16 %v1520, %v1518
    %v1605 = vpack.c.b16 %v1523, %v1521
    %v1606 = vpack.c.b16 %v1524, %v1522
    %v1607 = vpack.c.b16 %v1527, %v1525
    %v1608 = vpack.c.b16 %v1528, %v1526
    %v1609 = vpack.c.b16 %v1531, %v1529
    %v1610 = vpack.c.b16 %v1532, %v1530
    %v1611 = vpack.c.b16 %v1535, %v1533
    %v1612 = vpack.c.b16 %v1536, %v1534
    %v1613 = vpack.c.b16 %v1539, %v1537
    %v1614 = vpack.c.b16 %v1540, %v1538
    %v1615 = vpack.c.b16 %v1543, %v1541
    %v1616 = vpack.c.b16 %v1544, %v1542
    %v1617 = vpack.c.b16 %v1547, %v1545
    %v1618 = vpack.c.b16 %v1548, %v1546
    %v1619 = vpack.c.b16 %v1551, %v1549
    %v1620 = vpack.c.b16 %v1552, %v1550
    %v1621 = vpack.c.b16 %v1555, %v1553
    %v1622 = vpack.c.b16 %v1556, %v1554
    %v1623 = vpack.c.b16 %v1559, %v1557
    %v1624 = vpack.c.b16 %v1560, %v1558
    %1689 = vmatpush.bf16.msra.mxu0 %v1575
    %1690 = vmatpush.bf16.msra.mxu0 %v1573
    %1691 = vmatpush.bf16.msra.mxu0 %v1571
    %1692 = vmatpush.bf16.msra.mxu0 %v1569
    %1693 = vmatpush.bf16.msra.mxu0 %v1567
    %1694 = vmatpush.bf16.msra.mxu0 %v1565
    %1695 = vmatpush.bf16.msra.mxu0 %v1563
    %1696 = vmatpush.bf16.msra.mxu0 %v1561
    %1697 = vmatmul.bf16.gmra.mxu0 %v1295
    %v1698 = vpop.f32.mrf.mxu0
    %v1699 = vadd.f32 %v1365, %v1698
    %v1700 = vpop.f32.mrf.mxu0
    %1701 = vdwg.mxu0
    %1702 = vmatpush.bf16.msra.mxu0 %v1591
    %1703 = vmatpush.bf16.msra.mxu0 %v1589
    %1704 = vmatpush.bf16.msra.mxu0 %v1587
    %1705 = vmatpush.bf16.msra.mxu0 %v1585
    %1706 = vmatpush.bf16.msra.mxu0 %v1583
    %1707 = vmatpush.bf16.msra.mxu0 %v1581
    %1708 = vmatpush.bf16.msra.mxu0 %v1579
    %1709 = vmatpush.bf16.msra.mxu0 %v1577
    %1710 = vmatmul.bf16.gmra.mxu0 %v1296
    %v1711 = vpop.f32.mrf.mxu0
    %v1712 = vadd.f32 %v1699, %v1711
    %v1713 = vpop.f32.mrf.mxu0
    %1714 = vdwg.mxu0
    %1715 = vmatpush.bf16.msra.mxu0 %v1607
    %1716 = vmatpush.bf16.msra.mxu0 %v1605
    %1717 = vmatpush.bf16.msra.mxu0 %v1603
    %1718 = vmatpush.bf16.msra.mxu0 %v1601
    %1719 = vmatpush.bf16.msra.mxu0 %v1599
    %1720 = vmatpush.bf16.msra.mxu0 %v1597
    %1721 = vmatpush.bf16.msra.mxu0 %v1595
    %1722 = vmatpush.bf16.msra.mxu0 %v1593
    %1723 = vmatmul.bf16.gmra.mxu0 %v1297
    %v1724 = vpop.f32.mrf.mxu0
    %v1725 = vadd.f32 %v1712, %v1724
    %v1726 = vpop.f32.mrf.mxu0
    %1727 = vdwg.mxu0
    %1728 = vmatpush.bf16.msra.mxu0 %v1623
    %1729 = vmatpush.bf16.msra.mxu0 %v1621
    %1730 = vmatpush.bf16.msra.mxu0 %v1619
    %1731 = vmatpush.bf16.msra.mxu0 %v1617
    %1732 = vmatpush.bf16.msra.mxu0 %v1615
    %1733 = vmatpush.bf16.msra.mxu0 %v1613
    %1734 = vmatpush.bf16.msra.mxu0 %v1611
    %1735 = vmatpush.bf16.msra.mxu0 %v1609
    %1736 = vmatmul.bf16.gmra.mxu0 %v1298
    %v1737 = vpop.f32.mrf.mxu0
    %v1738 = vadd.f32 %v1725, %v1737
    %v1739 = vpop.f32.mrf.mxu0
    %1740 = vdwg.mxu0
    %1741 = vmatpush.bf16.msra.mxu0 %v1576
    %1742 = vmatpush.bf16.msra.mxu0 %v1574
    %1743 = vmatpush.bf16.msra.mxu0 %v1572
    %1744 = vmatpush.bf16.msra.mxu0 %v1570
    %1745 = vmatpush.bf16.msra.mxu0 %v1568
    %1746 = vmatpush.bf16.msra.mxu0 %v1566
    %1747 = vmatpush.bf16.msra.mxu0 %v1564
    %1748 = vmatpush.bf16.msra.mxu0 %v1562
    %1749 = vmatmul.bf16.gmra.mxu0 %v1295
    %v1750 = vpop.f32.mrf.mxu0
    %v1751 = vadd.f32 %v1366, %v1750
    %v1752 = vpop.f32.mrf.mxu0
    %1753 = vdwg.mxu0
    %1754 = vmatpush.bf16.msra.mxu0 %v1592
    %1755 = vmatpush.bf16.msra.mxu0 %v1590
    %1756 = vmatpush.bf16.msra.mxu0 %v1588
    %1757 = vmatpush.bf16.msra.mxu0 %v1586
    %1758 = vmatpush.bf16.msra.mxu0 %v1584
    %1759 = vmatpush.bf16.msra.mxu0 %v1582
    %1760 = vmatpush.bf16.msra.mxu0 %v1580
    %1761 = vmatpush.bf16.msra.mxu0 %v1578
    %1762 = vmatmul.bf16.gmra.mxu0 %v1296
    %v1763 = vpop.f32.mrf.mxu0
    %v1764 = vadd.f32 %v1751, %v1763
    %v1765 = vpop.f32.mrf.mxu0
    %1766 = vdwg.mxu0
    %1767 = vmatpush.bf16.msra.mxu0 %v1608
    %1768 = vmatpush.bf16.msra.mxu0 %v1606
    %1769 = vmatpush.bf16.msra.mxu0 %v1604
    %1770 = vmatpush.bf16.msra.mxu0 %v1602
    %1771 = vmatpush.bf16.msra.mxu0 %v1600
    %1772 = vmatpush.bf16.msra.mxu0 %v1598
    %1773 = vmatpush.bf16.msra.mxu0 %v1596
    %1774 = vmatpush.bf16.msra.mxu0 %v1594
    %1775 = vmatmul.bf16.gmra.mxu0 %v1297
    %v1776 = vpop.f32.mrf.mxu0
    %v1777 = vadd.f32 %v1764, %v1776
    %v1778 = vpop.f32.mrf.mxu0
    %1779 = vdwg.mxu0
    %1780 = vmatpush.bf16.msra.mxu0 %v1624
    %1781 = vmatpush.bf16.msra.mxu0 %v1622
    %1782 = vmatpush.bf16.msra.mxu0 %v1620
    %1783 = vmatpush.bf16.msra.mxu0 %v1618
    %1784 = vmatpush.bf16.msra.mxu0 %v1616
    %1785 = vmatpush.bf16.msra.mxu0 %v1614
    %1786 = vmatpush.bf16.msra.mxu0 %v1612
    %1787 = vmatpush.bf16.msra.mxu0 %v1610
    %1788 = vmatmul.bf16.gmra.mxu0 %v1298
    %v1789 = vpop.f32.mrf.mxu0
    %v1790 = vadd.f32 %v1777, %v1789
    %v1791 = vpop.f32.mrf.mxu0
    %1792 = vdwg.mxu0
    %v1793 = vld [vmem:[%s10] sm:$0x3]
    %v1794 = vld [vmem:[%s11] sm:$0x3]
    %v1795 = vsel %vm1137, %v1738, 0.0
    %v1796 = vrot.slane %v1795, 4
    %v1797 = vadd.f32 %v1795, %v1796
    %v1798 = vrot.slane %v1797, 2
    %v1799 = vadd.f32 %v1797, %v1798
    %v1800 = vrot.slane %v1799, 1
    %v1801 = vadd.f32 %v1799, %v1800
    %v1802 = vsel %vm1137, %v1790, 0.0
    %v1803 = vrot.slane %v1802, 4
    %v1804 = vadd.f32 %v1802, %v1803
    %v1805 = vrot.slane %v1804, 2
    %v1806 = vadd.f32 %v1804, %v1805
    %v1807 = vrot.slane %v1806, 1
    %v1808 = vadd.f32 %v1806, %v1807
    %v1809 = vmul.f32 %v1801, %v1172
    %v1810 = vmul.f32 %v1808, %v1172
    %v1811 = vsub.f32 %v1738, %v1809
    %v1812 = vsub.f32 %v1790, %v1810
    %v1813 = vmul.f32 %v1811, %v1811
    %v1814 = vmul.f32 %v1812, %v1812
    %v1815 = vsel %vm1137, %v1813, 0.0
    %v1816 = vrot.slane %v1815, 4
    %v1817 = vadd.f32 %v1815, %v1816
    %v1818 = vrot.slane %v1817, 2
    %v1819 = vadd.f32 %v1817, %v1818
    %v1820 = vrot.slane %v1819, 1
    %v1821 = vadd.f32 %v1819, %v1820
    %v1822 = vsel %vm1137, %v1814, 0.0
    %v1823 = vrot.slane %v1822, 4
    %v1824 = vadd.f32 %v1822, %v1823
    %v1825 = vrot.slane %v1824, 2
    %v1826 = vadd.f32 %v1824, %v1825
    %v1827 = vrot.slane %v1826, 1
    %v1828 = vadd.f32 %v1826, %v1827
    %v1829 = vmul.f32 %v1821, %v1172
    %v1830 = vmul.f32 %v1828, %v1172
    %v1831 = vadd.f32 %v1829, 1e-05
    %v1832 = vadd.f32 %v1830, 1e-05
    %v1833 = vrsqrt.pop %v1831
    %v1834 = vmul.f32 %v1833, %v1831
    %v1835 = vmul.f32 %v1834, %v1833
    %v1836 = vmul.f32 0.5, %v1835
    %v1837 = vsub.f32 1.5, %v1836
    %v1838 = vmul.f32 %v1833, %v1837
    %vm1839 = vweird.f32 %v1831
    %vm1840 = vweird.f32 %v1833
    %vm1841 = vmor %vm1839, %vm1840
    %v1842 = vsel %vm1841, %v1833, %v1838
    %v1843 = vrsqrt.pop %v1832
    %v1844 = vmul.f32 %v1843, %v1832
    %v1845 = vmul.f32 %v1844, %v1843
    %v1846 = vmul.f32 0.5, %v1845
    %v1847 = vsub.f32 1.5, %v1846
    %v1848 = vmul.f32 %v1843, %v1847
    %vm1849 = vweird.f32 %v1832
    %vm1850 = vweird.f32 %v1843
    %vm1851 = vmor %vm1849, %vm1850
    %v1852 = vsel %vm1851, %v1843, %v1848
    %v1853 = vmul.f32 %v1811, %v1842
    %v1854 = vmul.f32 %v1812, %v1852
    %v1856 = vperm.slane %v1793, 0
    %v1857 = vperm.slane %v1793, 1
    %v1860 = vmul.f32 %v1853, %v1856
    %v1861 = vmul.f32 %v1854, %v1857
    %v1863 = vperm.slane %v1794, 0
    %v1864 = vperm.slane %v1794, 1
    %v1867 = vadd.f32 %v1860, %v1863
    %v1868 = vadd.f32 %v1861, %v1864
    %v1869 = vmax.f32 %v1867, 0.0
    %v1870 = vmax.f32 %v1868, 0.0
    %v1871 = vpack.c.bf16 %v1869, %v1869
    %v1872 = vpack.c.bf16 %v1870, %v1870
    %v1873 = vld [vmem:[%s12] sm:$0xf]
    %v1874 = vld [vmem:[%s12 + $0x4] sm:$0xf]
    %v1875 = vld [vmem:[%s12 + $0x8] sm:$0xf]
    %v1876 = vld [vmem:[%s12 + $0xc] sm:$0xf]
    %v1877 = vld [vmem:[%s12 + $0x10] sm:$0xf]
    %v1878 = vld [vmem:[%s12 + $0x14] sm:$0xf]
    %v1879 = vld [vmem:[%s12 + $0x18] sm:$0xf]
    %v1880 = vld [vmem:[%s12 + $0x1c] sm:$0xf]
    %v1881 = vld [vmem:[%s12 + $0x20] sm:$0xf]
    %v1882 = vld [vmem:[%s12 + $0x24] sm:$0xf]
    %v1883 = vld [vmem:[%s12 + $0x28] sm:$0xf]
    %v1884 = vld [vmem:[%s12 + $0x2c] sm:$0xf]
    %v1885 = vld [vmem:[%s12 + $0x30] sm:$0xf]
    %v1886 = vld [vmem:[%s12 + $0x34] sm:$0xf]
    %v1887 = vld [vmem:[%s12 + $0x38] sm:$0xf]
    %v1888 = vld [vmem:[%s12 + $0x3c] sm:$0xf]
    %v1889 = vld [vmem:[%s12 + $0x40] sm:$0xf]
    %v1890 = vld [vmem:[%s12 + $0x44] sm:$0xf]
    %v1891 = vld [vmem:[%s12 + $0x48] sm:$0xf]
    %v1892 = vld [vmem:[%s12 + $0x4c] sm:$0xf]
    %v1893 = vld [vmem:[%s12 + $0x50] sm:$0xf]
    %v1894 = vld [vmem:[%s12 + $0x54] sm:$0xf]
    %v1895 = vld [vmem:[%s12 + $0x58] sm:$0xf]
    %v1896 = vld [vmem:[%s12 + $0x5c] sm:$0xf]
    %v1897 = vld [vmem:[%s12 + $0x60] sm:$0xf]
    %v1898 = vld [vmem:[%s12 + $0x64] sm:$0xf]
    %v1899 = vld [vmem:[%s12 + $0x68] sm:$0xf]
    %v1900 = vld [vmem:[%s12 + $0x6c] sm:$0xf]
    %v1901 = vld [vmem:[%s12 + $0x70] sm:$0xf]
    %v1902 = vld [vmem:[%s12 + $0x74] sm:$0xf]
    %v1903 = vld [vmem:[%s12 + $0x78] sm:$0xf]
    %v1904 = vld [vmem:[%s12 + $0x7c] sm:$0xf]
    %v1905 = vld [vmem:[%s13] sm:$0x1]
    %v1907 = vperm.slane %v1905, 0
    %v1941 = vunpack.c.l.b16 %v1873
    %v1942 = vunpack.c.l.b16 %v1874
    %v1943 = vunpack.c.l.b16 %v1875
    %v1944 = vunpack.c.l.b16 %v1876
    %v1945 = vunpack.c.l.b16 %v1877
    %v1946 = vunpack.c.l.b16 %v1878
    %v1947 = vunpack.c.l.b16 %v1879
    %v1948 = vunpack.c.l.b16 %v1880
    %v1949 = vunpack.c.l.b16 %v1881
    %v1950 = vunpack.c.l.b16 %v1882
    %v1951 = vunpack.c.l.b16 %v1883
    %v1952 = vunpack.c.l.b16 %v1884
    %v1953 = vunpack.c.l.b16 %v1885
    %v1954 = vunpack.c.l.b16 %v1886
    %v1955 = vunpack.c.l.b16 %v1887
    %v1956 = vunpack.c.l.b16 %v1888
    %v1957 = vunpack.c.l.b16 %v1889
    %v1958 = vunpack.c.l.b16 %v1890
    %v1959 = vunpack.c.l.b16 %v1891
    %v1960 = vunpack.c.l.b16 %v1892
    %v1961 = vunpack.c.l.b16 %v1893
    %v1962 = vunpack.c.l.b16 %v1894
    %v1963 = vunpack.c.l.b16 %v1895
    %v1964 = vunpack.c.l.b16 %v1896
    %v1965 = vunpack.c.l.b16 %v1897
    %v1966 = vunpack.c.l.b16 %v1898
    %v1967 = vunpack.c.l.b16 %v1899
    %v1968 = vunpack.c.l.b16 %v1900
    %v1969 = vunpack.c.l.b16 %v1901
    %v1970 = vunpack.c.l.b16 %v1902
    %v1971 = vunpack.c.l.b16 %v1903
    %v1972 = vunpack.c.l.b16 %v1904
    %v1973 = vpack.c.b16 %v1942, %v1941
    %v1974 = vpack.c.b16 %v1944, %v1943
    %v1975 = vpack.c.b16 %v1946, %v1945
    %v1976 = vpack.c.b16 %v1948, %v1947
    %v1977 = vpack.c.b16 %v1950, %v1949
    %v1978 = vpack.c.b16 %v1952, %v1951
    %v1979 = vpack.c.b16 %v1954, %v1953
    %v1980 = vpack.c.b16 %v1956, %v1955
    %v1981 = vpack.c.b16 %v1958, %v1957
    %v1982 = vpack.c.b16 %v1960, %v1959
    %v1983 = vpack.c.b16 %v1962, %v1961
    %v1984 = vpack.c.b16 %v1964, %v1963
    %v1985 = vpack.c.b16 %v1966, %v1965
    %v1986 = vpack.c.b16 %v1968, %v1967
    %v1987 = vpack.c.b16 %v1970, %v1969
    %v1988 = vpack.c.b16 %v1972, %v1971
    %2005 = vmatpush.bf16.msra.mxu0 %v1980
    %2006 = vmatpush.bf16.msra.mxu0 %v1979
    %2007 = vmatpush.bf16.msra.mxu0 %v1978
    %2008 = vmatpush.bf16.msra.mxu0 %v1977
    %2009 = vmatpush.bf16.msra.mxu0 %v1976
    %2010 = vmatpush.bf16.msra.mxu0 %v1975
    %2011 = vmatpush.bf16.msra.mxu0 %v1974
    %2012 = vmatpush.bf16.msra.mxu0 %v1973
    %2013 = vmatmul.bf16.gmra.mxu0 %v1871
    %v2014 = vpop.f32.mrf.mxu0
    %v2015 = vadd.f32 %v1907, %v2014
    %v2016 = vpop.f32.mrf.mxu0
    %2017 = vdwg.mxu0
    %2018 = vmatpush.bf16.msra.mxu0 %v1988
    %2019 = vmatpush.bf16.msra.mxu0 %v1987
    %2020 = vmatpush.bf16.msra.mxu0 %v1986
    %2021 = vmatpush.bf16.msra.mxu0 %v1985
    %2022 = vmatpush.bf16.msra.mxu0 %v1984
    %2023 = vmatpush.bf16.msra.mxu0 %v1983
    %2024 = vmatpush.bf16.msra.mxu0 %v1982
    %2025 = vmatpush.bf16.msra.mxu0 %v1981
    %2026 = vmatmul.bf16.gmra.mxu0 %v1872
    %v2027 = vpop.f32.mrf.mxu0
    %v2028 = vadd.f32 %v2015, %v2027
    %v2029 = vpop.f32.mrf.mxu0
    %2030 = vdwg.mxu0
    %2031 = vst [vmem:[%s14] sm:$0xf] %v2028
    // Predicated region
    $region62: #{pointnet_encoder.9} parent=1 // pred_check
      _
    $region63: #{pointnet_encoder.9} parent=1 // pred_check_branch
      %2033 = sbr.rel (0) target = $region65
    $region64: #{pointnet_encoder.9} parent=1 // pred_region
      _
    $region65: #{pointnet_encoder.9} parent=1 // pred_fallthru
      _
    // Predicated region
    $region66: #{pointnet_encoder.9} parent=1 // pred_check
      _
    $region67: #{pointnet_encoder.9} parent=1 // pred_check_branch
      %2035 = sbr.rel (0) target = $region69
    $region68: #{pointnet_encoder.9} parent=1 // pred_region
      _
    $region69: #{pointnet_encoder.9} parent=1 // pred_fallthru
      _
    %2036 = vsyncpa [#allocation3], 1

</llo_original>
